<compile_context>
chip_gen: v7x
topology: tpu7x:2x2x1
jax: 0.10.0
libtpu: 0.0.40
codegen_flags: <defaults>
</compile_context>

<pallas_src>
import functools
import math

import numpy as np
import jax
import jax.numpy as jnp
from jax.experimental import pallas as pl
from jax.experimental.pallas import tpu as pltpu


# ----------------------------------------------------------------------------
# small helpers (usable both inside and outside kernels)
# ----------------------------------------------------------------------------
def _swish(x):
    return x * jax.nn.sigmoid(x)


def _dot(a, b):
    # f32 MXU matmul with f32 accumulation (works on TPU and in interpret mode).
    return jnp.dot(a, b, preferred_element_type=jnp.float32)


def _dotT(a, b):
    # Contract the leading (row) axis of both operands: (K, M) x (K, N) -> (M, N).
    # Used for scatter-add / per-graph pooling without materializing a transposed
    # one-hot buffer.
    return jax.lax.dot_general(a, b, (((0,), (0,)), ((), ())),
                               preferred_element_type=jnp.float32)


# ----------------------------------------------------------------------------
# Fully fused forward kernel
# ----------------------------------------------------------------------------
def _fae_forward_kernel(
        # node embedding MLP
        hemb_ref, wl1_ref, bl1_ref, wl2_ref, bl2_ref,
        # edge embedding (gaussian smearing + block-diag projection)
        relpos_ref, d_ref, off_ref, coeff_ref,
        we1_ref, we12_ref, bec_ref, we2_ref, be2_ref,
        # graph structure (bf16 one-hots, f32 inverse counts)
        srcoh_ref, dstoh_ref, batchoh_ref, invc_ref,
        # stacked per-layer interaction weights (leading axis = layer)
        wge_ref, wgs_ref, wgd_ref, bg_ref,
        wdn_ref, bdn_ref, wup_ref, bup_ref,
        gam_ref, bet_ref, msc_ref,
        # shared output block + skip combine
        wo1_ref, bo1_ref, wo2_ref, bo2_ref,
        wskip_ref, bskip_ref,
        # output
        out_ref,
        *, num_layers, eps):
    f32 = jnp.float32
    N = hemb_ref.shape[0]

    # Hoisted casts: one-hots live bf16 in HBM (half the DMA), cast to f32 once here.
    src_oh = srcoh_ref[...].astype(f32)        # (E, N)
    dst_oh = dstoh_ref[...].astype(f32)        # (E, N)
    batch_oh = batchoh_ref[...].astype(f32)    # (N, B)
    invc = invc_ref[...]                       # (B, 1)

    # ---- embedding block: node MLP  h = swish(lin_2(swish(lin(h_emb)))) ----
    h = _swish(_dot(hemb_ref[...], wl1_ref[...]) + bl1_ref[...])
    h = _swish(_dot(h, wl2_ref[...]) + bl2_ref[...])

    # ---- embedding block: gaussian smearing + fused (rel_pos | gauss) projection ----
    diff = d_ref[...] - off_ref[...]                           # (E, G)
    gauss = jnp.exp(coeff_ref[...] * diff * diff)
    e0 = _swish(_dot(relpos_ref[...], we1_ref[...])
                + _dot(gauss, we12_ref[...]) + bec_ref[...])   # (E, F)
    e = _swish(_dot(e0, we2_ref[...]) + be2_ref[...])          # (E, F)

    # shared output block (H -> H/2 -> 1); last layer is a VPU weighted reduction.
    def output_block(hh):
        t = _swish(_dot(hh, wo1_ref[...]) + bo1_ref[...])                        # (N, H/2)
        return jnp.sum(t * wo2_ref[...], axis=-1, keepdims=True) + bo2_ref[...]  # (N, 1)

    skip = jnp.zeros((N, 1), f32)   # running mlp_skip_co accumulator

    for i in range(num_layers):
        # ---- skip_co="concat": per-layer energy from pre-update h ----
        skip = skip + output_block(h) * wskip_ref[i]

        # ---- edge filter: w_edge = swish(lin_geom([e, h_src, h_dst])) ----
        h_src = _dot(src_oh, h)                                # (E, H) gather h[src]
        h_dst = _dot(dst_oh, h)                                # (E, H) gather h[dst]
        w_edge = _swish(_dot(e, wge_ref[i]) + _dot(h_src, wgs_ref[i])
                        + _dot(h_dst, wgd_ref[i]) + bg_ref[i])            # (E, F)

        # ---- message passing (mp_type="updownscale_base") ----
        h_down = _swish(_dot(h, wdn_ref[i]) + bdn_ref[i])                 # (N, F)
        msg = _dot(src_oh, h_down) * w_edge                               # (E, F)
        chi = _dotT(dst_oh, msg)                                          # (N, F) scatter-add

        # ---- GraphNorm (per-graph stats, all f32) + swish ----
        mean_g = _dotT(batch_oh, chi) * invc                              # (B, F)
        centered = chi - _dot(batch_oh, mean_g) * msc_ref[i]              # (N, F)
        var_g = _dotT(batch_oh, centered * centered) * invc               # (B, F)
        var = _dot(batch_oh, var_g)                                       # (N, F)
        chi_n = _swish(gam_ref[i] * centered * jax.lax.rsqrt(var + eps) + bet_ref[i])

        # ---- up-projection + residual ----
        h = h + _swish(_dot(chi_n, wup_ref[i]) + bup_ref[i])

    # ---- final output block, mlp_skip_co combine, global mean pool ----
    node_energy = skip + output_block(h) * wskip_ref[num_layers] + bskip_ref[0]   # (N, 1)
    out_ref[...] = _dotT(batch_oh, node_energy) * invc                            # (B, 1)


# ----------------------------------------------------------------------------
# VMEM budget estimate for the fused call (padded to TPU tiling)
# ----------------------------------------------------------------------------
def _padded_nbytes(a):
    shape, itemsize = a.shape, np.dtype(a.dtype).itemsize
    if len(shape) == 0:
        lead, rows, cols = 1, 1, 1
    elif len(shape) == 1:
        lead, rows, cols = 1, 1, shape[0]
    else:
        rows, cols = shape[-2], shape[-1]
        lead = int(np.prod(shape[:-2], dtype=np.int64)) if len(shape) > 2 else 1
    sub = 8 if itemsize >= 4 else (16 if itemsize == 2 else 32)
    return lead * (-(-rows // sub) * sub) * (-(-cols // 128) * 128) * itemsize


def _vmem_limit_bytes(args, out_shapes):
    total = sum(_padded_nbytes(a) for a in args) + sum(_padded_nbytes(o) for o in out_shapes)
    total = 4 * total + (4 << 20)          # headroom for in-kernel (E,H)/(N,F) temporaries
    return int(min(max(total, 16 << 20), 64 << 20))


# ----------------------------------------------------------------------------
# Parameter init (deterministic, PyTorch-like Linear init, Embedding ~ N(0,1))
# ----------------------------------------------------------------------------
def _init_linear(key, fan_in, fan_out):
    kw, kb = jax.random.split(key)
    bound = 1.0 / math.sqrt(fan_in)
    w = jax.random.uniform(kw, (fan_in, fan_out), jnp.float32, -bound, bound)
    b = jax.random.uniform(kb, (1, fan_out), jnp.float32, -bound, bound)
    return w, b


CFG = dict(
    comp_size=12,
    hidden_channels=32,
    pg_hidden_channels=8,
    phys_hidden_channels=0,
    tag_hidden_channels=0,    # ArchFAE: FAENet(tag_hidden_channels=0)
    num_filters=16,
    num_gaussians=16,
    num_interactions=2,
    cutoff=6.0,
    period_size=8,
    group_size=19,
)


def init_params(key, cfg):
    H, PG = cfg["hidden_channels"], cfg["pg_hidden_channels"]
    F, G, L = cfg["num_filters"], cfg["num_gaussians"], cfg["num_interactions"]
    emb_dim = H - cfg["phys_hidden_channels"] - 2 * PG   # ArchFAE replace_emb width
    keys = iter(jax.random.split(key, 64))
    p = {}
    p["emb"] = jax.random.normal(next(keys), (cfg["comp_size"], emb_dim), jnp.float32)
    p["period_emb"] = jax.random.normal(next(keys), (cfg["period_size"], PG), jnp.float32)
    p["group_emb"] = jax.random.normal(next(keys), (cfg["group_size"], PG), jnp.float32)
    p["w_lin"], p["b_lin"] = _init_linear(next(keys), H, H)
    p["w_lin2"], p["b_lin2"] = _init_linear(next(keys), H, H)

    # edge embedding: pre-build block-diagonal (3 | G) -> F projection (MXU K-padding)
    w_e1, b_e1 = _init_linear(next(keys), 3, F // 2)
    w_e12, b_e12 = _init_linear(next(keys), G, F // 2)
    p["w_e1pad"] = jnp.concatenate([w_e1, jnp.zeros((3, F - F // 2), jnp.float32)], axis=1)
    p["w_e12pad"] = jnp.concatenate([jnp.zeros((G, F - F // 2), jnp.float32), w_e12], axis=1)
    p["b_ecat"] = jnp.concatenate([b_e1, b_e12], axis=1)
    p["w_e2"], p["b_e2"] = _init_linear(next(keys), F, F)

    # stacked per-layer interaction weights (leading axis = layer)
    wge, wgs, wgd, bg = [], [], [], []
    wdn, bdn, wup, bup = [], [], [], []
    gam, bet, msc = [], [], []
    for _ in range(L):
        w_geom, b_geom = _init_linear(next(keys), F + 2 * H, F)
        w_down, b_down = _init_linear(next(keys), H, F)
        w_up, b_up = _init_linear(next(keys), F, H)
        # row-split lin_geom so the kernel avoids an in-VMEM concat of [e|h_src|h_dst]
        wge.append(w_geom[:F]); wgs.append(w_geom[F:F + H]); wgd.append(w_geom[F + H:])
        bg.append(b_geom)
        wdn.append(w_down); bdn.append(b_down); wup.append(w_up); bup.append(b_up)
        gam.append(jnp.ones((1, F), jnp.float32))
        bet.append(jnp.zeros((1, F), jnp.float32))
        msc.append(jnp.ones((1, F), jnp.float32))
    p["w_geom_e"] = jnp.stack(wge); p["w_geom_s"] = jnp.stack(wgs)
    p["w_geom_d"] = jnp.stack(wgd); p["b_geom"] = jnp.stack(bg)
    p["w_down"] = jnp.stack(wdn); p["b_down"] = jnp.stack(bdn)
    p["w_up"] = jnp.stack(wup); p["b_up"] = jnp.stack(bup)
    p["gn_gamma"] = jnp.stack(gam); p["gn_beta"] = jnp.stack(bet)
    p["gn_mean_scale"] = jnp.stack(msc)

    # shared output block (H -> H/2 -> 1)
    p["w_out1"], p["b_out1"] = _init_linear(next(keys), H, H // 2)
    w_out2, b_out2 = _init_linear(next(keys), H // 2, 1)
    p["w_out2_row"] = w_out2.T                     # (1, H//2) row for VPU reduction
    p["b_out2"] = b_out2                           # (1, 1)
    # mlp_skip_co: Linear(num_interactions+1, 1) stored as SMEM scalars
    w_skip, b_skip = _init_linear(next(keys), L + 1, 1)
    p["w_skip"] = w_skip[:, 0]                     # (L+1,)
    p["b_skip"] = b_skip[0]                        # (1,)

    delta = cfg["cutoff"] / (G - 1)
    p["gauss_offsets"] = jnp.linspace(0.0, cfg["cutoff"], G, dtype=jnp.float32)[None, :]
    p["gauss_coeff"] = jnp.full((1, 1), -0.5 / (delta ** 2), jnp.float32)
    return p


# ----------------------------------------------------------------------------
# ArchFAE forward = FAENet.energy_forward (node energies) + global_mean_pool
# ----------------------------------------------------------------------------
@functools.partial(jax.jit, static_argnames=("num_graphs",))
def arch_fae_forward(params, z, period, group, edge_index, rel_pos,
                     edge_weight, batch, num_graphs):
    f32, bf16 = jnp.float32, jnp.bfloat16
    N, B = z.shape[0], num_graphs
    src, dst = edge_index[0], edge_index[1]
    L = int(params["w_geom_e"].shape[0])

    # ---- host/XLA glue: embedding-table gathers, one-hot gather/scatter matrices ----
    # Message flow: gather from edge_index[0] (src), scatter-add into edge_index[1] (dst).
    h_emb = jnp.concatenate([
        jnp.take(params["emb"], z, axis=0),
        jnp.take(params["period_emb"], period, axis=0),
        jnp.take(params["group_emb"], group, axis=0),
    ], axis=1)                                                       # (N, H)
    src_oh = jax.nn.one_hot(src, N, dtype=bf16)                      # (E, N)
    dst_oh = jax.nn.one_hot(dst, N, dtype=bf16)                      # (E, N)
    batch_oh = jax.nn.one_hot(batch, B, dtype=bf16)                  # (N, B)
    counts = jax.ops.segment_sum(jnp.ones((N,), f32), batch, num_segments=B)[:, None]
    inv_counts = 1.0 / jnp.maximum(counts, 1.0)                      # guard empty graphs
    d = edge_weight[:, None]                                         # (E, 1)

    args = [
        h_emb, params["w_lin"], params["b_lin"], params["w_lin2"], params["b_lin2"],
        rel_pos, d, params["gauss_offsets"], params["gauss_coeff"],
        params["w_e1pad"], params["w_e12pad"], params["b_ecat"], params["w_e2"], params["b_e2"],
        src_oh, dst_oh, batch_oh, inv_counts,
        params["w_geom_e"], params["w_geom_s"], params["w_geom_d"], params["b_geom"],
        params["w_down"], params["b_down"], params["w_up"], params["b_up"],
        params["gn_gamma"], params["gn_beta"], params["gn_mean_scale"],
        params["w_out1"], params["b_out1"], params["w_out2_row"], params["b_out2"],
        params["w_skip"], params["b_skip"],
    ]
    vmem = pl.BlockSpec(memory_space=pltpu.MemorySpace.VMEM)
    smem = pl.BlockSpec(memory_space=pltpu.MemorySpace.SMEM)
    in_specs = [vmem] * len(args)
    in_specs[-2] = smem   # w_skip scalars
    in_specs[-1] = smem   # b_skip scalar

    out_shape = jax.ShapeDtypeStruct((B, 1), f32)
    return pl.pallas_call(
        functools.partial(_fae_forward_kernel, num_layers=L, eps=1e-5),
        out_shape=out_shape,
        in_specs=in_specs,
        out_specs=vmem,
        compiler_params=pltpu.CompilerParams(
            vmem_limit_bytes=_vmem_limit_bytes(args, [out_shape])),
    )(*args)


# ----------------------------------------------------------------------------
# Pure-JAX reference of the same math (gather / segment_sum formulation)
# ----------------------------------------------------------------------------
def _reference_forward(params, z, period, group, edge_index, rel_pos,
                       edge_weight, batch, num_graphs):
    src, dst = edge_index[0], edge_index[1]
    N, B = z.shape[0], num_graphs
    L = int(params["w_geom_e"].shape[0])
    counts = jnp.maximum(
        jax.ops.segment_sum(jnp.ones((N,), jnp.float32), batch, num_segments=B), 1.0)[:, None]

    h = jnp.concatenate([params["emb"][z], params["period_emb"][period],
                         params["group_emb"][group]], axis=1)
    h = _swish(h @ params["w_lin"] + params["b_lin"])
    h = _swish(h @ params["w_lin2"] + params["b_lin2"])

    d = edge_weight[:, None]
    gauss = jnp.exp(params["gauss_coeff"] * (d - params["gauss_offsets"]) ** 2)
    e0 = _swish(rel_pos @ params["w_e1pad"] + gauss @ params["w_e12pad"] + params["b_ecat"])
    e = _swish(e0 @ params["w_e2"] + params["b_e2"])

    def output_block(hh):
        t = _swish(hh @ params["w_out1"] + params["b_out1"])
        return jnp.sum(t * params["w_out2_row"], axis=-1, keepdims=True) + params["b_out2"]

    skip = jnp.zeros((N, 1), jnp.float32)
    for i in range(L):
        skip = skip + output_block(h) * params["w_skip"][i]
        w_edge = _swish(e @ params["w_geom_e"][i] + h[src] @ params["w_geom_s"][i]
                        + h[dst] @ params["w_geom_d"][i] + params["b_geom"][i])
        h_down = _swish(h @ params["w_down"][i] + params["b_down"][i])
        msg = h_down[src] * w_edge
        chi = jax.ops.segment_sum(msg, dst, num_segments=N)
        mean_g = jax.ops.segment_sum(chi, batch, num_segments=B) / counts
        centered = chi - mean_g[batch] * params["gn_mean_scale"][i]
        var_g = jax.ops.segment_sum(centered * centered, batch, num_segments=B) / counts
        chi_n = _swish(params["gn_gamma"][i] * centered
                       * jax.lax.rsqrt(var_g[batch] + 1e-5) + params["gn_beta"][i])
        h = h + _swish(chi_n @ params["w_up"][i] + params["b_up"][i])

    node_energy = skip + output_block(h) * params["w_skip"][L] + params["b_skip"][0]
    return jax.ops.segment_sum(node_energy, batch, num_segments=B) / counts


# ----------------------------------------------------------------------------
if __name__ == "__main__":
    key = jax.random.PRNGKey(0)
    k_z, k_pos = jax.random.split(key)

    B = 2
    nodes_per_graph = 8
    N = B * nodes_per_graph

    z = jax.random.randint(k_z, (N,), 0, CFG["comp_size"], dtype=jnp.int32)
    period = (z % CFG["period_size"]).astype(jnp.int32)
    group = ((z * 5) % CFG["group_size"]).astype(jnp.int32)
    pos = jax.random.normal(k_pos, (N, 3), jnp.float32)

    # deterministic intra-graph ring graph (each node -> next two nodes)
    src_l, dst_l = [], []
    for g in range(B):
        base = g * nodes_per_graph
        for i in range(nodes_per_graph):
            for off in (1, 2):
                src_l.append(base + i)
                dst_l.append(base + (i + off) % nodes_per_graph)
    edge_index = jnp.array([src_l, dst_l], dtype=jnp.int32)          # (2, E), E = 32
    rel_pos = pos[edge_index[0]] - pos[edge_index[1]]                # (E, 3)
    edge_weight = jnp.linalg.norm(rel_pos, axis=1)                   # (E,)
    batch = jnp.repeat(jnp.arange(B, dtype=jnp.int32), nodes_per_graph)

    params = init_params(jax.random.PRNGKey(42), CFG)

    out = arch_fae_forward(params, z, period, group, edge_index, rel_pos,
                           edge_weight, batch, num_graphs=B)
    out = jax.block_until_ready(out)
    ref = _reference_forward(params, z, period, group, edge_index, rel_pos,
                             edge_weight, batch, B)

    assert out.shape == (B, 1) and bool(jnp.all(jnp.isfinite(out)))
    assert float(jnp.max(jnp.abs(out - ref))) < 1e-2
    print("KERNEL_OK")
</pallas_src>

<mosaic_0001>
module attributes {stable_mosaic.version = 11 : i64} {
  func.func private @main(%arg0: i32) attributes {dimension_semantics = [#tpu.dimension_semantics<core_parallel>], iteration_bounds = array<i64: 2>, tpu.core_type = #tpu.core_type<sc_scalar_subcore>, window_params = []} {
    return
  }
}

module attributes {stable_mosaic.version = 11 : i64} {
  func.func private @main(%arg0: i32) attributes {dimension_semantics = [#tpu.dimension_semantics<core_parallel>], iteration_bounds = array<i64: 2>, tpu.core_type = #tpu.core_type<sc_scalar_subcore>, window_params = []} {
    return
  }
}

module attributes {stable_mosaic.version = 11 : i64} {
  func.func @_fae_forward_kernel(%arg0: memref<16x32xf32, #tpu.memory_space<vmem>>, %arg1: memref<32x32xf32, #tpu.memory_space<vmem>>, %arg2: memref<1x32xf32, #tpu.memory_space<vmem>>, %arg3: memref<32x32xf32, #tpu.memory_space<vmem>>, %arg4: memref<1x32xf32, #tpu.memory_space<vmem>>, %arg5: memref<32x3xf32, #tpu.memory_space<vmem>>, %arg6: memref<32x1xf32, #tpu.memory_space<vmem>>, %arg7: memref<1x16xf32, #tpu.memory_space<vmem>>, %arg8: memref<1x1xf32, #tpu.memory_space<vmem>>, %arg9: memref<3x16xf32, #tpu.memory_space<vmem>>, %arg10: memref<16x16xf32, #tpu.memory_space<vmem>>, %arg11: memref<1x16xf32, #tpu.memory_space<vmem>>, %arg12: memref<16x16xf32, #tpu.memory_space<vmem>>, %arg13: memref<1x16xf32, #tpu.memory_space<vmem>>, %arg14: memref<32x16xbf16, #tpu.memory_space<vmem>>, %arg15: memref<32x16xbf16, #tpu.memory_space<vmem>>, %arg16: memref<16x2xbf16, #tpu.memory_space<vmem>>, %arg17: memref<2x1xf32, #tpu.memory_space<vmem>>, %arg18: memref<2x16x16xf32, #tpu.memory_space<vmem>>, %arg19: memref<2x32x16xf32, #tpu.memory_space<vmem>>, %arg20: memref<2x32x16xf32, #tpu.memory_space<vmem>>, %arg21: memref<2x1x16xf32, #tpu.memory_space<vmem>>, %arg22: memref<2x32x16xf32, #tpu.memory_space<vmem>>, %arg23: memref<2x1x16xf32, #tpu.memory_space<vmem>>, %arg24: memref<2x16x32xf32, #tpu.memory_space<vmem>>, %arg25: memref<2x1x32xf32, #tpu.memory_space<vmem>>, %arg26: memref<2x1x16xf32, #tpu.memory_space<vmem>>, %arg27: memref<2x1x16xf32, #tpu.memory_space<vmem>>, %arg28: memref<2x1x16xf32, #tpu.memory_space<vmem>>, %arg29: memref<32x16xf32, #tpu.memory_space<vmem>>, %arg30: memref<1x16xf32, #tpu.memory_space<vmem>>, %arg31: memref<1x16xf32, #tpu.memory_space<vmem>>, %arg32: memref<1x1xf32, #tpu.memory_space<vmem>>, %arg33: memref<3xf32, #tpu.memory_space<smem>>, %arg34: memref<1xf32, #tpu.memory_space<smem>>, %arg35: memref<2x1xf32, #tpu.memory_space<vmem>>) attributes {dimension_semantics = [], scalar_prefetch = 0 : i64, scratch_operands = 0 : i64, tpu.core_type = #tpu.core_type<tc>} {
    %c0 = arith.constant 0 : index
    %c0_0 = arith.constant 0 : index
    %0 = vector.load %arg14[%c0, %c0_0] : memref<32x16xbf16, #tpu.memory_space<vmem>>, vector<32x16xbf16>
    %1 = arith.extf %0 : vector<32x16xbf16> to vector<32x16xf32>
    %c0_1 = arith.constant 0 : index
    %c0_2 = arith.constant 0 : index
    %2 = vector.load %arg15[%c0_1, %c0_2] : memref<32x16xbf16, #tpu.memory_space<vmem>>, vector<32x16xbf16>
    %3 = arith.extf %2 : vector<32x16xbf16> to vector<32x16xf32>
    %c0_3 = arith.constant 0 : index
    %c0_4 = arith.constant 0 : index
    %4 = vector.load %arg16[%c0_3, %c0_4] : memref<16x2xbf16, #tpu.memory_space<vmem>>, vector<16x2xbf16>
    %5 = arith.extf %4 : vector<16x2xbf16> to vector<16x2xf32>
    %c0_5 = arith.constant 0 : index
    %c0_6 = arith.constant 0 : index
    %6 = vector.load %arg17[%c0_5, %c0_6] : memref<2x1xf32, #tpu.memory_space<vmem>>, vector<2x1xf32>
    %c0_7 = arith.constant 0 : index
    %c0_8 = arith.constant 0 : index
    %7 = vector.load %arg0[%c0_7, %c0_8] : memref<16x32xf32, #tpu.memory_space<vmem>>, vector<16x32xf32>
    %c0_9 = arith.constant 0 : index
    %c0_10 = arith.constant 0 : index
    %8 = vector.load %arg1[%c0_9, %c0_10] : memref<32x32xf32, #tpu.memory_space<vmem>>, vector<32x32xf32>
    %cst = arith.constant dense<0.000000e+00> : vector<16x32xf32>
    %9 = tpu.matmul %7, %8, %cst {dimension_numbers = #tpu.dot_dimension_numbers<[1], [0], [0], [1], [0, 0, 1, 1], [], []>} : vector<16x32xf32>, vector<32x32xf32>, vector<16x32xf32> -> vector<16x32xf32>
    %c0_11 = arith.constant 0 : index
    %c0_12 = arith.constant 0 : index
    %10 = vector.load %arg2[%c0_11, %c0_12] : memref<1x32xf32, #tpu.memory_space<vmem>>, vector<1x32xf32>
    %11 = vector.broadcast %10 : vector<1x32xf32> to vector<16x32xf32>
    %12 = arith.addf %9, %11 : vector<16x32xf32>
    %13 = arith.negf %12 : vector<16x32xf32>
    %14 = math.exp %13 : vector<16x32xf32>
    %cst_13 = arith.constant 1.000000e+00 : f32
    %15 = vector.broadcast %cst_13 : f32 to vector<16x32xf32>
    %16 = arith.addf %15, %14 : vector<16x32xf32>
    %17 = arith.divf %15, %16 : vector<16x32xf32>
    %18 = arith.mulf %12, %17 : vector<16x32xf32>
    %c0_14 = arith.constant 0 : index
    %c0_15 = arith.constant 0 : index
    %19 = vector.load %arg3[%c0_14, %c0_15] : memref<32x32xf32, #tpu.memory_space<vmem>>, vector<32x32xf32>
    %cst_16 = arith.constant dense<0.000000e+00> : vector<16x32xf32>
    %20 = tpu.matmul %18, %19, %cst_16 {dimension_numbers = #tpu.dot_dimension_numbers<[1], [0], [0], [1], [0, 0, 1, 1], [], []>} : vector<16x32xf32>, vector<32x32xf32>, vector<16x32xf32> -> vector<16x32xf32>
    %c0_17 = arith.constant 0 : index
    %c0_18 = arith.constant 0 : index
    %21 = vector.load %arg4[%c0_17, %c0_18] : memref<1x32xf32, #tpu.memory_space<vmem>>, vector<1x32xf32>
    %22 = vector.broadcast %21 : vector<1x32xf32> to vector<16x32xf32>
    %23 = arith.addf %20, %22 : vector<16x32xf32>
    %24 = arith.negf %23 : vector<16x32xf32>
    %25 = math.exp %24 : vector<16x32xf32>
    %cst_19 = arith.constant 1.000000e+00 : f32
    %26 = vector.broadcast %cst_19 : f32 to vector<16x32xf32>
    %27 = arith.addf %26, %25 : vector<16x32xf32>
    %28 = arith.divf %26, %27 : vector<16x32xf32>
    %29 = arith.mulf %23, %28 : vector<16x32xf32>
    %c0_20 = arith.constant 0 : index
    %c0_21 = arith.constant 0 : index
    %30 = vector.load %arg6[%c0_20, %c0_21] : memref<32x1xf32, #tpu.memory_space<vmem>>, vector<32x1xf32>
    %c0_22 = arith.constant 0 : index
    %c0_23 = arith.constant 0 : index
    %31 = vector.load %arg7[%c0_22, %c0_23] : memref<1x16xf32, #tpu.memory_space<vmem>>, vector<1x16xf32>
    %32 = vector.broadcast %30 : vector<32x1xf32> to vector<32x16xf32>
    %33 = vector.broadcast %31 : vector<1x16xf32> to vector<32x16xf32>
    %34 = arith.subf %32, %33 : vector<32x16xf32>
    %c0_24 = arith.constant 0 : index
    %c0_25 = arith.constant 0 : index
    %35 = vector.load %arg8[%c0_24, %c0_25] : memref<1x1xf32, #tpu.memory_space<vmem>>, vector<1x1xf32>
    %36 = vector.broadcast %35 : vector<1x1xf32> to vector<32x16xf32>
    %37 = arith.mulf %36, %34 : vector<32x16xf32>
    %38 = arith.mulf %37, %34 : vector<32x16xf32>
    %39 = math.exp %38 : vector<32x16xf32>
    %c0_26 = arith.constant 0 : index
    %c0_27 = arith.constant 0 : index
    %40 = vector.load %arg5[%c0_26, %c0_27] : memref<32x3xf32, #tpu.memory_space<vmem>>, vector<32x3xf32>
    %c0_28 = arith.constant 0 : index
    %c0_29 = arith.constant 0 : index
    %41 = vector.load %arg9[%c0_28, %c0_29] : memref<3x16xf32, #tpu.memory_space<vmem>>, vector<3x16xf32>
    %cst_30 = arith.constant dense<0.000000e+00> : vector<32x16xf32>
    %42 = tpu.matmul %40, %41, %cst_30 {dimension_numbers = #tpu.dot_dimension_numbers<[1], [0], [0], [1], [0, 0, 1, 1], [], []>} : vector<32x3xf32>, vector<3x16xf32>, vector<32x16xf32> -> vector<32x16xf32>
    %c0_31 = arith.constant 0 : index
    %c0_32 = arith.constant 0 : index
    %43 = vector.load %arg10[%c0_31, %c0_32] : memref<16x16xf32, #tpu.memory_space<vmem>>, vector<16x16xf32>
    %cst_33 = arith.constant dense<0.000000e+00> : vector<32x16xf32>
    %44 = tpu.matmul %39, %43, %cst_33 {dimension_numbers = #tpu.dot_dimension_numbers<[1], [0], [0], [1], [0, 0, 1, 1], [], []>} : vector<32x16xf32>, vector<16x16xf32>, vector<32x16xf32> -> vector<32x16xf32>
    %45 = arith.addf %42, %44 : vector<32x16xf32>
    %c0_34 = arith.constant 0 : index
    %c0_35 = arith.constant 0 : index
    %46 = vector.load %arg11[%c0_34, %c0_35] : memref<1x16xf32, #tpu.memory_space<vmem>>, vector<1x16xf32>
    %47 = vector.broadcast %46 : vector<1x16xf32> to vector<32x16xf32>
    %48 = arith.addf %45, %47 : vector<32x16xf32>
    %49 = arith.negf %48 : vector<32x16xf32>
    %50 = math.exp %49 : vector<32x16xf32>
    %cst_36 = arith.constant 1.000000e+00 : f32
    %51 = vector.broadcast %cst_36 : f32 to vector<32x16xf32>
    %52 = arith.addf %51, %50 : vector<32x16xf32>
    %53 = arith.divf %51, %52 : vector<32x16xf32>
    %54 = arith.mulf %48, %53 : vector<32x16xf32>
    %c0_37 = arith.constant 0 : index
    %c0_38 = arith.constant 0 : index
    %55 = vector.load %arg12[%c0_37, %c0_38] : memref<16x16xf32, #tpu.memory_space<vmem>>, vector<16x16xf32>
    %cst_39 = arith.constant dense<0.000000e+00> : vector<32x16xf32>
    %56 = tpu.matmul %54, %55, %cst_39 {dimension_numbers = #tpu.dot_dimension_numbers<[1], [0], [0], [1], [0, 0, 1, 1], [], []>} : vector<32x16xf32>, vector<16x16xf32>, vector<32x16xf32> -> vector<32x16xf32>
    %c0_40 = arith.constant 0 : index
    %c0_41 = arith.constant 0 : index
    %57 = vector.load %arg13[%c0_40, %c0_41] : memref<1x16xf32, #tpu.memory_space<vmem>>, vector<1x16xf32>
    %58 = vector.broadcast %57 : vector<1x16xf32> to vector<32x16xf32>
    %59 = arith.addf %56, %58 : vector<32x16xf32>
    %60 = arith.negf %59 : vector<32x16xf32>
    %61 = math.exp %60 : vector<32x16xf32>
    %cst_42 = arith.constant 1.000000e+00 : f32
    %62 = vector.broadcast %cst_42 : f32 to vector<32x16xf32>
    %63 = arith.addf %62, %61 : vector<32x16xf32>
    %64 = arith.divf %62, %63 : vector<32x16xf32>
    %65 = arith.mulf %59, %64 : vector<32x16xf32>
    %cst_43 = arith.constant 0.000000e+00 : f32
    %66 = vector.broadcast %cst_43 : f32 to vector<16x1xf32>
    %c0_44 = arith.constant 0 : index
    %c0_45 = arith.constant 0 : index
    %67 = vector.load %arg29[%c0_44, %c0_45] : memref<32x16xf32, #tpu.memory_space<vmem>>, vector<32x16xf32>
    %cst_46 = arith.constant dense<0.000000e+00> : vector<16x16xf32>
    %68 = tpu.matmul %29, %67, %cst_46 {dimension_numbers = #tpu.dot_dimension_numbers<[1], [0], [0], [1], [0, 0, 1, 1], [], []>} : vector<16x32xf32>, vector<32x16xf32>, vector<16x16xf32> -> vector<16x16xf32>
    %c0_47 = arith.constant 0 : index
    %c0_48 = arith.constant 0 : index
    %69 = vector.load %arg30[%c0_47, %c0_48] : memref<1x16xf32, #tpu.memory_space<vmem>>, vector<1x16xf32>
    %70 = vector.broadcast %69 : vector<1x16xf32> to vector<16x16xf32>
    %71 = arith.addf %68, %70 : vector<16x16xf32>
    %72 = arith.negf %71 : vector<16x16xf32>
    %73 = math.exp %72 : vector<16x16xf32>
    %cst_49 = arith.constant 1.000000e+00 : f32
    %74 = vector.broadcast %cst_49 : f32 to vector<16x16xf32>
    %75 = arith.addf %74, %73 : vector<16x16xf32>
    %76 = arith.divf %74, %75 : vector<16x16xf32>
    %77 = arith.mulf %71, %76 : vector<16x16xf32>
    %c0_50 = arith.constant 0 : index
    %c0_51 = arith.constant 0 : index
    %78 = vector.load %arg31[%c0_50, %c0_51] : memref<1x16xf32, #tpu.memory_space<vmem>>, vector<1x16xf32>
    %79 = vector.broadcast %78 : vector<1x16xf32> to vector<16x16xf32>
    %80 = arith.mulf %77, %79 : vector<16x16xf32>
    %cst_52 = arith.constant dense<0.000000e+00> : vector<16xf32>
    %81 = vector.multi_reduction <add>, %80, %cst_52 [1] : vector<16x16xf32> to vector<16xf32>
    %82 = vector.shape_cast %81 : vector<16xf32> to vector<16x1xf32>
    %c0_53 = arith.constant 0 : index
    %c0_54 = arith.constant 0 : index
    %83 = vector.load %arg32[%c0_53, %c0_54] : memref<1x1xf32, #tpu.memory_space<vmem>>, vector<1x1xf32>
    %84 = vector.broadcast %83 : vector<1x1xf32> to vector<16x1xf32>
    %85 = arith.addf %82, %84 : vector<16x1xf32>
    %c0_55 = arith.constant 0 : index
    %86 = memref.load %arg33[%c0_55] : memref<3xf32, #tpu.memory_space<smem>>
    %87 = vector.broadcast %86 : f32 to vector<16x1xf32>
    %88 = arith.mulf %85, %87 : vector<16x1xf32>
    %89 = arith.addf %66, %88 : vector<16x1xf32>
    %cst_56 = arith.constant dense<0.000000e+00> : vector<32x32xf32>
    %90 = tpu.matmul %1, %29, %cst_56 {dimension_numbers = #tpu.dot_dimension_numbers<[1], [0], [0], [1], [0, 0, 1, 1], [], []>} : vector<32x16xf32>, vector<16x32xf32>, vector<32x32xf32> -> vector<32x32xf32>
    %cst_57 = arith.constant dense<0.000000e+00> : vector<32x32xf32>
    %91 = tpu.matmul %3, %29, %cst_57 {dimension_numbers = #tpu.dot_dimension_numbers<[1], [0], [0], [1], [0, 0, 1, 1], [], []>} : vector<32x16xf32>, vector<16x32xf32>, vector<32x32xf32> -> vector<32x32xf32>
    %c0_58 = arith.constant 0 : index
    %c0_59 = arith.constant 0 : index
    %c0_60 = arith.constant 0 : index
    %92 = vector.load %arg18[%c0_58, %c0_59, %c0_60] : memref<2x16x16xf32, #tpu.memory_space<vmem>>, vector<1x16x16xf32>
    %93 = vector.shape_cast %92 : vector<1x16x16xf32> to vector<16x16xf32>
    %cst_61 = arith.constant dense<0.000000e+00> : vector<32x16xf32>
    %94 = tpu.matmul %65, %93, %cst_61 {dimension_numbers = #tpu.dot_dimension_numbers<[1], [0], [0], [1], [0, 0, 1, 1], [], []>} : vector<32x16xf32>, vector<16x16xf32>, vector<32x16xf32> -> vector<32x16xf32>
    %c0_62 = arith.constant 0 : index
    %c0_63 = arith.constant 0 : index
    %c0_64 = arith.constant 0 : index
    %95 = vector.load %arg19[%c0_62, %c0_63, %c0_64] : memref<2x32x16xf32, #tpu.memory_space<vmem>>, vector<1x32x16xf32>
    %96 = vector.shape_cast %95 : vector<1x32x16xf32> to vector<32x16xf32>
    %cst_65 = arith.constant dense<0.000000e+00> : vector<32x16xf32>
    %97 = tpu.matmul %90, %96, %cst_65 {dimension_numbers = #tpu.dot_dimension_numbers<[1], [0], [0], [1], [0, 0, 1, 1], [], []>} : vector<32x32xf32>, vector<32x16xf32>, vector<32x16xf32> -> vector<32x16xf32>
    %98 = arith.addf %94, %97 : vector<32x16xf32>
    %c0_66 = arith.constant 0 : index
    %c0_67 = arith.constant 0 : index
    %c0_68 = arith.constant 0 : index
    %99 = vector.load %arg20[%c0_66, %c0_67, %c0_68] : memref<2x32x16xf32, #tpu.memory_space<vmem>>, vector<1x32x16xf32>
    %100 = vector.shape_cast %99 : vector<1x32x16xf32> to vector<32x16xf32>
    %cst_69 = arith.constant dense<0.000000e+00> : vector<32x16xf32>
    %101 = tpu.matmul %91, %100, %cst_69 {dimension_numbers = #tpu.dot_dimension_numbers<[1], [0], [0], [1], [0, 0, 1, 1], [], []>} : vector<32x32xf32>, vector<32x16xf32>, vector<32x16xf32> -> vector<32x16xf32>
    %102 = arith.addf %98, %101 : vector<32x16xf32>
    %c0_70 = arith.constant 0 : index
    %c0_71 = arith.constant 0 : index
    %c0_72 = arith.constant 0 : index
    %103 = vector.load %arg21[%c0_70, %c0_71, %c0_72] : memref<2x1x16xf32, #tpu.memory_space<vmem>>, vector<1x1x16xf32>
    %104 = vector.shape_cast %103 : vector<1x1x16xf32> to vector<1x16xf32>
    %105 = vector.broadcast %104 : vector<1x16xf32> to vector<32x16xf32>
    %106 = arith.addf %102, %105 : vector<32x16xf32>
    %107 = arith.negf %106 : vector<32x16xf32>
    %108 = math.exp %107 : vector<32x16xf32>
    %cst_73 = arith.constant 1.000000e+00 : f32
    %109 = vector.broadcast %cst_73 : f32 to vector<32x16xf32>
    %110 = arith.addf %109, %108 : vector<32x16xf32>
    %111 = arith.divf %109, %110 : vector<32x16xf32>
    %112 = arith.mulf %106, %111 : vector<32x16xf32>
    %c0_74 = arith.constant 0 : index
    %c0_75 = arith.constant 0 : index
    %c0_76 = arith.constant 0 : index
    %113 = vector.load %arg22[%c0_74, %c0_75, %c0_76] : memref<2x32x16xf32, #tpu.memory_space<vmem>>, vector<1x32x16xf32>
    %114 = vector.shape_cast %113 : vector<1x32x16xf32> to vector<32x16xf32>
    %cst_77 = arith.constant dense<0.000000e+00> : vector<16x16xf32>
    %115 = tpu.matmul %29, %114, %cst_77 {dimension_numbers = #tpu.dot_dimension_numbers<[1], [0], [0], [1], [0, 0, 1, 1], [], []>} : vector<16x32xf32>, vector<32x16xf32>, vector<16x16xf32> -> vector<16x16xf32>
    %c0_78 = arith.constant 0 : index
    %c0_79 = arith.constant 0 : index
    %c0_80 = arith.constant 0 : index
    %116 = vector.load %arg23[%c0_78, %c0_79, %c0_80] : memref<2x1x16xf32, #tpu.memory_space<vmem>>, vector<1x1x16xf32>
    %117 = vector.shape_cast %116 : vector<1x1x16xf32> to vector<1x16xf32>
    %118 = vector.broadcast %117 : vector<1x16xf32> to vector<16x16xf32>
    %119 = arith.addf %115, %118 : vector<16x16xf32>
    %120 = arith.negf %119 : vector<16x16xf32>
    %121 = math.exp %120 : vector<16x16xf32>
    %cst_81 = arith.constant 1.000000e+00 : f32
    %122 = vector.broadcast %cst_81 : f32 to vector<16x16xf32>
    %123 = arith.addf %122, %121 : vector<16x16xf32>
    %124 = arith.divf %122, %123 : vector<16x16xf32>
    %125 = arith.mulf %119, %124 : vector<16x16xf32>
    %cst_82 = arith.constant dense<0.000000e+00> : vector<32x16xf32>
    %126 = tpu.matmul %1, %125, %cst_82 {dimension_numbers = #tpu.dot_dimension_numbers<[1], [0], [0], [1], [0, 0, 1, 1], [], []>} : vector<32x16xf32>, vector<16x16xf32>, vector<32x16xf32> -> vector<32x16xf32>
    %127 = arith.mulf %126, %112 : vector<32x16xf32>
    %cst_83 = arith.constant dense<0.000000e+00> : vector<16x16xf32>
    %128 = tpu.matmul %3, %127, %cst_83 {dimension_numbers = #tpu.dot_dimension_numbers<[0], [0], [1], [1], [0, 1, 1, 1], [], []>} : vector<32x16xf32>, vector<32x16xf32>, vector<16x16xf32> -> vector<16x16xf32>
    %cst_84 = arith.constant dense<0.000000e+00> : vector<2x16xf32>
    %129 = tpu.matmul %5, %128, %cst_84 {dimension_numbers = #tpu.dot_dimension_numbers<[0], [0], [1], [1], [0, 1, 1, 1], [], []>} : vector<16x2xf32>, vector<16x16xf32>, vector<2x16xf32> -> vector<2x16xf32>
    %130 = vector.broadcast %6 : vector<2x1xf32> to vector<2x16xf32>
    %131 = arith.mulf %129, %130 : vector<2x16xf32>
    %cst_85 = arith.constant dense<0.000000e+00> : vector<16x16xf32>
    %132 = tpu.matmul %5, %131, %cst_85 {dimension_numbers = #tpu.dot_dimension_numbers<[1], [0], [0], [1], [0, 0, 1, 1], [], []>} : vector<16x2xf32>, vector<2x16xf32>, vector<16x16xf32> -> vector<16x16xf32>
    %c0_86 = arith.constant 0 : index
    %c0_87 = arith.constant 0 : index
    %c0_88 = arith.constant 0 : index
    %133 = vector.load %arg28[%c0_86, %c0_87, %c0_88] : memref<2x1x16xf32, #tpu.memory_space<vmem>>, vector<1x1x16xf32>
    %134 = vector.shape_cast %133 : vector<1x1x16xf32> to vector<1x16xf32>
    %135 = vector.broadcast %134 : vector<1x16xf32> to vector<16x16xf32>
    %136 = arith.mulf %132, %135 : vector<16x16xf32>
    %137 = arith.subf %128, %136 : vector<16x16xf32>
    %138 = arith.mulf %137, %137 : vector<16x16xf32>
    %cst_89 = arith.constant dense<0.000000e+00> : vector<2x16xf32>
    %139 = tpu.matmul %5, %138, %cst_89 {dimension_numbers = #tpu.dot_dimension_numbers<[0], [0], [1], [1], [0, 1, 1, 1], [], []>} : vector<16x2xf32>, vector<16x16xf32>, vector<2x16xf32> -> vector<2x16xf32>
    %140 = vector.broadcast %6 : vector<2x1xf32> to vector<2x16xf32>
    %141 = arith.mulf %139, %140 : vector<2x16xf32>
    %cst_90 = arith.constant dense<0.000000e+00> : vector<16x16xf32>
    %142 = tpu.matmul %5, %141, %cst_90 {dimension_numbers = #tpu.dot_dimension_numbers<[1], [0], [0], [1], [0, 0, 1, 1], [], []>} : vector<16x2xf32>, vector<2x16xf32>, vector<16x16xf32> -> vector<16x16xf32>
    %c0_91 = arith.constant 0 : index
    %c0_92 = arith.constant 0 : index
    %c0_93 = arith.constant 0 : index
    %143 = vector.load %arg26[%c0_91, %c0_92, %c0_93] : memref<2x1x16xf32, #tpu.memory_space<vmem>>, vector<1x1x16xf32>
    %144 = vector.shape_cast %143 : vector<1x1x16xf32> to vector<1x16xf32>
    %145 = vector.broadcast %144 : vector<1x16xf32> to vector<16x16xf32>
    %146 = arith.mulf %145, %137 : vector<16x16xf32>
    %cst_94 = arith.constant 9.99999974E-6 : f32
    %147 = vector.broadcast %cst_94 : f32 to vector<16x16xf32>
    %148 = arith.addf %142, %147 : vector<16x16xf32>
    %149 = math.rsqrt %148 : vector<16x16xf32>
    %150 = arith.mulf %146, %149 : vector<16x16xf32>
    %c0_95 = arith.constant 0 : index
    %c0_96 = arith.constant 0 : index
    %c0_97 = arith.constant 0 : index
    %151 = vector.load %arg27[%c0_95, %c0_96, %c0_97] : memref<2x1x16xf32, #tpu.memory_space<vmem>>, vector<1x1x16xf32>
    %152 = vector.shape_cast %151 : vector<1x1x16xf32> to vector<1x16xf32>
    %153 = vector.broadcast %152 : vector<1x16xf32> to vector<16x16xf32>
    %154 = arith.addf %150, %153 : vector<16x16xf32>
    %155 = arith.negf %154 : vector<16x16xf32>
    %156 = math.exp %155 : vector<16x16xf32>
    %cst_98 = arith.constant 1.000000e+00 : f32
    %157 = vector.broadcast %cst_98 : f32 to vector<16x16xf32>
    %158 = arith.addf %157, %156 : vector<16x16xf32>
    %159 = arith.divf %157, %158 : vector<16x16xf32>
    %160 = arith.mulf %154, %159 : vector<16x16xf32>
    %c0_99 = arith.constant 0 : index
    %c0_100 = arith.constant 0 : index
    %c0_101 = arith.constant 0 : index
    %161 = vector.load %arg24[%c0_99, %c0_100, %c0_101] : memref<2x16x32xf32, #tpu.memory_space<vmem>>, vector<1x16x32xf32>
    %162 = vector.shape_cast %161 : vector<1x16x32xf32> to vector<16x32xf32>
    %cst_102 = arith.constant dense<0.000000e+00> : vector<16x32xf32>
    %163 = tpu.matmul %160, %162, %cst_102 {dimension_numbers = #tpu.dot_dimension_numbers<[1], [0], [0], [1], [0, 0, 1, 1], [], []>} : vector<16x16xf32>, vector<16x32xf32>, vector<16x32xf32> -> vector<16x32xf32>
    %c0_103 = arith.constant 0 : index
    %c0_104 = arith.constant 0 : index
    %c0_105 = arith.constant 0 : index
    %164 = vector.load %arg25[%c0_103, %c0_104, %c0_105] : memref<2x1x32xf32, #tpu.memory_space<vmem>>, vector<1x1x32xf32>
    %165 = vector.shape_cast %164 : vector<1x1x32xf32> to vector<1x32xf32>
    %166 = vector.broadcast %165 : vector<1x32xf32> to vector<16x32xf32>
    %167 = arith.addf %163, %166 : vector<16x32xf32>
    %168 = arith.negf %167 : vector<16x32xf32>
    %169 = math.exp %168 : vector<16x32xf32>
    %cst_106 = arith.constant 1.000000e+00 : f32
    %170 = vector.broadcast %cst_106 : f32 to vector<16x32xf32>
    %171 = arith.addf %170, %169 : vector<16x32xf32>
    %172 = arith.divf %170, %171 : vector<16x32xf32>
    %173 = arith.mulf %167, %172 : vector<16x32xf32>
    %174 = arith.addf %29, %173 : vector<16x32xf32>
    %c0_107 = arith.constant 0 : index
    %c0_108 = arith.constant 0 : index
    %175 = vector.load %arg29[%c0_107, %c0_108] : memref<32x16xf32, #tpu.memory_space<vmem>>, vector<32x16xf32>
    %cst_109 = arith.constant dense<0.000000e+00> : vector<16x16xf32>
    %176 = tpu.matmul %174, %175, %cst_109 {dimension_numbers = #tpu.dot_dimension_numbers<[1], [0], [0], [1], [0, 0, 1, 1], [], []>} : vector<16x32xf32>, vector<32x16xf32>, vector<16x16xf32> -> vector<16x16xf32>
    %c0_110 = arith.constant 0 : index
    %c0_111 = arith.constant 0 : index
    %177 = vector.load %arg30[%c0_110, %c0_111] : memref<1x16xf32, #tpu.memory_space<vmem>>, vector<1x16xf32>
    %178 = vector.broadcast %177 : vector<1x16xf32> to vector<16x16xf32>
    %179 = arith.addf %176, %178 : vector<16x16xf32>
    %180 = arith.negf %179 : vector<16x16xf32>
    %181 = math.exp %180 : vector<16x16xf32>
    %cst_112 = arith.constant 1.000000e+00 : f32
    %182 = vector.broadcast %cst_112 : f32 to vector<16x16xf32>
    %183 = arith.addf %182, %181 : vector<16x16xf32>
    %184 = arith.divf %182, %183 : vector<16x16xf32>
    %185 = arith.mulf %179, %184 : vector<16x16xf32>
    %c0_113 = arith.constant 0 : index
    %c0_114 = arith.constant 0 : index
    %186 = vector.load %arg31[%c0_113, %c0_114] : memref<1x16xf32, #tpu.memory_space<vmem>>, vector<1x16xf32>
    %187 = vector.broadcast %186 : vector<1x16xf32> to vector<16x16xf32>
    %188 = arith.mulf %185, %187 : vector<16x16xf32>
    %cst_115 = arith.constant dense<0.000000e+00> : vector<16xf32>
    %189 = vector.multi_reduction <add>, %188, %cst_115 [1] : vector<16x16xf32> to vector<16xf32>
    %190 = vector.shape_cast %189 : vector<16xf32> to vector<16x1xf32>
    %c0_116 = arith.constant 0 : index
    %c0_117 = arith.constant 0 : index
    %191 = vector.load %arg32[%c0_116, %c0_117] : memref<1x1xf32, #tpu.memory_space<vmem>>, vector<1x1xf32>
    %192 = vector.broadcast %191 : vector<1x1xf32> to vector<16x1xf32>
    %193 = arith.addf %190, %192 : vector<16x1xf32>
    %c1 = arith.constant 1 : index
    %194 = memref.load %arg33[%c1] : memref<3xf32, #tpu.memory_space<smem>>
    %195 = vector.broadcast %194 : f32 to vector<16x1xf32>
    %196 = arith.mulf %193, %195 : vector<16x1xf32>
    %197 = arith.addf %89, %196 : vector<16x1xf32>
    %cst_118 = arith.constant dense<0.000000e+00> : vector<32x32xf32>
    %198 = tpu.matmul %1, %174, %cst_118 {dimension_numbers = #tpu.dot_dimension_numbers<[1], [0], [0], [1], [0, 0, 1, 1], [], []>} : vector<32x16xf32>, vector<16x32xf32>, vector<32x32xf32> -> vector<32x32xf32>
    %cst_119 = arith.constant dense<0.000000e+00> : vector<32x32xf32>
    %199 = tpu.matmul %3, %174, %cst_119 {dimension_numbers = #tpu.dot_dimension_numbers<[1], [0], [0], [1], [0, 0, 1, 1], [], []>} : vector<32x16xf32>, vector<16x32xf32>, vector<32x32xf32> -> vector<32x32xf32>
    %c1_120 = arith.constant 1 : index
    %c0_121 = arith.constant 0 : index
    %c0_122 = arith.constant 0 : index
    %200 = vector.load %arg18[%c1_120, %c0_121, %c0_122] : memref<2x16x16xf32, #tpu.memory_space<vmem>>, vector<1x16x16xf32>
    %201 = vector.shape_cast %200 : vector<1x16x16xf32> to vector<16x16xf32>
    %cst_123 = arith.constant dense<0.000000e+00> : vector<32x16xf32>
    %202 = tpu.matmul %65, %201, %cst_123 {dimension_numbers = #tpu.dot_dimension_numbers<[1], [0], [0], [1], [0, 0, 1, 1], [], []>} : vector<32x16xf32>, vector<16x16xf32>, vector<32x16xf32> -> vector<32x16xf32>
    %c1_124 = arith.constant 1 : index
    %c0_125 = arith.constant 0 : index
    %c0_126 = arith.constant 0 : index
    %203 = vector.load %arg19[%c1_124, %c0_125, %c0_126] : memref<2x32x16xf32, #tpu.memory_space<vmem>>, vector<1x32x16xf32>
    %204 = vector.shape_cast %203 : vector<1x32x16xf32> to vector<32x16xf32>
    %cst_127 = arith.constant dense<0.000000e+00> : vector<32x16xf32>
    %205 = tpu.matmul %198, %204, %cst_127 {dimension_numbers = #tpu.dot_dimension_numbers<[1], [0], [0], [1], [0, 0, 1, 1], [], []>} : vector<32x32xf32>, vector<32x16xf32>, vector<32x16xf32> -> vector<32x16xf32>
    %206 = arith.addf %202, %205 : vector<32x16xf32>
    %c1_128 = arith.constant 1 : index
    %c0_129 = arith.constant 0 : index
    %c0_130 = arith.constant 0 : index
    %207 = vector.load %arg20[%c1_128, %c0_129, %c0_130] : memref<2x32x16xf32, #tpu.memory_space<vmem>>, vector<1x32x16xf32>
    %208 = vector.shape_cast %207 : vector<1x32x16xf32> to vector<32x16xf32>
    %cst_131 = arith.constant dense<0.000000e+00> : vector<32x16xf32>
    %209 = tpu.matmul %199, %208, %cst_131 {dimension_numbers = #tpu.dot_dimension_numbers<[1], [0], [0], [1], [0, 0, 1, 1], [], []>} : vector<32x32xf32>, vector<32x16xf32>, vector<32x16xf32> -> vector<32x16xf32>
    %210 = arith.addf %206, %209 : vector<32x16xf32>
    %c1_132 = arith.constant 1 : index
    %c0_133 = arith.constant 0 : index
    %c0_134 = arith.constant 0 : index
    %211 = vector.load %arg21[%c1_132, %c0_133, %c0_134] : memref<2x1x16xf32, #tpu.memory_space<vmem>>, vector<1x1x16xf32>
    %212 = vector.shape_cast %211 : vector<1x1x16xf32> to vector<1x16xf32>
    %213 = vector.broadcast %212 : vector<1x16xf32> to vector<32x16xf32>
    %214 = arith.addf %210, %213 : vector<32x16xf32>
    %215 = arith.negf %214 : vector<32x16xf32>
    %216 = math.exp %215 : vector<32x16xf32>
    %cst_135 = arith.constant 1.000000e+00 : f32
    %217 = vector.broadcast %cst_135 : f32 to vector<32x16xf32>
    %218 = arith.addf %217, %216 : vector<32x16xf32>
    %219 = arith.divf %217, %218 : vector<32x16xf32>
    %220 = arith.mulf %214, %219 : vector<32x16xf32>
    %c1_136 = arith.constant 1 : index
    %c0_137 = arith.constant 0 : index
    %c0_138 = arith.constant 0 : index
    %221 = vector.load %arg22[%c1_136, %c0_137, %c0_138] : memref<2x32x16xf32, #tpu.memory_space<vmem>>, vector<1x32x16xf32>
    %222 = vector.shape_cast %221 : vector<1x32x16xf32> to vector<32x16xf32>
    %cst_139 = arith.constant dense<0.000000e+00> : vector<16x16xf32>
    %223 = tpu.matmul %174, %222, %cst_139 {dimension_numbers = #tpu.dot_dimension_numbers<[1], [0], [0], [1], [0, 0, 1, 1], [], []>} : vector<16x32xf32>, vector<32x16xf32>, vector<16x16xf32> -> vector<16x16xf32>
    %c1_140 = arith.constant 1 : index
    %c0_141 = arith.constant 0 : index
    %c0_142 = arith.constant 0 : index
    %224 = vector.load %arg23[%c1_140, %c0_141, %c0_142] : memref<2x1x16xf32, #tpu.memory_space<vmem>>, vector<1x1x16xf32>
    %225 = vector.shape_cast %224 : vector<1x1x16xf32> to vector<1x16xf32>
    %226 = vector.broadcast %225 : vector<1x16xf32> to vector<16x16xf32>
    %227 = arith.addf %223, %226 : vector<16x16xf32>
    %228 = arith.negf %227 : vector<16x16xf32>
    %229 = math.exp %228 : vector<16x16xf32>
    %cst_143 = arith.constant 1.000000e+00 : f32
    %230 = vector.broadcast %cst_143 : f32 to vector<16x16xf32>
    %231 = arith.addf %230, %229 : vector<16x16xf32>
    %232 = arith.divf %230, %231 : vector<16x16xf32>
    %233 = arith.mulf %227, %232 : vector<16x16xf32>
    %cst_144 = arith.constant dense<0.000000e+00> : vector<32x16xf32>
    %234 = tpu.matmul %1, %233, %cst_144 {dimension_numbers = #tpu.dot_dimension_numbers<[1], [0], [0], [1], [0, 0, 1, 1], [], []>} : vector<32x16xf32>, vector<16x16xf32>, vector<32x16xf32> -> vector<32x16xf32>
    %235 = arith.mulf %234, %220 : vector<32x16xf32>
    %cst_145 = arith.constant dense<0.000000e+00> : vector<16x16xf32>
    %236 = tpu.matmul %3, %235, %cst_145 {dimension_numbers = #tpu.dot_dimension_numbers<[0], [0], [1], [1], [0, 1, 1, 1], [], []>} : vector<32x16xf32>, vector<32x16xf32>, vector<16x16xf32> -> vector<16x16xf32>
    %cst_146 = arith.constant dense<0.000000e+00> : vector<2x16xf32>
    %237 = tpu.matmul %5, %236, %cst_146 {dimension_numbers = #tpu.dot_dimension_numbers<[0], [0], [1], [1], [0, 1, 1, 1], [], []>} : vector<16x2xf32>, vector<16x16xf32>, vector<2x16xf32> -> vector<2x16xf32>
    %238 = vector.broadcast %6 : vector<2x1xf32> to vector<2x16xf32>
    %239 = arith.mulf %237, %238 : vector<2x16xf32>
    %cst_147 = arith.constant dense<0.000000e+00> : vector<16x16xf32>
    %240 = tpu.matmul %5, %239, %cst_147 {dimension_numbers = #tpu.dot_dimension_numbers<[1], [0], [0], [1], [0, 0, 1, 1], [], []>} : vector<16x2xf32>, vector<2x16xf32>, vector<16x16xf32> -> vector<16x16xf32>
    %c1_148 = arith.constant 1 : index
    %c0_149 = arith.constant 0 : index
    %c0_150 = arith.constant 0 : index
    %241 = vector.load %arg28[%c1_148, %c0_149, %c0_150] : memref<2x1x16xf32, #tpu.memory_space<vmem>>, vector<1x1x16xf32>
    %242 = vector.shape_cast %241 : vector<1x1x16xf32> to vector<1x16xf32>
    %243 = vector.broadcast %242 : vector<1x16xf32> to vector<16x16xf32>
    %244 = arith.mulf %240, %243 : vector<16x16xf32>
    %245 = arith.subf %236, %244 : vector<16x16xf32>
    %246 = arith.mulf %245, %245 : vector<16x16xf32>
    %cst_151 = arith.constant dense<0.000000e+00> : vector<2x16xf32>
    %247 = tpu.matmul %5, %246, %cst_151 {dimension_numbers = #tpu.dot_dimension_numbers<[0], [0], [1], [1], [0, 1, 1, 1], [], []>} : vector<16x2xf32>, vector<16x16xf32>, vector<2x16xf32> -> vector<2x16xf32>
    %248 = vector.broadcast %6 : vector<2x1xf32> to vector<2x16xf32>
    %249 = arith.mulf %247, %248 : vector<2x16xf32>
    %cst_152 = arith.constant dense<0.000000e+00> : vector<16x16xf32>
    %250 = tpu.matmul %5, %249, %cst_152 {dimension_numbers = #tpu.dot_dimension_numbers<[1], [0], [0], [1], [0, 0, 1, 1], [], []>} : vector<16x2xf32>, vector<2x16xf32>, vector<16x16xf32> -> vector<16x16xf32>
    %c1_153 = arith.constant 1 : index
    %c0_154 = arith.constant 0 : index
    %c0_155 = arith.constant 0 : index
    %251 = vector.load %arg26[%c1_153, %c0_154, %c0_155] : memref<2x1x16xf32, #tpu.memory_space<vmem>>, vector<1x1x16xf32>
    %252 = vector.shape_cast %251 : vector<1x1x16xf32> to vector<1x16xf32>
    %253 = vector.broadcast %252 : vector<1x16xf32> to vector<16x16xf32>
    %254 = arith.mulf %253, %245 : vector<16x16xf32>
    %cst_156 = arith.constant 9.99999974E-6 : f32
    %255 = vector.broadcast %cst_156 : f32 to vector<16x16xf32>
    %256 = arith.addf %250, %255 : vector<16x16xf32>
    %257 = math.rsqrt %256 : vector<16x16xf32>
    %258 = arith.mulf %254, %257 : vector<16x16xf32>
    %c1_157 = arith.constant 1 : index
    %c0_158 = arith.constant 0 : index
    %c0_159 = arith.constant 0 : index
    %259 = vector.load %arg27[%c1_157, %c0_158, %c0_159] : memref<2x1x16xf32, #tpu.memory_space<vmem>>, vector<1x1x16xf32>
    %260 = vector.shape_cast %259 : vector<1x1x16xf32> to vector<1x16xf32>
    %261 = vector.broadcast %260 : vector<1x16xf32> to vector<16x16xf32>
    %262 = arith.addf %258, %261 : vector<16x16xf32>
    %263 = arith.negf %262 : vector<16x16xf32>
    %264 = math.exp %263 : vector<16x16xf32>
    %cst_160 = arith.constant 1.000000e+00 : f32
    %265 = vector.broadcast %cst_160 : f32 to vector<16x16xf32>
    %266 = arith.addf %265, %264 : vector<16x16xf32>
    %267 = arith.divf %265, %266 : vector<16x16xf32>
    %268 = arith.mulf %262, %267 : vector<16x16xf32>
    %c1_161 = arith.constant 1 : index
    %c0_162 = arith.constant 0 : index
    %c0_163 = arith.constant 0 : index
    %269 = vector.load %arg24[%c1_161, %c0_162, %c0_163] : memref<2x16x32xf32, #tpu.memory_space<vmem>>, vector<1x16x32xf32>
    %270 = vector.shape_cast %269 : vector<1x16x32xf32> to vector<16x32xf32>
    %cst_164 = arith.constant dense<0.000000e+00> : vector<16x32xf32>
    %271 = tpu.matmul %268, %270, %cst_164 {dimension_numbers = #tpu.dot_dimension_numbers<[1], [0], [0], [1], [0, 0, 1, 1], [], []>} : vector<16x16xf32>, vector<16x32xf32>, vector<16x32xf32> -> vector<16x32xf32>
    %c1_165 = arith.constant 1 : index
    %c0_166 = arith.constant 0 : index
    %c0_167 = arith.constant 0 : index
    %272 = vector.load %arg25[%c1_165, %c0_166, %c0_167] : memref<2x1x32xf32, #tpu.memory_space<vmem>>, vector<1x1x32xf32>
    %273 = vector.shape_cast %272 : vector<1x1x32xf32> to vector<1x32xf32>
    %274 = vector.broadcast %273 : vector<1x32xf32> to vector<16x32xf32>
    %275 = arith.addf %271, %274 : vector<16x32xf32>
    %276 = arith.negf %275 : vector<16x32xf32>
    %277 = math.exp %276 : vector<16x32xf32>
    %cst_168 = arith.constant 1.000000e+00 : f32
    %278 = vector.broadcast %cst_168 : f32 to vector<16x32xf32>
    %279 = arith.addf %278, %277 : vector<16x32xf32>
    %280 = arith.divf %278, %279 : vector<16x32xf32>
    %281 = arith.mulf %275, %280 : vector<16x32xf32>
    %282 = arith.addf %174, %281 : vector<16x32xf32>
    %c0_169 = arith.constant 0 : index
    %c0_170 = arith.constant 0 : index
    %283 = vector.load %arg29[%c0_169, %c0_170] : memref<32x16xf32, #tpu.memory_space<vmem>>, vector<32x16xf32>
    %cst_171 = arith.constant dense<0.000000e+00> : vector<16x16xf32>
    %284 = tpu.matmul %282, %283, %cst_171 {dimension_numbers = #tpu.dot_dimension_numbers<[1], [0], [0], [1], [0, 0, 1, 1], [], []>} : vector<16x32xf32>, vector<32x16xf32>, vector<16x16xf32> -> vector<16x16xf32>
    %c0_172 = arith.constant 0 : index
    %c0_173 = arith.constant 0 : index
    %285 = vector.load %arg30[%c0_172, %c0_173] : memref<1x16xf32, #tpu.memory_space<vmem>>, vector<1x16xf32>
    %286 = vector.broadcast %285 : vector<1x16xf32> to vector<16x16xf32>
    %287 = arith.addf %284, %286 : vector<16x16xf32>
    %288 = arith.negf %287 : vector<16x16xf32>
    %289 = math.exp %288 : vector<16x16xf32>
    %cst_174 = arith.constant 1.000000e+00 : f32
    %290 = vector.broadcast %cst_174 : f32 to vector<16x16xf32>
    %291 = arith.addf %290, %289 : vector<16x16xf32>
    %292 = arith.divf %290, %291 : vector<16x16xf32>
    %293 = arith.mulf %287, %292 : vector<16x16xf32>
    %c0_175 = arith.constant 0 : index
    %c0_176 = arith.constant 0 : index
    %294 = vector.load %arg31[%c0_175, %c0_176] : memref<1x16xf32, #tpu.memory_space<vmem>>, vector<1x16xf32>
    %295 = vector.broadcast %294 : vector<1x16xf32> to vector<16x16xf32>
    %296 = arith.mulf %293, %295 : vector<16x16xf32>
    %cst_177 = arith.constant dense<0.000000e+00> : vector<16xf32>
    %297 = vector.multi_reduction <add>, %296, %cst_177 [1] : vector<16x16xf32> to vector<16xf32>
    %298 = vector.shape_cast %297 : vector<16xf32> to vector<16x1xf32>
    %c0_178 = arith.constant 0 : index
    %c0_179 = arith.constant 0 : index
    %299 = vector.load %arg32[%c0_178, %c0_179] : memref<1x1xf32, #tpu.memory_space<vmem>>, vector<1x1xf32>
    %300 = vector.broadcast %299 : vector<1x1xf32> to vector<16x1xf32>
    %301 = arith.addf %298, %300 : vector<16x1xf32>
    %c2 = arith.constant 2 : index
    %302 = memref.load %arg33[%c2] : memref<3xf32, #tpu.memory_space<smem>>
    %303 = vector.broadcast %302 : f32 to vector<16x1xf32>
    %304 = arith.mulf %301, %303 : vector<16x1xf32>
    %305 = arith.addf %197, %304 : vector<16x1xf32>
    %c0_180 = arith.constant 0 : index
    %306 = memref.load %arg34[%c0_180] : memref<1xf32, #tpu.memory_space<smem>>
    %307 = vector.broadcast %306 : f32 to vector<16x1xf32>
    %308 = arith.addf %305, %307 : vector<16x1xf32>
    %cst_181 = arith.constant dense<0.000000e+00> : vector<2x1xf32>
    %309 = tpu.matmul %5, %308, %cst_181 {dimension_numbers = #tpu.dot_dimension_numbers<[0], [0], [1], [1], [0, 1, 1, 1], [], []>} : vector<16x2xf32>, vector<16x1xf32>, vector<2x1xf32> -> vector<2x1xf32>
    %310 = arith.mulf %309, %6 : vector<2x1xf32>
    %c0_182 = arith.constant 0 : index
    %c0_183 = arith.constant 0 : index
    %311 = vector.load %arg35[%c0_182, %c0_183] : memref<2x1xf32, #tpu.memory_space<vmem>>, vector<2x1xf32>
    tpu.vector_store %arg35[%c0_182, %c0_183], %310 {strides = array<i32>} : memref<2x1xf32, #tpu.memory_space<vmem>>, vector<2x1xf32>,
    return
  }
}

</mosaic_0001>

<llo_original>
// kernel: arch_fae_forward.1
$region0: #{arch_fae_forward.1}
  #allocation0 [shape = 'u32[]', space=smem, size = 0x4, offset = 0x4, fixed_abs, tag = 'smem constant byte address 0x4 - core index']
  #allocation1 [shape = 'u32[144,128]{1,0:T(1,128)}', space=vmem, size = 0x12000, scoped, tag = 'internal scratch']
  #allocation2 [shape = 'f32[1,1]{1,0:T(1,128)S(1)}', space=vmem, size = 0x200, scoped, tag = 'scoped memory for arch_fae_forward.1']
  #allocation3 [shape = 'f32[1,1]{1,0:T(1,128)S(1)}', space=vmem, size = 0x200, scoped, tag = 'scoped memory for arch_fae_forward.1']
  #allocation4 [shape = 'f32[1]{0:T(128)S(6)}', space=smem, size = 0x200, scoped, tag = 'scoped memory for arch_fae_forward.1']
  %s0 = inlined_call_operand.smem [shape: u32[36], index: -1, kind: input, shape index: {}]
  %s1 = sld [smem:[%s0]]
  %s2 = scalar_lea.smem %s0, 1
  %s3 = sld [smem:[%s2]]
  %s4 = scalar_lea.smem %s0, 2
  %s5 = sld [smem:[%s4]]
  %s6 = scalar_lea.smem %s0, 3
  %s7 = sld [smem:[%s6]]
  %s8 = scalar_lea.smem %s0, 4
  %s9 = sld [smem:[%s8]]
  %s10 = scalar_lea.smem %s0, 5
  %s11 = sld [smem:[%s10]]
  %s12 = scalar_lea.smem %s0, 6
  %s13 = sld [smem:[%s12]]
  %s14 = scalar_lea.smem %s0, 7
  %s15 = sld [smem:[%s14]]
  %s16 = scalar_lea.smem %s0, 8
  %s17 = sld [smem:[%s16]]
  %s18 = scalar_lea.smem %s0, 9
  %s19 = sld [smem:[%s18]]
  %s20 = scalar_lea.smem %s0, 10
  %s21 = sld [smem:[%s20]]
  %s22 = scalar_lea.smem %s0, 11
  %s23 = sld [smem:[%s22]]
  %s24 = scalar_lea.smem %s0, 12
  %s25 = sld [smem:[%s24]]
  %s26 = scalar_lea.smem %s0, 13
  %s27 = sld [smem:[%s26]]
  %s28 = scalar_lea.smem %s0, 14
  %s29 = sld [smem:[%s28]]
  %s30 = scalar_lea.smem %s0, 15
  %s31 = sld [smem:[%s30]]
  %s32 = scalar_lea.smem %s0, 16
  %s33 = sld [smem:[%s32]]
  %s34 = scalar_lea.smem %s0, 17
  %s35 = sld [smem:[%s34]]
  %s36 = scalar_lea.smem %s0, 18
  %s37 = sld [smem:[%s36]]
  %s38 = scalar_lea.smem %s0, 19
  %s39 = sld [smem:[%s38]]
  %s40 = scalar_lea.smem %s0, 20
  %s41 = sld [smem:[%s40]]
  %s42 = scalar_lea.smem %s0, 21
  %s43 = sld [smem:[%s42]]
  %s44 = scalar_lea.smem %s0, 22
  %s45 = sld [smem:[%s44]]
  %s46 = scalar_lea.smem %s0, 23
  %s47 = sld [smem:[%s46]]
  %s48 = scalar_lea.smem %s0, 24
  %s49 = sld [smem:[%s48]]
  %s50 = scalar_lea.smem %s0, 25
  %s51 = sld [smem:[%s50]]
  %s52 = scalar_lea.smem %s0, 26
  %s53 = sld [smem:[%s52]]
  %s54 = scalar_lea.smem %s0, 27
  %s55 = sld [smem:[%s54]]
  %s56 = scalar_lea.smem %s0, 28
  %s57 = sld [smem:[%s56]]
  %s58 = scalar_lea.smem %s0, 29
  %s59 = sld [smem:[%s58]]
  %s60 = scalar_lea.smem %s0, 30
  %s61 = sld [smem:[%s60]]
  %s62 = scalar_lea.smem %s0, 31
  %s63 = sld [smem:[%s62]]
  %s64 = scalar_lea.smem %s0, 32
  %s65 = sld [smem:[%s64]]
  %s66 = scalar_lea.smem %s0, 33
  %s67 = sld [smem:[%s66]]
  %s68 = scalar_lea.smem %s0, 34
  %s69 = sld [smem:[%s68]]
  %s70 = scalar_lea.smem %s0, 35
  %s71 = sld [smem:[%s70]]
  %s72 = sld [smem:[#allocation0]]
  $region154: #{arch_fae_forward.1} parent=0
    _
  %s74 = ssub.s32 1, %s72
  %s75 = scalar_select 0, %s74, %s72
  %v76 = vstv %s17
  %77 = vst [vmem:[#allocation2] sm:$0x1] %v76
  %v78 = vstv %s65
  %79 = vst [vmem:[#allocation3] sm:$0x1] %v78
  %80 = sst [smem:[#allocation4]] %s69
  $region1: #{arch_fae_forward.1} parent=0
    #allocation5 [shape = 'u8[512]{0}', space=smem, size = 0x200, scoped, tag = 'input window, operand 33, single buffered']
    #allocation6 [shape = 's32[1]{0}', space=sflag, size = 0x4, scoped, tag = 'scoped memory for arch_fae_forward.1']
    %81 = vsyncpa [#allocation6], 0
    // Predicated region
    $region2: #{arch_fae_forward.1} parent=1 // pred_check
      _
    $region3: #{arch_fae_forward.1} parent=1 // pred_check_branch
      %83 = sbr.rel (0) target = $region5
    $region4: #{arch_fae_forward.1} parent=1 // pred_region
      _
    $region5: #{arch_fae_forward.1} parent=1 // pred_fallthru
      _
    // Predicated region
    $region6: #{arch_fae_forward.1} parent=1 // pred_check
      _
    $region7: #{arch_fae_forward.1} parent=1 // pred_check_branch
      %85 = sbr.rel (0) target = $region9
    $region8: #{arch_fae_forward.1} parent=1 // pred_region
      _
    $region9: #{arch_fae_forward.1} parent=1 // pred_fallthru
      _
    // Predicated region
    $region10: #{arch_fae_forward.1} parent=1 // pred_check
      _
    $region11: #{arch_fae_forward.1} parent=1 // pred_check_branch
      %87 = sbr.rel (0) target = $region13
    $region12: #{arch_fae_forward.1} parent=1 // pred_region
      _
    $region13: #{arch_fae_forward.1} parent=1 // pred_fallthru
      _
    // Predicated region
    $region14: #{arch_fae_forward.1} parent=1 // pred_check
      _
    $region15: #{arch_fae_forward.1} parent=1 // pred_check_branch
      %89 = sbr.rel (0) target = $region17
    $region16: #{arch_fae_forward.1} parent=1 // pred_region
      _
    $region17: #{arch_fae_forward.1} parent=1 // pred_fallthru
      _
    // Predicated region
    $region18: #{arch_fae_forward.1} parent=1 // pred_check
      _
    $region19: #{arch_fae_forward.1} parent=1 // pred_check_branch
      %91 = sbr.rel (0) target = $region21
    $region20: #{arch_fae_forward.1} parent=1 // pred_region
      _
    $region21: #{arch_fae_forward.1} parent=1 // pred_fallthru
      _
    // Predicated region
    $region22: #{arch_fae_forward.1} parent=1 // pred_check
      _
    $region23: #{arch_fae_forward.1} parent=1 // pred_check_branch
      %93 = sbr.rel (0) target = $region25
    $region24: #{arch_fae_forward.1} parent=1 // pred_region
      _
    $region25: #{arch_fae_forward.1} parent=1 // pred_fallthru
      _
    // Predicated region
    $region26: #{arch_fae_forward.1} parent=1 // pred_check
      _
    $region27: #{arch_fae_forward.1} parent=1 // pred_check_branch
      %95 = sbr.rel (0) target = $region29
    $region28: #{arch_fae_forward.1} parent=1 // pred_region
      _
    $region29: #{arch_fae_forward.1} parent=1 // pred_fallthru
      _
    // Predicated region
    $region30: #{arch_fae_forward.1} parent=1 // pred_check
      _
    $region31: #{arch_fae_forward.1} parent=1 // pred_check_branch
      %97 = sbr.rel (0) target = $region33
    $region32: #{arch_fae_forward.1} parent=1 // pred_region
      _
    $region33: #{arch_fae_forward.1} parent=1 // pred_fallthru
      _
    // Predicated region
    $region34: #{arch_fae_forward.1} parent=1 // pred_check
      _
    $region35: #{arch_fae_forward.1} parent=1 // pred_check_branch
      %99 = sbr.rel (0) target = $region37
    $region36: #{arch_fae_forward.1} parent=1 // pred_region
      _
    $region37: #{arch_fae_forward.1} parent=1 // pred_fallthru
      _
    // Predicated region
    $region38: #{arch_fae_forward.1} parent=1 // pred_check
      _
    $region39: #{arch_fae_forward.1} parent=1 // pred_check_branch
      %101 = sbr.rel (0) target = $region41
    $region40: #{arch_fae_forward.1} parent=1 // pred_region
      _
    $region41: #{arch_fae_forward.1} parent=1 // pred_fallthru
      _
    // Predicated region
    $region42: #{arch_fae_forward.1} parent=1 // pred_check
      _
    $region43: #{arch_fae_forward.1} parent=1 // pred_check_branch
      %103 = sbr.rel (0) target = $region45
    $region44: #{arch_fae_forward.1} parent=1 // pred_region
      _
    $region45: #{arch_fae_forward.1} parent=1 // pred_fallthru
      _
    // Predicated region
    $region46: #{arch_fae_forward.1} parent=1 // pred_check
      _
    $region47: #{arch_fae_forward.1} parent=1 // pred_check_branch
      %105 = sbr.rel (0) target = $region49
    $region48: #{arch_fae_forward.1} parent=1 // pred_region
      _
    $region49: #{arch_fae_forward.1} parent=1 // pred_fallthru
      _
    // Predicated region
    $region50: #{arch_fae_forward.1} parent=1 // pred_check
      _
    $region51: #{arch_fae_forward.1} parent=1 // pred_check_branch
      %107 = sbr.rel (0) target = $region53
    $region52: #{arch_fae_forward.1} parent=1 // pred_region
      _
    $region53: #{arch_fae_forward.1} parent=1 // pred_fallthru
      _
    // Predicated region
    $region54: #{arch_fae_forward.1} parent=1 // pred_check
      _
    $region55: #{arch_fae_forward.1} parent=1 // pred_check_branch
      %109 = sbr.rel (0) target = $region57
    $region56: #{arch_fae_forward.1} parent=1 // pred_region
      _
    $region57: #{arch_fae_forward.1} parent=1 // pred_fallthru
      _
    // Predicated region
    $region58: #{arch_fae_forward.1} parent=1 // pred_check
      _
    $region59: #{arch_fae_forward.1} parent=1 // pred_check_branch
      %111 = sbr.rel (0) target = $region61
    $region60: #{arch_fae_forward.1} parent=1 // pred_region
      _
    $region61: #{arch_fae_forward.1} parent=1 // pred_fallthru
      _
    // Predicated region
    $region62: #{arch_fae_forward.1} parent=1 // pred_check
      _
    $region63: #{arch_fae_forward.1} parent=1 // pred_check_branch
      %113 = sbr.rel (0) target = $region65
    $region64: #{arch_fae_forward.1} parent=1 // pred_region
      _
    $region65: #{arch_fae_forward.1} parent=1 // pred_fallthru
      _
    // Predicated region
    $region66: #{arch_fae_forward.1} parent=1 // pred_check
      _
    $region67: #{arch_fae_forward.1} parent=1 // pred_check_branch
      %115 = sbr.rel (0) target = $region69
    $region68: #{arch_fae_forward.1} parent=1 // pred_region
      _
    $region69: #{arch_fae_forward.1} parent=1 // pred_fallthru
      _
    // Predicated region
    $region70: #{arch_fae_forward.1} parent=1 // pred_check
      _
    $region71: #{arch_fae_forward.1} parent=1 // pred_check_branch
      %117 = sbr.rel (0) target = $region73
    $region72: #{arch_fae_forward.1} parent=1 // pred_region
      _
    $region73: #{arch_fae_forward.1} parent=1 // pred_fallthru
      _
    // Predicated region
    $region74: #{arch_fae_forward.1} parent=1 // pred_check
      _
    $region75: #{arch_fae_forward.1} parent=1 // pred_check_branch
      %119 = sbr.rel (0) target = $region77
    $region76: #{arch_fae_forward.1} parent=1 // pred_region
      _
    $region77: #{arch_fae_forward.1} parent=1 // pred_fallthru
      _
    // Predicated region
    $region78: #{arch_fae_forward.1} parent=1 // pred_check
      _
    $region79: #{arch_fae_forward.1} parent=1 // pred_check_branch
      %121 = sbr.rel (0) target = $region81
    $region80: #{arch_fae_forward.1} parent=1 // pred_region
      _
    $region81: #{arch_fae_forward.1} parent=1 // pred_fallthru
      _
    // Predicated region
    $region82: #{arch_fae_forward.1} parent=1 // pred_check
      _
    $region83: #{arch_fae_forward.1} parent=1 // pred_check_branch
      %123 = sbr.rel (0) target = $region85
    $region84: #{arch_fae_forward.1} parent=1 // pred_region
      _
    $region85: #{arch_fae_forward.1} parent=1 // pred_fallthru
      _
    // Predicated region
    $region86: #{arch_fae_forward.1} parent=1 // pred_check
      _
    $region87: #{arch_fae_forward.1} parent=1 // pred_check_branch
      %125 = sbr.rel (0) target = $region89
    $region88: #{arch_fae_forward.1} parent=1 // pred_region
      _
    $region89: #{arch_fae_forward.1} parent=1 // pred_fallthru
      _
    // Predicated region
    $region90: #{arch_fae_forward.1} parent=1 // pred_check
      _
    $region91: #{arch_fae_forward.1} parent=1 // pred_check_branch
      %127 = sbr.rel (0) target = $region93
    $region92: #{arch_fae_forward.1} parent=1 // pred_region
      _
    $region93: #{arch_fae_forward.1} parent=1 // pred_fallthru
      _
    // Predicated region
    $region94: #{arch_fae_forward.1} parent=1 // pred_check
      _
    $region95: #{arch_fae_forward.1} parent=1 // pred_check_branch
      %129 = sbr.rel (0) target = $region97
    $region96: #{arch_fae_forward.1} parent=1 // pred_region
      _
    $region97: #{arch_fae_forward.1} parent=1 // pred_fallthru
      _
    // Predicated region
    $region98: #{arch_fae_forward.1} parent=1 // pred_check
      _
    $region99: #{arch_fae_forward.1} parent=1 // pred_check_branch
      %131 = sbr.rel (0) target = $region101
    $region100: #{arch_fae_forward.1} parent=1 // pred_region
      _
    $region101: #{arch_fae_forward.1} parent=1 // pred_fallthru
      _
    // Predicated region
    $region102: #{arch_fae_forward.1} parent=1 // pred_check
      _
    $region103: #{arch_fae_forward.1} parent=1 // pred_check_branch
      %133 = sbr.rel (0) target = $region105
    $region104: #{arch_fae_forward.1} parent=1 // pred_region
      _
    $region105: #{arch_fae_forward.1} parent=1 // pred_fallthru
      _
    // Predicated region
    $region106: #{arch_fae_forward.1} parent=1 // pred_check
      _
    $region107: #{arch_fae_forward.1} parent=1 // pred_check_branch
      %135 = sbr.rel (0) target = $region109
    $region108: #{arch_fae_forward.1} parent=1 // pred_region
      _
    $region109: #{arch_fae_forward.1} parent=1 // pred_fallthru
      _
    // Predicated region
    $region110: #{arch_fae_forward.1} parent=1 // pred_check
      _
    $region111: #{arch_fae_forward.1} parent=1 // pred_check_branch
      %137 = sbr.rel (0) target = $region113
    $region112: #{arch_fae_forward.1} parent=1 // pred_region
      _
    $region113: #{arch_fae_forward.1} parent=1 // pred_fallthru
      _
    // Predicated region
    $region114: #{arch_fae_forward.1} parent=1 // pred_check
      _
    $region115: #{arch_fae_forward.1} parent=1 // pred_check_branch
      %139 = sbr.rel (0) target = $region117
    $region116: #{arch_fae_forward.1} parent=1 // pred_region
      _
    $region117: #{arch_fae_forward.1} parent=1 // pred_fallthru
      _
    // Predicated region
    $region118: #{arch_fae_forward.1} parent=1 // pred_check
      _
    $region119: #{arch_fae_forward.1} parent=1 // pred_check_branch
      %141 = sbr.rel (0) target = $region121
    $region120: #{arch_fae_forward.1} parent=1 // pred_region
      _
    $region121: #{arch_fae_forward.1} parent=1 // pred_fallthru
      _
    // Predicated region
    $region122: #{arch_fae_forward.1} parent=1 // pred_check
      _
    $region123: #{arch_fae_forward.1} parent=1 // pred_check_branch
      %143 = sbr.rel (0) target = $region125
    $region124: #{arch_fae_forward.1} parent=1 // pred_region
      _
    $region125: #{arch_fae_forward.1} parent=1 // pred_fallthru
      _
    // Predicated region
    $region126: #{arch_fae_forward.1} parent=1 // pred_check
      _
    $region127: #{arch_fae_forward.1} parent=1 // pred_check_branch
      %145 = sbr.rel (0) target = $region129
    $region128: #{arch_fae_forward.1} parent=1 // pred_region
      _
    $region129: #{arch_fae_forward.1} parent=1 // pred_fallthru
      _
    // Predicated region
    $region130: #{arch_fae_forward.1} parent=1 // pred_check
      _
    $region131: #{arch_fae_forward.1} parent=1 // pred_check_branch
      %147 = sbr.rel (0) target = $region133
    $region132: #{arch_fae_forward.1} parent=1 // pred_region
      _
    $region133: #{arch_fae_forward.1} parent=1 // pred_fallthru
      _
    // Predicated region
    $region134: #{arch_fae_forward.1} parent=1 // pred_check
      _
    $region135: #{arch_fae_forward.1} parent=1 // pred_check_branch
      %149 = sbr.rel (0) target = $region137
    $region136: #{arch_fae_forward.1} parent=1 // pred_region
      %s151 = ssub.s32 16, 16
      %152 = vsyncadd [#allocation6], %s151
      %s154 = sshll.u32 %s67, 4
      %s155 = int_to_ptr.vmem [resolvable:$true] %s154
      %157 = dma.vmem_to_smem %s155, 16, [#allocation5], [#allocation6]
    $region137: #{arch_fae_forward.1} parent=1 // pred_fallthru
      _
    // Predicated region
    $region138: #{arch_fae_forward.1} parent=1 // pred_check
      _
    $region139: #{arch_fae_forward.1} parent=1 // pred_check_branch
      %159 = sbr.rel (0) target = $region141
    $region140: #{arch_fae_forward.1} parent=1 // pred_region
      _
    $region141: #{arch_fae_forward.1} parent=1 // pred_fallthru
      _
    // Predicated region
    $region142: #{arch_fae_forward.1} parent=1 // pred_check
      _
    $region143: #{arch_fae_forward.1} parent=1 // pred_check_branch
      %161 = sbr.rel (0) target = $region145
    $region144: #{arch_fae_forward.1} parent=1 // pred_region
      %162 = dma.done [#allocation6], 16
    $region145: #{arch_fae_forward.1} parent=1 // pred_fallthru
      _
    %163 = sfence
    %v164 = vld [vmem:[%s29] sm:$0xf]
    %v165 = vld [vmem:[%s29 + $0x4] sm:$0xf]
    %v166 = vld [vmem:[%s29 + $0x8] sm:$0xf]
    %v167 = vld [vmem:[%s29 + $0xc] sm:$0xf]
    %v168 = vunpack.c.l.bf16 %v164
    %v169 = vunpack.c.l.bf16 %v165
    %v170 = vunpack.c.l.bf16 %v166
    %v171 = vunpack.c.l.bf16 %v167
    %v172 = vld [vmem:[%s31] sm:$0xf]
    %v173 = vld [vmem:[%s31 + $0x4] sm:$0xf]
    %v174 = vld [vmem:[%s31 + $0x8] sm:$0xf]
    %v175 = vld [vmem:[%s31 + $0xc] sm:$0xf]
    %v176 = vunpack.c.l.bf16 %v172
    %v177 = vunpack.c.l.bf16 %v173
    %v178 = vunpack.c.l.bf16 %v174
    %v179 = vunpack.c.l.bf16 %v175
    %v180 = vld [vmem:[%s33] sm:$0xf]
    %v181 = vld [vmem:[%s33 + $0x4] sm:$0xf]
    %v182 = vunpack.c.l.bf16 %v180
    %v183 = vunpack.c.l.bf16 %v181
    %v184 = vld [vmem:[%s35] sm:$0x3]
    %v185 = vld [vmem:[%s1] sm:$0xff]
    %v186 = vld [vmem:[%s1 + $0x8] sm:$0xff]
    %v187 = vld [vmem:[%s3] sm:$0xff]
    %v188 = vld [vmem:[%s3 + $0x8] sm:$0xff]
    %v189 = vld [vmem:[%s3 + $0x10] sm:$0xff]
    %v190 = vld [vmem:[%s3 + $0x18] sm:$0xff]
    %v191 = vld [vmem:[%s5] sm:$0x1]
    %v193 = vlaneseq
    %v194 = vshrl.u32 %v193, 7
    %v195 = vsub.s32 0, %v194
    %v196 = vrot.slane %v191, %v195
    %vm198 = vcmask 261120
    %v200 = vsel %vm198, %v185, 0
    %v203 = vsel %vm198, %v186, 0
    %205 = vmatprep.subr.mxu0 0.0
    %206 = vmatpush1.msra.mxu0 %v187
    %207 = vmatprep.subr.mxu0 0.0
    %208 = vmatpush1.msra.mxu0 %v188
    %209 = vmatprep.subr.mxu0 0.0
    %210 = vmatpush1.msra.mxu0 %v189
    %211 = vmatprep.subr.mxu0 0.0
    %212 = vmatpush1.msra.mxu0 %v190
    %213 = vmatprep.subr.mxu0 0.0
    %214 = vmatpush1.msra.mxu0 0.0
    %215 = vmatprep.subr.mxu0 0.0
    %216 = vmatpush1.msra.mxu0 0.0
    %217 = vmatprep.subr.mxu0 0.0
    %218 = vmatpush1.msra.mxu0 0.0
    %219 = vmatprep.subr.mxu0 0.0
    %220 = vmatpush1.msra.mxu0 0.0
    %221 = vmatprep.subr.mxu0 0.0
    %222 = vmatpush1.msra.mxu0 0.0
    %223 = vmatprep.subr.mxu0 0.0
    %224 = vmatpush1.msra.mxu0 0.0
    %225 = vmatprep.subr.mxu0 0.0
    %226 = vmatpush1.msra.mxu0 0.0
    %227 = vmatprep.subr.mxu0 0.0
    %228 = vmatpush1.msra.mxu0 0.0
    %229 = vmatprep.subr.mxu0 0.0
    %230 = vmatpush1.msra.mxu0 0.0
    %231 = vmatprep.subr.mxu0 0.0
    %232 = vmatpush1.msra.mxu0 0.0
    %233 = vmatprep.subr.mxu0 0.0
    %234 = vmatpush1.msra.mxu0 0.0
    %235 = vmatprep.subr.mxu0 0.0
    %236 = vmatpush1.msra.mxu0 0.0
    %237 = vmatprep.subr.mxu0 0.0
    %238 = vmatpush1.msra.mxu0 0.0
    %239 = vmatprep.subr.mxu0 0.0
    %240 = vmatpush1.msra.mxu0 0.0
    %241 = vmatprep.subr.mxu0 0.0
    %242 = vmatpush1.msra.mxu0 0.0
    %243 = vmatprep.subr.mxu0 0.0
    %244 = vmatpush1.msra.mxu0 0.0
    %245 = vmatprep.subr.mxu0 0.0
    %246 = vmatpush1.msra.mxu0 0.0
    %247 = vmatprep.subr.mxu0 0.0
    %248 = vmatpush1.msra.mxu0 0.0
    %249 = vmatprep.subr.mxu0 0.0
    %250 = vmatpush1.msra.mxu0 0.0
    %251 = vmatprep.subr.mxu0 0.0
    %252 = vmatpush1.msra.mxu0 0.0
    %253 = vmatprep.subr.mxu0 0.0
    %254 = vmatpush1.msra.mxu0 0.0
    %255 = vmatprep.subr.mxu0 0.0
    %256 = vmatpush1.msra.mxu0 0.0
    %257 = vmatprep.subr.mxu0 0.0
    %258 = vmatpush1.msra.mxu0 0.0
    %259 = vmatprep.subr.mxu0 0.0
    %260 = vmatpush1.msra.mxu0 0.0
    %261 = vmatprep.subr.mxu0 0.0
    %262 = vmatpush1.msra.mxu0 0.0
    %263 = vmatprep.subr.mxu0 0.0
    %264 = vmatpush1.msra.mxu0 0.0
    %265 = vmatprep.subr.mxu0 0.0
    %266 = vmatpush1.msra.mxu0 0.0
    %267 = vmatprep.subr.mxu0 0.0
    %268 = vmatpush1.msra.mxu0 0.0
    %269 = vmatprep.mubr.f32.mxu0 0.0
    %270 = vmatmul.mubr.f32.gmra.mrb[0].mxu0 %v200
    %v271 = vpop.f32.mrb[0].mxu0
    %v272 = vadd.f32 %v196, %v271
    %v273 = vpop.f32.mrb[0].mxu0
    %274 = vmatprep.mubr.f32.mxu0 0.0
    %275 = vmatmul.mubr.f32.gmra.mrb[0].mxu0 %v203
    %v276 = vpop.f32.mrb[0].mxu0
    %v277 = vadd.f32 %v196, %v276
    %v278 = vpop.f32.mrb[0].mxu0
    %279 = vdwg.mxu0
    %v280 = vxor.u32 %v272, 2147483648
    %v281 = vxor.u32 %v277, 2147483648
    %v282 = vmul.f32 %v280, 1.442695
    %v283 = vpow.pop %v282
    %v284 = vmul.f32 %v281, 1.442695
    %v285 = vpow.pop %v284
    %v286 = vadd.f32 %v283, 1.0
    %v287 = vadd.f32 %v285, 1.0
    %v288 = vrcp.pop %v286
    %v289 = vmul.f32 1.0, %v288
    %v290 = vrcp.pop %v287
    %v291 = vmul.f32 1.0, %v290
    %v292 = vmul.f32 %v272, %v289
    %v293 = vmul.f32 %v277, %v291
    %v294 = vld [vmem:[%s7] sm:$0xff]
    %v295 = vld [vmem:[%s7 + $0x8] sm:$0xff]
    %v296 = vld [vmem:[%s7 + $0x10] sm:$0xff]
    %v297 = vld [vmem:[%s7 + $0x18] sm:$0xff]
    %v298 = vld [vmem:[%s9] sm:$0x1]
    %v300 = vlaneseq
    %v301 = vshrl.u32 %v300, 7
    %v302 = vsub.s32 0, %v301
    %v303 = vrot.slane %v298, %v302
    %v306 = vsel %vm198, %v292, 0
    %v309 = vsel %vm198, %v293, 0
    %311 = vmatprep.subr.mxu0 0.0
    %312 = vmatpush1.msra.mxu0 %v294
    %313 = vmatprep.subr.mxu0 0.0
    %314 = vmatpush1.msra.mxu0 %v295
    %315 = vmatprep.subr.mxu0 0.0
    %316 = vmatpush1.msra.mxu0 %v296
    %317 = vmatprep.subr.mxu0 0.0
    %318 = vmatpush1.msra.mxu0 %v297
    %319 = vmatprep.subr.mxu0 0.0
    %320 = vmatpush1.msra.mxu0 0.0
    %321 = vmatprep.subr.mxu0 0.0
    %322 = vmatpush1.msra.mxu0 0.0
    %323 = vmatprep.subr.mxu0 0.0
    %324 = vmatpush1.msra.mxu0 0.0
    %325 = vmatprep.subr.mxu0 0.0
    %326 = vmatpush1.msra.mxu0 0.0
    %327 = vmatprep.subr.mxu0 0.0
    %328 = vmatpush1.msra.mxu0 0.0
    %329 = vmatprep.subr.mxu0 0.0
    %330 = vmatpush1.msra.mxu0 0.0
    %331 = vmatprep.subr.mxu0 0.0
    %332 = vmatpush1.msra.mxu0 0.0
    %333 = vmatprep.subr.mxu0 0.0
    %334 = vmatpush1.msra.mxu0 0.0
    %335 = vmatprep.subr.mxu0 0.0
    %336 = vmatpush1.msra.mxu0 0.0
    %337 = vmatprep.subr.mxu0 0.0
    %338 = vmatpush1.msra.mxu0 0.0
    %339 = vmatprep.subr.mxu0 0.0
    %340 = vmatpush1.msra.mxu0 0.0
    %341 = vmatprep.subr.mxu0 0.0
    %342 = vmatpush1.msra.mxu0 0.0
    %343 = vmatprep.subr.mxu0 0.0
    %344 = vmatpush1.msra.mxu0 0.0
    %345 = vmatprep.subr.mxu0 0.0
    %346 = vmatpush1.msra.mxu0 0.0
    %347 = vmatprep.subr.mxu0 0.0
    %348 = vmatpush1.msra.mxu0 0.0
    %349 = vmatprep.subr.mxu0 0.0
    %350 = vmatpush1.msra.mxu0 0.0
    %351 = vmatprep.subr.mxu0 0.0
    %352 = vmatpush1.msra.mxu0 0.0
    %353 = vmatprep.subr.mxu0 0.0
    %354 = vmatpush1.msra.mxu0 0.0
    %355 = vmatprep.subr.mxu0 0.0
    %356 = vmatpush1.msra.mxu0 0.0
    %357 = vmatprep.subr.mxu0 0.0
    %358 = vmatpush1.msra.mxu0 0.0
    %359 = vmatprep.subr.mxu0 0.0
    %360 = vmatpush1.msra.mxu0 0.0
    %361 = vmatprep.subr.mxu0 0.0
    %362 = vmatpush1.msra.mxu0 0.0
    %363 = vmatprep.subr.mxu0 0.0
    %364 = vmatpush1.msra.mxu0 0.0
    %365 = vmatprep.subr.mxu0 0.0
    %366 = vmatpush1.msra.mxu0 0.0
    %367 = vmatprep.subr.mxu0 0.0
    %368 = vmatpush1.msra.mxu0 0.0
    %369 = vmatprep.subr.mxu0 0.0
    %370 = vmatpush1.msra.mxu0 0.0
    %371 = vmatprep.subr.mxu0 0.0
    %372 = vmatpush1.msra.mxu0 0.0
    %373 = vmatprep.subr.mxu0 0.0
    %374 = vmatpush1.msra.mxu0 0.0
    %375 = vmatprep.mubr.f32.mxu0 0.0
    %376 = vmatmul.mubr.f32.gmra.mrb[0].mxu0 %v306
    %v377 = vpop.f32.mrb[0].mxu0
    %v378 = vadd.f32 %v303, %v377
    %v379 = vpop.f32.mrb[0].mxu0
    %380 = vmatprep.mubr.f32.mxu0 0.0
    %381 = vmatmul.mubr.f32.gmra.mrb[0].mxu0 %v309
    %v382 = vpop.f32.mrb[0].mxu0
    %v383 = vadd.f32 %v303, %v382
    %v384 = vpop.f32.mrb[0].mxu0
    %385 = vdwg.mxu0
    %v386 = vxor.u32 %v378, 2147483648
    %v387 = vxor.u32 %v383, 2147483648
    %v388 = vmul.f32 %v386, 1.442695
    %v389 = vpow.pop %v388
    %v390 = vmul.f32 %v387, 1.442695
    %v391 = vpow.pop %v390
    %v392 = vadd.f32 %v389, 1.0
    %v393 = vadd.f32 %v391, 1.0
    %v394 = vrcp.pop %v392
    %v395 = vmul.f32 1.0, %v394
    %v396 = vrcp.pop %v393
    %v397 = vmul.f32 1.0, %v396
    %v398 = vmul.f32 %v378, %v395
    %v399 = vmul.f32 %v383, %v397
    %v400 = vld [vmem:[%s13] sm:$0xff]
    %v401 = vld [vmem:[%s13 + $0x8] sm:$0xff]
    %v402 = vld [vmem:[%s13 + $0x10] sm:$0xff]
    %v403 = vld [vmem:[%s13 + $0x18] sm:$0xff]
    %v404 = vld [vmem:[%s15] sm:$0x1]
    %406 = vset.pattern.permute.xlu0 0
    %407 = vperm.xlu0 %406, %v400
    %v408 = vpop.permute.xlu0 %407
    %411 = vset.pattern.permute.xlu0 0
    %412 = vperm.xlu0 %411, %v401
    %v413 = vpop.permute.xlu0 %412
    %416 = vset.pattern.permute.xlu0 0
    %417 = vperm.xlu0 %416, %v402
    %v418 = vpop.permute.xlu0 %417
    %421 = vset.pattern.permute.xlu0 0
    %422 = vperm.xlu0 %421, %v403
    %v423 = vpop.permute.xlu0 %422
    %v426 = vlaneseq
    %v427 = vshrl.u32 %v426, 7
    %v428 = vsub.s32 0, %v427
    %v429 = vrot.slane %v404, %v428
    %v431 = vsub.f32 %v408, %v429
    %v432 = vsub.f32 %v413, %v429
    %v433 = vsub.f32 %v418, %v429
    %v434 = vsub.f32 %v423, %v429
    %v435 = vld [vmem:[#allocation2] sm:$0x1]
    %v437 = vlaneseq
    %v438 = vshrl.u32 %v437, 7
    %v439 = vsub.s32 0, %v438
    %v440 = vrot.slane %v435, %v439
    %441 = vset.pattern.permute.xlu0 0
    %442 = vperm.xlu0 %441, %v440
    %v443 = vpop.permute.xlu0 %442
    %v445 = vmul.f32 %v443, %v431
    %v446 = vmul.f32 %v443, %v432
    %v447 = vmul.f32 %v443, %v433
    %v448 = vmul.f32 %v443, %v434
    %v449 = vmul.f32 %v445, %v431
    %v450 = vmul.f32 %v446, %v432
    %v451 = vmul.f32 %v447, %v433
    %v452 = vmul.f32 %v448, %v434
    %v453 = vmul.f32 %v449, 1.442695
    %v454 = vpow.pop %v453
    %v455 = vmul.f32 %v450, 1.442695
    %v456 = vpow.pop %v455
    %v457 = vmul.f32 %v451, 1.442695
    %v458 = vpow.pop %v457
    %v459 = vmul.f32 %v452, 1.442695
    %v460 = vpow.pop %v459
    %v461 = vld [vmem:[%s11] sm:$0xff]
    %v462 = vld [vmem:[%s11 + $0x8] sm:$0xff]
    %v463 = vld [vmem:[%s11 + $0x10] sm:$0xff]
    %v464 = vld [vmem:[%s11 + $0x18] sm:$0xff]
    %v465 = vld [vmem:[%s19] sm:$0x7]
    %v466 = vld [vmem:[%s21] sm:$0xff]
    %v467 = vld [vmem:[%s21 + $0x8] sm:$0xff]
    %vm468 = vcmask 130048
    %v470 = vsel %vm468, %v454, 0
    %v473 = vsel %vm468, %v456, 0
    %v476 = vsel %vm468, %v458, 0
    %v479 = vsel %vm468, %v460, 0
    %481 = vmatprep.subr.mxu0 0.0
    %482 = vmatpush1.msra.mxu0 %v466
    %483 = vmatprep.subr.mxu0 0.0
    %484 = vmatpush1.msra.mxu0 %v467
    %485 = vmatprep.subr.mxu0 0.0
    %486 = vmatpush1.msra.mxu0 0.0
    %487 = vmatprep.subr.mxu0 0.0
    %488 = vmatpush1.msra.mxu0 0.0
    %489 = vmatprep.subr.mxu0 0.0
    %490 = vmatpush1.msra.mxu0 0.0
    %491 = vmatprep.subr.mxu0 0.0
    %492 = vmatpush1.msra.mxu0 0.0
    %493 = vmatprep.subr.mxu0 0.0
    %494 = vmatpush1.msra.mxu0 0.0
    %495 = vmatprep.subr.mxu0 0.0
    %496 = vmatpush1.msra.mxu0 0.0
    %497 = vmatprep.subr.mxu0 0.0
    %498 = vmatpush1.msra.mxu0 0.0
    %499 = vmatprep.subr.mxu0 0.0
    %500 = vmatpush1.msra.mxu0 0.0
    %501 = vmatprep.subr.mxu0 0.0
    %502 = vmatpush1.msra.mxu0 0.0
    %503 = vmatprep.subr.mxu0 0.0
    %504 = vmatpush1.msra.mxu0 0.0
    %505 = vmatprep.subr.mxu0 0.0
    %506 = vmatpush1.msra.mxu0 0.0
    %507 = vmatprep.subr.mxu0 0.0
    %508 = vmatpush1.msra.mxu0 0.0
    %509 = vmatprep.subr.mxu0 0.0
    %510 = vmatpush1.msra.mxu0 0.0
    %511 = vmatprep.subr.mxu0 0.0
    %512 = vmatpush1.msra.mxu0 0.0
    %513 = vmatprep.subr.mxu0 0.0
    %514 = vmatpush1.msra.mxu0 0.0
    %515 = vmatprep.subr.mxu0 0.0
    %516 = vmatpush1.msra.mxu0 0.0
    %517 = vmatprep.subr.mxu0 0.0
    %518 = vmatpush1.msra.mxu0 0.0
    %519 = vmatprep.subr.mxu0 0.0
    %520 = vmatpush1.msra.mxu0 0.0
    %521 = vmatprep.subr.mxu0 0.0
    %522 = vmatpush1.msra.mxu0 0.0
    %523 = vmatprep.subr.mxu0 0.0
    %524 = vmatpush1.msra.mxu0 0.0
    %525 = vmatprep.subr.mxu0 0.0
    %526 = vmatpush1.msra.mxu0 0.0
    %527 = vmatprep.subr.mxu0 0.0
    %528 = vmatpush1.msra.mxu0 0.0
    %529 = vmatprep.subr.mxu0 0.0
    %530 = vmatpush1.msra.mxu0 0.0
    %531 = vmatprep.subr.mxu0 0.0
    %532 = vmatpush1.msra.mxu0 0.0
    %533 = vmatprep.subr.mxu0 0.0
    %534 = vmatpush1.msra.mxu0 0.0
    %535 = vmatprep.subr.mxu0 0.0
    %536 = vmatpush1.msra.mxu0 0.0
    %537 = vmatprep.subr.mxu0 0.0
    %538 = vmatpush1.msra.mxu0 0.0
    %539 = vmatprep.subr.mxu0 0.0
    %540 = vmatpush1.msra.mxu0 0.0
    %541 = vmatprep.subr.mxu0 0.0
    %542 = vmatpush1.msra.mxu0 0.0
    %543 = vmatprep.subr.mxu0 0.0
    %544 = vmatpush1.msra.mxu0 0.0
    %545 = vmatprep.mubr.f32.mxu0 0.0
    %546 = vmatmul.mubr.f32.gmra.mrb[0].mxu0 %v470
    %v547 = vpop.f32.mrb[0].mxu0
    %v548 = vadd.f32 0.0, %v547
    %v549 = vpop.f32.mrb[0].mxu0
    %550 = vmatprep.mubr.f32.mxu0 0.0
    %551 = vmatmul.mubr.f32.gmra.mrb[0].mxu0 %v473
    %v552 = vpop.f32.mrb[0].mxu0
    %v553 = vadd.f32 0.0, %v552
    %v554 = vpop.f32.mrb[0].mxu0
    %555 = vmatprep.mubr.f32.mxu0 0.0
    %556 = vmatmul.mubr.f32.gmra.mrb[0].mxu0 %v476
    %v557 = vpop.f32.mrb[0].mxu0
    %v558 = vadd.f32 0.0, %v557
    %v559 = vpop.f32.mrb[0].mxu0
    %560 = vmatprep.mubr.f32.mxu0 0.0
    %561 = vmatmul.mubr.f32.gmra.mrb[0].mxu0 %v479
    %v562 = vpop.f32.mrb[0].mxu0
    %v563 = vadd.f32 0.0, %v562
    %v564 = vpop.f32.mrb[0].mxu0
    %565 = vdwg.mxu0
    %vm566 = vcmask 23552
    %v568 = vsel %vm566, %v461, 0
    %v571 = vsel %vm566, %v462, 0
    %v574 = vsel %vm566, %v463, 0
    %v577 = vsel %vm566, %v464, 0
    %vm579 = vcmask 1042432
    %v581 = vsel %vm579, %v465, 0
    %583 = vmatprep.subr.mxu0 0.0
    %584 = vmatpush1.msra.mxu0 %v581
    %585 = vmatprep.subr.mxu0 0.0
    %586 = vmatpush1.msra.mxu0 0.0
    %587 = vmatprep.subr.mxu0 0.0
    %588 = vmatpush1.msra.mxu0 0.0
    %589 = vmatprep.subr.mxu0 0.0
    %590 = vmatpush1.msra.mxu0 0.0
    %591 = vmatprep.subr.mxu0 0.0
    %592 = vmatpush1.msra.mxu0 0.0
    %593 = vmatprep.subr.mxu0 0.0
    %594 = vmatpush1.msra.mxu0 0.0
    %595 = vmatprep.subr.mxu0 0.0
    %596 = vmatpush1.msra.mxu0 0.0
    %597 = vmatprep.subr.mxu0 0.0
    %598 = vmatpush1.msra.mxu0 0.0
    %599 = vmatprep.subr.mxu0 0.0
    %600 = vmatpush1.msra.mxu0 0.0
    %601 = vmatprep.subr.mxu0 0.0
    %602 = vmatpush1.msra.mxu0 0.0
    %603 = vmatprep.subr.mxu0 0.0
    %604 = vmatpush1.msra.mxu0 0.0
    %605 = vmatprep.subr.mxu0 0.0
    %606 = vmatpush1.msra.mxu0 0.0
    %607 = vmatprep.subr.mxu0 0.0
    %608 = vmatpush1.msra.mxu0 0.0
    %609 = vmatprep.subr.mxu0 0.0
    %610 = vmatpush1.msra.mxu0 0.0
    %611 = vmatprep.subr.mxu0 0.0
    %612 = vmatpush1.msra.mxu0 0.0
    %613 = vmatprep.subr.mxu0 0.0
    %614 = vmatpush1.msra.mxu0 0.0
    %615 = vmatprep.subr.mxu0 0.0
    %616 = vmatpush1.msra.mxu0 0.0
    %617 = vmatprep.subr.mxu0 0.0
    %618 = vmatpush1.msra.mxu0 0.0
    %619 = vmatprep.subr.mxu0 0.0
    %620 = vmatpush1.msra.mxu0 0.0
    %621 = vmatprep.subr.mxu0 0.0
    %622 = vmatpush1.msra.mxu0 0.0
    %623 = vmatprep.subr.mxu0 0.0
    %624 = vmatpush1.msra.mxu0 0.0
    %625 = vmatprep.subr.mxu0 0.0
    %626 = vmatpush1.msra.mxu0 0.0
    %627 = vmatprep.subr.mxu0 0.0
    %628 = vmatpush1.msra.mxu0 0.0
    %629 = vmatprep.subr.mxu0 0.0
    %630 = vmatpush1.msra.mxu0 0.0
    %631 = vmatprep.subr.mxu0 0.0
    %632 = vmatpush1.msra.mxu0 0.0
    %633 = vmatprep.subr.mxu0 0.0
    %634 = vmatpush1.msra.mxu0 0.0
    %635 = vmatprep.subr.mxu0 0.0
    %636 = vmatpush1.msra.mxu0 0.0
    %637 = vmatprep.subr.mxu0 0.0
    %638 = vmatpush1.msra.mxu0 0.0
    %639 = vmatprep.subr.mxu0 0.0
    %640 = vmatpush1.msra.mxu0 0.0
    %641 = vmatprep.subr.mxu0 0.0
    %642 = vmatpush1.msra.mxu0 0.0
    %643 = vmatprep.subr.mxu0 0.0
    %644 = vmatpush1.msra.mxu0 0.0
    %645 = vmatprep.subr.mxu0 0.0
    %646 = vmatpush1.msra.mxu0 0.0
    %647 = vmatprep.mubr.f32.mxu0 0.0
    %648 = vmatmul.mubr.f32.gmra.mrb[0].mxu0 %v568
    %v649 = vpop.f32.mrb[0].mxu0
    %v650 = vadd.f32 %v548, %v649
    %v651 = vpop.f32.mrb[0].mxu0
    %652 = vmatprep.mubr.f32.mxu0 0.0
    %653 = vmatmul.mubr.f32.gmra.mrb[0].mxu0 %v571
    %v654 = vpop.f32.mrb[0].mxu0
    %v655 = vadd.f32 %v553, %v654
    %v656 = vpop.f32.mrb[0].mxu0
    %657 = vmatprep.mubr.f32.mxu0 0.0
    %658 = vmatmul.mubr.f32.gmra.mrb[0].mxu0 %v574
    %v659 = vpop.f32.mrb[0].mxu0
    %v660 = vadd.f32 %v558, %v659
    %v661 = vpop.f32.mrb[0].mxu0
    %662 = vmatprep.mubr.f32.mxu0 0.0
    %663 = vmatmul.mubr.f32.gmra.mrb[0].mxu0 %v577
    %v664 = vpop.f32.mrb[0].mxu0
    %v665 = vadd.f32 %v563, %v664
    %v666 = vpop.f32.mrb[0].mxu0
    %667 = vdwg.mxu0
    %v668 = vld [vmem:[%s23] sm:$0x1]
    %v670 = vlaneseq
    %v671 = vshrl.u32 %v670, 7
    %v672 = vsub.s32 0, %v671
    %v673 = vrot.slane %v668, %v672
    %v675 = vadd.f32 %v650, %v673
    %v676 = vadd.f32 %v655, %v673
    %v677 = vadd.f32 %v660, %v673
    %v678 = vadd.f32 %v665, %v673
    %v679 = vxor.u32 %v675, 2147483648
    %v680 = vxor.u32 %v676, 2147483648
    %v681 = vxor.u32 %v677, 2147483648
    %v682 = vxor.u32 %v678, 2147483648
    %v683 = vmul.f32 %v679, 1.442695
    %v684 = vpow.pop %v683
    %v685 = vmul.f32 %v680, 1.442695
    %v686 = vpow.pop %v685
    %v687 = vmul.f32 %v681, 1.442695
    %v688 = vpow.pop %v687
    %v689 = vmul.f32 %v682, 1.442695
    %v690 = vpow.pop %v689
    %v691 = vadd.f32 %v684, 1.0
    %v692 = vadd.f32 %v686, 1.0
    %v693 = vadd.f32 %v688, 1.0
    %v694 = vadd.f32 %v690, 1.0
    %v695 = vrcp.pop %v691
    %v696 = vmul.f32 1.0, %v695
    %v697 = vrcp.pop %v692
    %v698 = vmul.f32 1.0, %v697
    %v699 = vrcp.pop %v693
    %v700 = vmul.f32 1.0, %v699
    %v701 = vrcp.pop %v694
    %v702 = vmul.f32 1.0, %v701
    %v703 = vmul.f32 %v675, %v696
    %v704 = vmul.f32 %v676, %v698
    %v705 = vmul.f32 %v677, %v700
    %v706 = vmul.f32 %v678, %v702
    %v707 = vld [vmem:[%s25] sm:$0xff]
    %v708 = vld [vmem:[%s25 + $0x8] sm:$0xff]
    %v709 = vld [vmem:[%s27] sm:$0x1]
    %v711 = vlaneseq
    %v712 = vshrl.u32 %v711, 7
    %v713 = vsub.s32 0, %v712
    %v714 = vrot.slane %v709, %v713
    %v717 = vsel %vm468, %v703, 0
    %v720 = vsel %vm468, %v704, 0
    %v723 = vsel %vm468, %v705, 0
    %v726 = vsel %vm468, %v706, 0
    %728 = vmatprep.subr.mxu0 0.0
    %729 = vmatpush1.msra.mxu0 %v707
    %730 = vmatprep.subr.mxu0 0.0
    %731 = vmatpush1.msra.mxu0 %v708
    %732 = vmatprep.subr.mxu0 0.0
    %733 = vmatpush1.msra.mxu0 0.0
    %734 = vmatprep.subr.mxu0 0.0
    %735 = vmatpush1.msra.mxu0 0.0
    %736 = vmatprep.subr.mxu0 0.0
    %737 = vmatpush1.msra.mxu0 0.0
    %738 = vmatprep.subr.mxu0 0.0
    %739 = vmatpush1.msra.mxu0 0.0
    %740 = vmatprep.subr.mxu0 0.0
    %741 = vmatpush1.msra.mxu0 0.0
    %742 = vmatprep.subr.mxu0 0.0
    %743 = vmatpush1.msra.mxu0 0.0
    %744 = vmatprep.subr.mxu0 0.0
    %745 = vmatpush1.msra.mxu0 0.0
    %746 = vmatprep.subr.mxu0 0.0
    %747 = vmatpush1.msra.mxu0 0.0
    %748 = vmatprep.subr.mxu0 0.0
    %749 = vmatpush1.msra.mxu0 0.0
    %750 = vmatprep.subr.mxu0 0.0
    %751 = vmatpush1.msra.mxu0 0.0
    %752 = vmatprep.subr.mxu0 0.0
    %753 = vmatpush1.msra.mxu0 0.0
    %754 = vmatprep.subr.mxu0 0.0
    %755 = vmatpush1.msra.mxu0 0.0
    %756 = vmatprep.subr.mxu0 0.0
    %757 = vmatpush1.msra.mxu0 0.0
    %758 = vmatprep.subr.mxu0 0.0
    %759 = vmatpush1.msra.mxu0 0.0
    %760 = vmatprep.subr.mxu0 0.0
    %761 = vmatpush1.msra.mxu0 0.0
    %762 = vmatprep.subr.mxu0 0.0
    %763 = vmatpush1.msra.mxu0 0.0
    %764 = vmatprep.subr.mxu0 0.0
    %765 = vmatpush1.msra.mxu0 0.0
    %766 = vmatprep.subr.mxu0 0.0
    %767 = vmatpush1.msra.mxu0 0.0
    %768 = vmatprep.subr.mxu0 0.0
    %769 = vmatpush1.msra.mxu0 0.0
    %770 = vmatprep.subr.mxu0 0.0
    %771 = vmatpush1.msra.mxu0 0.0
    %772 = vmatprep.subr.mxu0 0.0
    %773 = vmatpush1.msra.mxu0 0.0
    %774 = vmatprep.subr.mxu0 0.0
    %775 = vmatpush1.msra.mxu0 0.0
    %776 = vmatprep.subr.mxu0 0.0
    %777 = vmatpush1.msra.mxu0 0.0
    %778 = vmatprep.subr.mxu0 0.0
    %779 = vmatpush1.msra.mxu0 0.0
    %780 = vmatprep.subr.mxu0 0.0
    %781 = vmatpush1.msra.mxu0 0.0
    %782 = vmatprep.subr.mxu0 0.0
    %783 = vmatpush1.msra.mxu0 0.0
    %784 = vmatprep.subr.mxu0 0.0
    %785 = vmatpush1.msra.mxu0 0.0
    %786 = vmatprep.subr.mxu0 0.0
    %787 = vmatpush1.msra.mxu0 0.0
    %788 = vmatprep.subr.mxu0 0.0
    %789 = vmatpush1.msra.mxu0 0.0
    %790 = vmatprep.subr.mxu0 0.0
    %791 = vmatpush1.msra.mxu0 0.0
    %792 = vmatprep.mubr.f32.mxu0 0.0
    %793 = vmatmul.mubr.f32.gmra.mrb[0].mxu0 %v717
    %v794 = vpop.f32.mrb[0].mxu0
    %v795 = vadd.f32 %v714, %v794
    %v796 = vpop.f32.mrb[0].mxu0
    %797 = vmatprep.mubr.f32.mxu0 0.0
    %798 = vmatmul.mubr.f32.gmra.mrb[0].mxu0 %v720
    %v799 = vpop.f32.mrb[0].mxu0
    %v800 = vadd.f32 %v714, %v799
    %v801 = vpop.f32.mrb[0].mxu0
    %802 = vmatprep.mubr.f32.mxu0 0.0
    %803 = vmatmul.mubr.f32.gmra.mrb[0].mxu0 %v723
    %v804 = vpop.f32.mrb[0].mxu0
    %v805 = vadd.f32 %v714, %v804
    %v806 = vpop.f32.mrb[0].mxu0
    %807 = vmatprep.mubr.f32.mxu0 0.0
    %808 = vmatmul.mubr.f32.gmra.mrb[0].mxu0 %v726
    %v809 = vpop.f32.mrb[0].mxu0
    %v810 = vadd.f32 %v714, %v809
    %v811 = vpop.f32.mrb[0].mxu0
    %812 = vdwg.mxu0
    %v813 = vxor.u32 %v795, 2147483648
    %v814 = vxor.u32 %v800, 2147483648
    %v815 = vxor.u32 %v805, 2147483648
    %v816 = vxor.u32 %v810, 2147483648
    %v817 = vmul.f32 %v813, 1.442695
    %v818 = vpow.pop %v817
    %v819 = vmul.f32 %v814, 1.442695
    %v820 = vpow.pop %v819
    %v821 = vmul.f32 %v815, 1.442695
    %v822 = vpow.pop %v821
    %v823 = vmul.f32 %v816, 1.442695
    %v824 = vpow.pop %v823
    %v825 = vadd.f32 %v818, 1.0
    %v826 = vadd.f32 %v820, 1.0
    %v827 = vadd.f32 %v822, 1.0
    %v828 = vadd.f32 %v824, 1.0
    %v829 = vrcp.pop %v825
    %v830 = vmul.f32 1.0, %v829
    %v831 = vrcp.pop %v826
    %v832 = vmul.f32 1.0, %v831
    %v833 = vrcp.pop %v827
    %v834 = vmul.f32 1.0, %v833
    %v835 = vrcp.pop %v828
    %v836 = vmul.f32 1.0, %v835
    %v837 = vmul.f32 %v795, %v830
    %v838 = vmul.f32 %v800, %v832
    %v839 = vmul.f32 %v805, %v834
    %v840 = vmul.f32 %v810, %v836
    %v841 = vld [vmem:[%s59] sm:$0xff]
    %v842 = vld [vmem:[%s59 + $0x8] sm:$0xff]
    %v843 = vld [vmem:[%s59 + $0x10] sm:$0xff]
    %v844 = vld [vmem:[%s59 + $0x18] sm:$0xff]
    %v845 = vld [vmem:[%s61] sm:$0x1]
    %v847 = vlaneseq
    %v848 = vshrl.u32 %v847, 7
    %v849 = vsub.s32 0, %v848
    %v850 = vrot.slane %v845, %v849
    %v853 = vsel %vm198, %v398, 0
    %v856 = vsel %vm198, %v399, 0
    %858 = vmatprep.subr.mxu0 0.0
    %859 = vmatpush1.msra.mxu0 %v841
    %860 = vmatprep.subr.mxu0 0.0
    %861 = vmatpush1.msra.mxu0 %v842
    %862 = vmatprep.subr.mxu0 0.0
    %863 = vmatpush1.msra.mxu0 %v843
    %864 = vmatprep.subr.mxu0 0.0
    %865 = vmatpush1.msra.mxu0 %v844
    %866 = vmatprep.subr.mxu0 0.0
    %867 = vmatpush1.msra.mxu0 0.0
    %868 = vmatprep.subr.mxu0 0.0
    %869 = vmatpush1.msra.mxu0 0.0
    %870 = vmatprep.subr.mxu0 0.0
    %871 = vmatpush1.msra.mxu0 0.0
    %872 = vmatprep.subr.mxu0 0.0
    %873 = vmatpush1.msra.mxu0 0.0
    %874 = vmatprep.subr.mxu0 0.0
    %875 = vmatpush1.msra.mxu0 0.0
    %876 = vmatprep.subr.mxu0 0.0
    %877 = vmatpush1.msra.mxu0 0.0
    %878 = vmatprep.subr.mxu0 0.0
    %879 = vmatpush1.msra.mxu0 0.0
    %880 = vmatprep.subr.mxu0 0.0
    %881 = vmatpush1.msra.mxu0 0.0
    %882 = vmatprep.subr.mxu0 0.0
    %883 = vmatpush1.msra.mxu0 0.0
    %884 = vmatprep.subr.mxu0 0.0
    %885 = vmatpush1.msra.mxu0 0.0
    %886 = vmatprep.subr.mxu0 0.0
    %887 = vmatpush1.msra.mxu0 0.0
    %888 = vmatprep.subr.mxu0 0.0
    %889 = vmatpush1.msra.mxu0 0.0
    %890 = vmatprep.subr.mxu0 0.0
    %891 = vmatpush1.msra.mxu0 0.0
    %892 = vmatprep.subr.mxu0 0.0
    %893 = vmatpush1.msra.mxu0 0.0
    %894 = vmatprep.subr.mxu0 0.0
    %895 = vmatpush1.msra.mxu0 0.0
    %896 = vmatprep.subr.mxu0 0.0
    %897 = vmatpush1.msra.mxu0 0.0
    %898 = vmatprep.subr.mxu0 0.0
    %899 = vmatpush1.msra.mxu0 0.0
    %900 = vmatprep.subr.mxu0 0.0
    %901 = vmatpush1.msra.mxu0 0.0
    %902 = vmatprep.subr.mxu0 0.0
    %903 = vmatpush1.msra.mxu0 0.0
    %904 = vmatprep.subr.mxu0 0.0
    %905 = vmatpush1.msra.mxu0 0.0
    %906 = vmatprep.subr.mxu0 0.0
    %907 = vmatpush1.msra.mxu0 0.0
    %908 = vmatprep.subr.mxu0 0.0
    %909 = vmatpush1.msra.mxu0 0.0
    %910 = vmatprep.subr.mxu0 0.0
    %911 = vmatpush1.msra.mxu0 0.0
    %912 = vmatprep.subr.mxu0 0.0
    %913 = vmatpush1.msra.mxu0 0.0
    %914 = vmatprep.subr.mxu0 0.0
    %915 = vmatpush1.msra.mxu0 0.0
    %916 = vmatprep.subr.mxu0 0.0
    %917 = vmatpush1.msra.mxu0 0.0
    %918 = vmatprep.subr.mxu0 0.0
    %919 = vmatpush1.msra.mxu0 0.0
    %920 = vmatprep.subr.mxu0 0.0
    %921 = vmatpush1.msra.mxu0 0.0
    %922 = vmatprep.mubr.f32.mxu0 0.0
    %923 = vmatmul.mubr.f32.gmra.mrb[0].mxu0 %v853
    %v924 = vpop.f32.mrb[0].mxu0
    %v925 = vadd.f32 %v850, %v924
    %v926 = vpop.f32.mrb[0].mxu0
    %927 = vmatprep.mubr.f32.mxu0 0.0
    %928 = vmatmul.mubr.f32.gmra.mrb[0].mxu0 %v856
    %v929 = vpop.f32.mrb[0].mxu0
    %v930 = vadd.f32 %v850, %v929
    %v931 = vpop.f32.mrb[0].mxu0
    %932 = vdwg.mxu0
    %v933 = vxor.u32 %v925, 2147483648
    %v934 = vxor.u32 %v930, 2147483648
    %v935 = vmul.f32 %v933, 1.442695
    %v936 = vpow.pop %v935
    %v937 = vmul.f32 %v934, 1.442695
    %v938 = vpow.pop %v937
    %v939 = vadd.f32 %v936, 1.0
    %v940 = vadd.f32 %v938, 1.0
    %v941 = vrcp.pop %v939
    %v942 = vmul.f32 1.0, %v941
    %v943 = vrcp.pop %v940
    %v944 = vmul.f32 1.0, %v943
    %v945 = vmul.f32 %v925, %v942
    %v946 = vmul.f32 %v930, %v944
    %v947 = vld [vmem:[%s63] sm:$0x1]
    %v949 = vlaneseq
    %v950 = vshrl.u32 %v949, 7
    %v951 = vsub.s32 0, %v950
    %v952 = vrot.slane %v947, %v951
    %v954 = vmul.f32 %v945, %v952
    %v955 = vmul.f32 %v946, %v952
    %v956 = vsel %vm468, %v954, 0.0
    %957 = vadd.xlane.f32.xlu0 %v956
    %v958 = vpop.xlane.xlu0 %957
    %v959 = vsel %vm468, %v955, 0.0
    %960 = vadd.xlane.f32.xlu0 %v959
    %v961 = vpop.xlane.xlu0 %960
    %v962 = vld [vmem:[#allocation3] sm:$0x1]
    %v964 = vlaneseq
    %v965 = vshrl.u32 %v964, 7
    %v966 = vsub.s32 0, %v965
    %v967 = vrot.slane %v962, %v966
    %v969 = vadd.f32 %v958, %v967
    %v970 = vadd.f32 %v961, %v967
    %s971 = sld [smem:[#allocation5]]
    %v972 = vstv %s971
    %v973 = vmul.f32 %v969, %v972
    %v974 = vmul.f32 %v970, %v972
    %v975 = vadd.f32 %v973, 0.0
    %v976 = vadd.f32 %v974, 0.0
    %v978 = vsel %vm468, %v168, 0
    %v981 = vsel %vm468, %v169, 0
    %v984 = vsel %vm468, %v170, 0
    %v987 = vsel %vm468, %v171, 0
    %989 = vmatprep.subr.mxu0 0.0
    %990 = vmatpush1.msra.mxu0 %v398
    %991 = vmatprep.subr.mxu0 0.0
    %992 = vmatpush1.msra.mxu0 %v399
    %993 = vmatprep.subr.mxu0 0.0
    %994 = vmatpush1.msra.mxu0 0.0
    %995 = vmatprep.subr.mxu0 0.0
    %996 = vmatpush1.msra.mxu0 0.0
    %997 = vmatprep.subr.mxu0 0.0
    %998 = vmatpush1.msra.mxu0 0.0
    %999 = vmatprep.subr.mxu0 0.0
    %1000 = vmatpush1.msra.mxu0 0.0
    %1001 = vmatprep.subr.mxu0 0.0
    %1002 = vmatpush1.msra.mxu0 0.0
    %1003 = vmatprep.subr.mxu0 0.0
    %1004 = vmatpush1.msra.mxu0 0.0
    %1005 = vmatprep.subr.mxu0 0.0
    %1006 = vmatpush1.msra.mxu0 0.0
    %1007 = vmatprep.subr.mxu0 0.0
    %1008 = vmatpush1.msra.mxu0 0.0
    %1009 = vmatprep.subr.mxu0 0.0
    %1010 = vmatpush1.msra.mxu0 0.0
    %1011 = vmatprep.subr.mxu0 0.0
    %1012 = vmatpush1.msra.mxu0 0.0
    %1013 = vmatprep.subr.mxu0 0.0
    %1014 = vmatpush1.msra.mxu0 0.0
    %1015 = vmatprep.subr.mxu0 0.0
    %1016 = vmatpush1.msra.mxu0 0.0
    %1017 = vmatprep.subr.mxu0 0.0
    %1018 = vmatpush1.msra.mxu0 0.0
    %1019 = vmatprep.subr.mxu0 0.0
    %1020 = vmatpush1.msra.mxu0 0.0
    %1021 = vmatprep.subr.mxu0 0.0
    %1022 = vmatpush1.msra.mxu0 0.0
    %1023 = vmatprep.subr.mxu0 0.0
    %1024 = vmatpush1.msra.mxu0 0.0
    %1025 = vmatprep.subr.mxu0 0.0
    %1026 = vmatpush1.msra.mxu0 0.0
    %1027 = vmatprep.subr.mxu0 0.0
    %1028 = vmatpush1.msra.mxu0 0.0
    %1029 = vmatprep.subr.mxu0 0.0
    %1030 = vmatpush1.msra.mxu0 0.0
    %1031 = vmatprep.subr.mxu0 0.0
    %1032 = vmatpush1.msra.mxu0 0.0
    %1033 = vmatprep.subr.mxu0 0.0
    %1034 = vmatpush1.msra.mxu0 0.0
    %1035 = vmatprep.subr.mxu0 0.0
    %1036 = vmatpush1.msra.mxu0 0.0
    %1037 = vmatprep.subr.mxu0 0.0
    %1038 = vmatpush1.msra.mxu0 0.0
    %1039 = vmatprep.subr.mxu0 0.0
    %1040 = vmatpush1.msra.mxu0 0.0
    %1041 = vmatprep.subr.mxu0 0.0
    %1042 = vmatpush1.msra.mxu0 0.0
    %1043 = vmatprep.subr.mxu0 0.0
    %1044 = vmatpush1.msra.mxu0 0.0
    %1045 = vmatprep.subr.mxu0 0.0
    %1046 = vmatpush1.msra.mxu0 0.0
    %1047 = vmatprep.subr.mxu0 0.0
    %1048 = vmatpush1.msra.mxu0 0.0
    %1049 = vmatprep.subr.mxu0 0.0
    %1050 = vmatpush1.msra.mxu0 0.0
    %1051 = vmatprep.subr.mxu0 0.0
    %1052 = vmatpush1.msra.mxu0 0.0
    %1053 = vmatprep.mubr.f32.mxu0 0.0
    %1054 = vmatmul.mubr.f32.gmra.mrb[0].mxu0 %v978
    %v1055 = vpop.f32.mrb[0].mxu0
    %v1056 = vadd.f32 0.0, %v1055
    %v1057 = vpop.f32.mrb[0].mxu0
    %1058 = vmatprep.mubr.f32.mxu0 0.0
    %1059 = vmatmul.mubr.f32.gmra.mrb[0].mxu0 %v981
    %v1060 = vpop.f32.mrb[0].mxu0
    %v1061 = vadd.f32 0.0, %v1060
    %v1062 = vpop.f32.mrb[0].mxu0
    %1063 = vmatprep.mubr.f32.mxu0 0.0
    %1064 = vmatmul.mubr.f32.gmra.mrb[0].mxu0 %v984
    %v1065 = vpop.f32.mrb[0].mxu0
    %v1066 = vadd.f32 0.0, %v1065
    %v1067 = vpop.f32.mrb[0].mxu0
    %1068 = vmatprep.mubr.f32.mxu0 0.0
    %1069 = vmatmul.mubr.f32.gmra.mrb[0].mxu0 %v987
    %v1070 = vpop.f32.mrb[0].mxu0
    %v1071 = vadd.f32 0.0, %v1070
    %v1072 = vpop.f32.mrb[0].mxu0
    %1073 = vdwg.mxu0
    %v1075 = vsel %vm468, %v176, 0
    %v1078 = vsel %vm468, %v177, 0
    %v1081 = vsel %vm468, %v178, 0
    %v1084 = vsel %vm468, %v179, 0
    %1086 = vmatprep.subr.mxu0 0.0
    %1087 = vmatpush1.msra.mxu0 %v398
    %1088 = vmatprep.subr.mxu0 0.0
    %1089 = vmatpush1.msra.mxu0 %v399
    %1090 = vmatprep.subr.mxu0 0.0
    %1091 = vmatpush1.msra.mxu0 0.0
    %1092 = vmatprep.subr.mxu0 0.0
    %1093 = vmatpush1.msra.mxu0 0.0
    %1094 = vmatprep.subr.mxu0 0.0
    %1095 = vmatpush1.msra.mxu0 0.0
    %1096 = vmatprep.subr.mxu0 0.0
    %1097 = vmatpush1.msra.mxu0 0.0
    %1098 = vmatprep.subr.mxu0 0.0
    %1099 = vmatpush1.msra.mxu0 0.0
    %1100 = vmatprep.subr.mxu0 0.0
    %1101 = vmatpush1.msra.mxu0 0.0
    %1102 = vmatprep.subr.mxu0 0.0
    %1103 = vmatpush1.msra.mxu0 0.0
    %1104 = vmatprep.subr.mxu0 0.0
    %1105 = vmatpush1.msra.mxu0 0.0
    %1106 = vmatprep.subr.mxu0 0.0
    %1107 = vmatpush1.msra.mxu0 0.0
    %1108 = vmatprep.subr.mxu0 0.0
    %1109 = vmatpush1.msra.mxu0 0.0
    %1110 = vmatprep.subr.mxu0 0.0
    %1111 = vmatpush1.msra.mxu0 0.0
    %1112 = vmatprep.subr.mxu0 0.0
    %1113 = vmatpush1.msra.mxu0 0.0
    %1114 = vmatprep.subr.mxu0 0.0
    %1115 = vmatpush1.msra.mxu0 0.0
    %1116 = vmatprep.subr.mxu0 0.0
    %1117 = vmatpush1.msra.mxu0 0.0
    %1118 = vmatprep.subr.mxu0 0.0
    %1119 = vmatpush1.msra.mxu0 0.0
    %1120 = vmatprep.subr.mxu0 0.0
    %1121 = vmatpush1.msra.mxu0 0.0
    %1122 = vmatprep.subr.mxu0 0.0
    %1123 = vmatpush1.msra.mxu0 0.0
    %1124 = vmatprep.subr.mxu0 0.0
    %1125 = vmatpush1.msra.mxu0 0.0
    %1126 = vmatprep.subr.mxu0 0.0
    %1127 = vmatpush1.msra.mxu0 0.0
    %1128 = vmatprep.subr.mxu0 0.0
    %1129 = vmatpush1.msra.mxu0 0.0
    %1130 = vmatprep.subr.mxu0 0.0
    %1131 = vmatpush1.msra.mxu0 0.0
    %1132 = vmatprep.subr.mxu0 0.0
    %1133 = vmatpush1.msra.mxu0 0.0
    %1134 = vmatprep.subr.mxu0 0.0
    %1135 = vmatpush1.msra.mxu0 0.0
    %1136 = vmatprep.subr.mxu0 0.0
    %1137 = vmatpush1.msra.mxu0 0.0
    %1138 = vmatprep.subr.mxu0 0.0
    %1139 = vmatpush1.msra.mxu0 0.0
    %1140 = vmatprep.subr.mxu0 0.0
    %1141 = vmatpush1.msra.mxu0 0.0
    %1142 = vmatprep.subr.mxu0 0.0
    %1143 = vmatpush1.msra.mxu0 0.0
    %1144 = vmatprep.subr.mxu0 0.0
    %1145 = vmatpush1.msra.mxu0 0.0
    %1146 = vmatprep.subr.mxu0 0.0
    %1147 = vmatpush1.msra.mxu0 0.0
    %1148 = vmatprep.subr.mxu0 0.0
    %1149 = vmatpush1.msra.mxu0 0.0
    %1150 = vmatprep.mubr.f32.mxu0 0.0
    %1151 = vmatmul.mubr.f32.gmra.mrb[0].mxu0 %v1075
    %v1152 = vpop.f32.mrb[0].mxu0
    %v1153 = vadd.f32 0.0, %v1152
    %v1154 = vpop.f32.mrb[0].mxu0
    %1155 = vmatprep.mubr.f32.mxu0 0.0
    %1156 = vmatmul.mubr.f32.gmra.mrb[0].mxu0 %v1078
    %v1157 = vpop.f32.mrb[0].mxu0
    %v1158 = vadd.f32 0.0, %v1157
    %v1159 = vpop.f32.mrb[0].mxu0
    %1160 = vmatprep.mubr.f32.mxu0 0.0
    %1161 = vmatmul.mubr.f32.gmra.mrb[0].mxu0 %v1081
    %v1162 = vpop.f32.mrb[0].mxu0
    %v1163 = vadd.f32 0.0, %v1162
    %v1164 = vpop.f32.mrb[0].mxu0
    %1165 = vmatprep.mubr.f32.mxu0 0.0
    %1166 = vmatmul.mubr.f32.gmra.mrb[0].mxu0 %v1084
    %v1167 = vpop.f32.mrb[0].mxu0
    %v1168 = vadd.f32 0.0, %v1167
    %v1169 = vpop.f32.mrb[0].mxu0
    %1170 = vdwg.mxu0
    %v1171 = vld [vmem:[%s37] sm:$0xff]
    %v1172 = vld [vmem:[%s37 + $0x8] sm:$0xff]
    %v1173 = vld [vmem:[%s39] sm:$0xff]
    %v1174 = vld [vmem:[%s39 + $0x8] sm:$0xff]
    %v1175 = vld [vmem:[%s39 + $0x10] sm:$0xff]
    %v1176 = vld [vmem:[%s39 + $0x18] sm:$0xff]
    %v1178 = vsel %vm198, %v1056, 0
    %v1181 = vsel %vm198, %v1061, 0
    %v1184 = vsel %vm198, %v1066, 0
    %v1187 = vsel %vm198, %v1071, 0
    %1189 = vmatprep.subr.mxu0 0.0
    %1190 = vmatpush1.msra.mxu0 %v1173
    %1191 = vmatprep.subr.mxu0 0.0
    %1192 = vmatpush1.msra.mxu0 %v1174
    %1193 = vmatprep.subr.mxu0 0.0
    %1194 = vmatpush1.msra.mxu0 %v1175
    %1195 = vmatprep.subr.mxu0 0.0
    %1196 = vmatpush1.msra.mxu0 %v1176
    %1197 = vmatprep.subr.mxu0 0.0
    %1198 = vmatpush1.msra.mxu0 0.0
    %1199 = vmatprep.subr.mxu0 0.0
    %1200 = vmatpush1.msra.mxu0 0.0
    %1201 = vmatprep.subr.mxu0 0.0
    %1202 = vmatpush1.msra.mxu0 0.0
    %1203 = vmatprep.subr.mxu0 0.0
    %1204 = vmatpush1.msra.mxu0 0.0
    %1205 = vmatprep.subr.mxu0 0.0
    %1206 = vmatpush1.msra.mxu0 0.0
    %1207 = vmatprep.subr.mxu0 0.0
    %1208 = vmatpush1.msra.mxu0 0.0
    %1209 = vmatprep.subr.mxu0 0.0
    %1210 = vmatpush1.msra.mxu0 0.0
    %1211 = vmatprep.subr.mxu0 0.0
    %1212 = vmatpush1.msra.mxu0 0.0
    %1213 = vmatprep.subr.mxu0 0.0
    %1214 = vmatpush1.msra.mxu0 0.0
    %1215 = vmatprep.subr.mxu0 0.0
    %1216 = vmatpush1.msra.mxu0 0.0
    %1217 = vmatprep.subr.mxu0 0.0
    %1218 = vmatpush1.msra.mxu0 0.0
    %1219 = vmatprep.subr.mxu0 0.0
    %1220 = vmatpush1.msra.mxu0 0.0
    %1221 = vmatprep.subr.mxu0 0.0
    %1222 = vmatpush1.msra.mxu0 0.0
    %1223 = vmatprep.subr.mxu0 0.0
    %1224 = vmatpush1.msra.mxu0 0.0
    %1225 = vmatprep.subr.mxu0 0.0
    %1226 = vmatpush1.msra.mxu0 0.0
    %1227 = vmatprep.subr.mxu0 0.0
    %1228 = vmatpush1.msra.mxu0 0.0
    %1229 = vmatprep.subr.mxu0 0.0
    %1230 = vmatpush1.msra.mxu0 0.0
    %1231 = vmatprep.subr.mxu0 0.0
    %1232 = vmatpush1.msra.mxu0 0.0
    %1233 = vmatprep.subr.mxu0 0.0
    %1234 = vmatpush1.msra.mxu0 0.0
    %1235 = vmatprep.subr.mxu0 0.0
    %1236 = vmatpush1.msra.mxu0 0.0
    %1237 = vmatprep.subr.mxu0 0.0
    %1238 = vmatpush1.msra.mxu0 0.0
    %1239 = vmatprep.subr.mxu0 0.0
    %1240 = vmatpush1.msra.mxu0 0.0
    %1241 = vmatprep.subr.mxu0 0.0
    %1242 = vmatpush1.msra.mxu0 0.0
    %1243 = vmatprep.subr.mxu0 0.0
    %1244 = vmatpush1.msra.mxu0 0.0
    %1245 = vmatprep.subr.mxu0 0.0
    %1246 = vmatpush1.msra.mxu0 0.0
    %1247 = vmatprep.subr.mxu0 0.0
    %1248 = vmatpush1.msra.mxu0 0.0
    %1249 = vmatprep.subr.mxu0 0.0
    %1250 = vmatpush1.msra.mxu0 0.0
    %1251 = vmatprep.subr.mxu0 0.0
    %1252 = vmatpush1.msra.mxu0 0.0
    %1253 = vmatprep.mubr.f32.mxu0 0.0
    %1254 = vmatmul.mubr.f32.gmra.mrb[0].mxu0 %v1178
    %v1255 = vpop.f32.mrb[0].mxu0
    %v1256 = vadd.f32 0.0, %v1255
    %v1257 = vpop.f32.mrb[0].mxu0
    %1258 = vmatprep.mubr.f32.mxu0 0.0
    %1259 = vmatmul.mubr.f32.gmra.mrb[0].mxu0 %v1181
    %v1260 = vpop.f32.mrb[0].mxu0
    %v1261 = vadd.f32 0.0, %v1260
    %v1262 = vpop.f32.mrb[0].mxu0
    %1263 = vmatprep.mubr.f32.mxu0 0.0
    %1264 = vmatmul.mubr.f32.gmra.mrb[0].mxu0 %v1184
    %v1265 = vpop.f32.mrb[0].mxu0
    %v1266 = vadd.f32 0.0, %v1265
    %v1267 = vpop.f32.mrb[0].mxu0
    %1268 = vmatprep.mubr.f32.mxu0 0.0
    %1269 = vmatmul.mubr.f32.gmra.mrb[0].mxu0 %v1187
    %v1270 = vpop.f32.mrb[0].mxu0
    %v1271 = vadd.f32 0.0, %v1270
    %v1272 = vpop.f32.mrb[0].mxu0
    %1273 = vdwg.mxu0
    %v1275 = vsel %vm468, %v837, 0
    %v1278 = vsel %vm468, %v838, 0
    %v1281 = vsel %vm468, %v839, 0
    %v1284 = vsel %vm468, %v840, 0
    %1286 = vmatprep.subr.mxu0 0.0
    %1287 = vmatpush1.msra.mxu0 %v1171
    %1288 = vmatprep.subr.mxu0 0.0
    %1289 = vmatpush1.msra.mxu0 %v1172
    %1290 = vmatprep.subr.mxu0 0.0
    %1291 = vmatpush1.msra.mxu0 0.0
    %1292 = vmatprep.subr.mxu0 0.0
    %1293 = vmatpush1.msra.mxu0 0.0
    %1294 = vmatprep.subr.mxu0 0.0
    %1295 = vmatpush1.msra.mxu0 0.0
    %1296 = vmatprep.subr.mxu0 0.0
    %1297 = vmatpush1.msra.mxu0 0.0
    %1298 = vmatprep.subr.mxu0 0.0
    %1299 = vmatpush1.msra.mxu0 0.0
    %1300 = vmatprep.subr.mxu0 0.0
    %1301 = vmatpush1.msra.mxu0 0.0
    %1302 = vmatprep.subr.mxu0 0.0
    %1303 = vmatpush1.msra.mxu0 0.0
    %1304 = vmatprep.subr.mxu0 0.0
    %1305 = vmatpush1.msra.mxu0 0.0
    %1306 = vmatprep.subr.mxu0 0.0
    %1307 = vmatpush1.msra.mxu0 0.0
    %1308 = vmatprep.subr.mxu0 0.0
    %1309 = vmatpush1.msra.mxu0 0.0
    %1310 = vmatprep.subr.mxu0 0.0
    %1311 = vmatpush1.msra.mxu0 0.0
    %1312 = vmatprep.subr.mxu0 0.0
    %1313 = vmatpush1.msra.mxu0 0.0
    %1314 = vmatprep.subr.mxu0 0.0
    %1315 = vmatpush1.msra.mxu0 0.0
    %1316 = vmatprep.subr.mxu0 0.0
    %1317 = vmatpush1.msra.mxu0 0.0
    %1318 = vmatprep.subr.mxu0 0.0
    %1319 = vmatpush1.msra.mxu0 0.0
    %1320 = vmatprep.subr.mxu0 0.0
    %1321 = vmatpush1.msra.mxu0 0.0
    %1322 = vmatprep.subr.mxu0 0.0
    %1323 = vmatpush1.msra.mxu0 0.0
    %1324 = vmatprep.subr.mxu0 0.0
    %1325 = vmatpush1.msra.mxu0 0.0
    %1326 = vmatprep.subr.mxu0 0.0
    %1327 = vmatpush1.msra.mxu0 0.0
    %1328 = vmatprep.subr.mxu0 0.0
    %1329 = vmatpush1.msra.mxu0 0.0
    %1330 = vmatprep.subr.mxu0 0.0
    %1331 = vmatpush1.msra.mxu0 0.0
    %1332 = vmatprep.subr.mxu0 0.0
    %1333 = vmatpush1.msra.mxu0 0.0
    %1334 = vmatprep.subr.mxu0 0.0
    %1335 = vmatpush1.msra.mxu0 0.0
    %1336 = vmatprep.subr.mxu0 0.0
    %1337 = vmatpush1.msra.mxu0 0.0
    %1338 = vmatprep.subr.mxu0 0.0
    %1339 = vmatpush1.msra.mxu0 0.0
    %1340 = vmatprep.subr.mxu0 0.0
    %1341 = vmatpush1.msra.mxu0 0.0
    %1342 = vmatprep.subr.mxu0 0.0
    %1343 = vmatpush1.msra.mxu0 0.0
    %1344 = vmatprep.subr.mxu0 0.0
    %1345 = vmatpush1.msra.mxu0 0.0
    %1346 = vmatprep.subr.mxu0 0.0
    %1347 = vmatpush1.msra.mxu0 0.0
    %1348 = vmatprep.subr.mxu0 0.0
    %1349 = vmatpush1.msra.mxu0 0.0
    %1350 = vmatprep.mubr.f32.mxu0 0.0
    %1351 = vmatmul.mubr.f32.gmra.mrb[0].mxu0 %v1275
    %v1352 = vpop.f32.mrb[0].mxu0
    %v1353 = vadd.f32 %v1256, %v1352
    %v1354 = vpop.f32.mrb[0].mxu0
    %1355 = vmatprep.mubr.f32.mxu0 0.0
    %1356 = vmatmul.mubr.f32.gmra.mrb[0].mxu0 %v1278
    %v1357 = vpop.f32.mrb[0].mxu0
    %v1358 = vadd.f32 %v1261, %v1357
    %v1359 = vpop.f32.mrb[0].mxu0
    %1360 = vmatprep.mubr.f32.mxu0 0.0
    %1361 = vmatmul.mubr.f32.gmra.mrb[0].mxu0 %v1281
    %v1362 = vpop.f32.mrb[0].mxu0
    %v1363 = vadd.f32 %v1266, %v1362
    %v1364 = vpop.f32.mrb[0].mxu0
    %1365 = vmatprep.mubr.f32.mxu0 0.0
    %1366 = vmatmul.mubr.f32.gmra.mrb[0].mxu0 %v1284
    %v1367 = vpop.f32.mrb[0].mxu0
    %v1368 = vadd.f32 %v1271, %v1367
    %v1369 = vpop.f32.mrb[0].mxu0
    %1370 = vdwg.mxu0
    %v1371 = vld [vmem:[%s41] sm:$0xff]
    %v1372 = vld [vmem:[%s41 + $0x8] sm:$0xff]
    %v1373 = vld [vmem:[%s41 + $0x10] sm:$0xff]
    %v1374 = vld [vmem:[%s41 + $0x18] sm:$0xff]
    %v1376 = vsel %vm198, %v1153, 0
    %v1379 = vsel %vm198, %v1158, 0
    %v1382 = vsel %vm198, %v1163, 0
    %v1385 = vsel %vm198, %v1168, 0
    %1387 = vmatprep.subr.mxu0 0.0
    %1388 = vmatpush1.msra.mxu0 %v1371
    %1389 = vmatprep.subr.mxu0 0.0
    %1390 = vmatpush1.msra.mxu0 %v1372
    %1391 = vmatprep.subr.mxu0 0.0
    %1392 = vmatpush1.msra.mxu0 %v1373
    %1393 = vmatprep.subr.mxu0 0.0
    %1394 = vmatpush1.msra.mxu0 %v1374
    %1395 = vmatprep.subr.mxu0 0.0
    %1396 = vmatpush1.msra.mxu0 0.0
    %1397 = vmatprep.subr.mxu0 0.0
    %1398 = vmatpush1.msra.mxu0 0.0
    %1399 = vmatprep.subr.mxu0 0.0
    %1400 = vmatpush1.msra.mxu0 0.0
    %1401 = vmatprep.subr.mxu0 0.0
    %1402 = vmatpush1.msra.mxu0 0.0
    %1403 = vmatprep.subr.mxu0 0.0
    %1404 = vmatpush1.msra.mxu0 0.0
    %1405 = vmatprep.subr.mxu0 0.0
    %1406 = vmatpush1.msra.mxu0 0.0
    %1407 = vmatprep.subr.mxu0 0.0
    %1408 = vmatpush1.msra.mxu0 0.0
    %1409 = vmatprep.subr.mxu0 0.0
    %1410 = vmatpush1.msra.mxu0 0.0
    %1411 = vmatprep.subr.mxu0 0.0
    %1412 = vmatpush1.msra.mxu0 0.0
    %1413 = vmatprep.subr.mxu0 0.0
    %1414 = vmatpush1.msra.mxu0 0.0
    %1415 = vmatprep.subr.mxu0 0.0
    %1416 = vmatpush1.msra.mxu0 0.0
    %1417 = vmatprep.subr.mxu0 0.0
    %1418 = vmatpush1.msra.mxu0 0.0
    %1419 = vmatprep.subr.mxu0 0.0
    %1420 = vmatpush1.msra.mxu0 0.0
    %1421 = vmatprep.subr.mxu0 0.0
    %1422 = vmatpush1.msra.mxu0 0.0
    %1423 = vmatprep.subr.mxu0 0.0
    %1424 = vmatpush1.msra.mxu0 0.0
    %1425 = vmatprep.subr.mxu0 0.0
    %1426 = vmatpush1.msra.mxu0 0.0
    %1427 = vmatprep.subr.mxu0 0.0
    %1428 = vmatpush1.msra.mxu0 0.0
    %1429 = vmatprep.subr.mxu0 0.0
    %1430 = vmatpush1.msra.mxu0 0.0
    %1431 = vmatprep.subr.mxu0 0.0
    %1432 = vmatpush1.msra.mxu0 0.0
    %1433 = vmatprep.subr.mxu0 0.0
    %1434 = vmatpush1.msra.mxu0 0.0
    %1435 = vmatprep.subr.mxu0 0.0
    %1436 = vmatpush1.msra.mxu0 0.0
    %1437 = vmatprep.subr.mxu0 0.0
    %1438 = vmatpush1.msra.mxu0 0.0
    %1439 = vmatprep.subr.mxu0 0.0
    %1440 = vmatpush1.msra.mxu0 0.0
    %1441 = vmatprep.subr.mxu0 0.0
    %1442 = vmatpush1.msra.mxu0 0.0
    %1443 = vmatprep.subr.mxu0 0.0
    %1444 = vmatpush1.msra.mxu0 0.0
    %1445 = vmatprep.subr.mxu0 0.0
    %1446 = vmatpush1.msra.mxu0 0.0
    %1447 = vmatprep.subr.mxu0 0.0
    %1448 = vmatpush1.msra.mxu0 0.0
    %1449 = vmatprep.subr.mxu0 0.0
    %1450 = vmatpush1.msra.mxu0 0.0
    %1451 = vmatprep.mubr.f32.mxu0 0.0
    %1452 = vmatmul.mubr.f32.gmra.mrb[0].mxu0 %v1376
    %v1453 = vpop.f32.mrb[0].mxu0
    %v1454 = vadd.f32 0.0, %v1453
    %v1455 = vpop.f32.mrb[0].mxu0
    %1456 = vmatprep.mubr.f32.mxu0 0.0
    %1457 = vmatmul.mubr.f32.gmra.mrb[0].mxu0 %v1379
    %v1458 = vpop.f32.mrb[0].mxu0
    %v1459 = vadd.f32 0.0, %v1458
    %v1460 = vpop.f32.mrb[0].mxu0
    %1461 = vmatprep.mubr.f32.mxu0 0.0
    %1462 = vmatmul.mubr.f32.gmra.mrb[0].mxu0 %v1382
    %v1463 = vpop.f32.mrb[0].mxu0
    %v1464 = vadd.f32 0.0, %v1463
    %v1465 = vpop.f32.mrb[0].mxu0
    %1466 = vmatprep.mubr.f32.mxu0 0.0
    %1467 = vmatmul.mubr.f32.gmra.mrb[0].mxu0 %v1385
    %v1468 = vpop.f32.mrb[0].mxu0
    %v1469 = vadd.f32 0.0, %v1468
    %v1470 = vpop.f32.mrb[0].mxu0
    %1471 = vdwg.mxu0
    %v1472 = vadd.f32 %v1353, %v1454
    %v1473 = vadd.f32 %v1358, %v1459
    %v1474 = vadd.f32 %v1363, %v1464
    %v1475 = vadd.f32 %v1368, %v1469
    %v1476 = vld [vmem:[%s43] sm:$0x1]
    %v1478 = vlaneseq
    %v1479 = vshrl.u32 %v1478, 7
    %v1480 = vsub.s32 0, %v1479
    %v1481 = vrot.slane %v1476, %v1480
    %v1483 = vadd.f32 %v1472, %v1481
    %v1484 = vadd.f32 %v1473, %v1481
    %v1485 = vadd.f32 %v1474, %v1481
    %v1486 = vadd.f32 %v1475, %v1481
    %v1487 = vxor.u32 %v1483, 2147483648
    %v1488 = vxor.u32 %v1484, 2147483648
    %v1489 = vxor.u32 %v1485, 2147483648
    %v1490 = vxor.u32 %v1486, 2147483648
    %v1491 = vmul.f32 %v1487, 1.442695
    %v1492 = vpow.pop %v1491
    %v1493 = vmul.f32 %v1488, 1.442695
    %v1494 = vpow.pop %v1493
    %v1495 = vmul.f32 %v1489, 1.442695
    %v1496 = vpow.pop %v1495
    %v1497 = vmul.f32 %v1490, 1.442695
    %v1498 = vpow.pop %v1497
    %v1499 = vadd.f32 %v1492, 1.0
    %v1500 = vadd.f32 %v1494, 1.0
    %v1501 = vadd.f32 %v1496, 1.0
    %v1502 = vadd.f32 %v1498, 1.0
    %v1503 = vrcp.pop %v1499
    %v1504 = vmul.f32 1.0, %v1503
    %v1505 = vrcp.pop %v1500
    %v1506 = vmul.f32 1.0, %v1505
    %v1507 = vrcp.pop %v1501
    %v1508 = vmul.f32 1.0, %v1507
    %v1509 = vrcp.pop %v1502
    %v1510 = vmul.f32 1.0, %v1509
    %v1511 = vmul.f32 %v1483, %v1504
    %v1512 = vmul.f32 %v1484, %v1506
    %v1513 = vmul.f32 %v1485, %v1508
    %v1514 = vmul.f32 %v1486, %v1510
    %v1515 = vld [vmem:[%s45] sm:$0xff]
    %v1516 = vld [vmem:[%s45 + $0x8] sm:$0xff]
    %v1517 = vld [vmem:[%s45 + $0x10] sm:$0xff]
    %v1518 = vld [vmem:[%s45 + $0x18] sm:$0xff]
    %v1519 = vld [vmem:[%s47] sm:$0x1]
    %v1521 = vlaneseq
    %v1522 = vshrl.u32 %v1521, 7
    %v1523 = vsub.s32 0, %v1522
    %v1524 = vrot.slane %v1519, %v1523
    %1526 = vmatprep.subr.mxu0 0.0
    %1527 = vmatpush1.msra.mxu0 %v1515
    %1528 = vmatprep.subr.mxu0 0.0
    %1529 = vmatpush1.msra.mxu0 %v1516
    %1530 = vmatprep.subr.mxu0 0.0
    %1531 = vmatpush1.msra.mxu0 %v1517
    %1532 = vmatprep.subr.mxu0 0.0
    %1533 = vmatpush1.msra.mxu0 %v1518
    %1534 = vmatprep.subr.mxu0 0.0
    %1535 = vmatpush1.msra.mxu0 0.0
    %1536 = vmatprep.subr.mxu0 0.0
    %1537 = vmatpush1.msra.mxu0 0.0
    %1538 = vmatprep.subr.mxu0 0.0
    %1539 = vmatpush1.msra.mxu0 0.0
    %1540 = vmatprep.subr.mxu0 0.0
    %1541 = vmatpush1.msra.mxu0 0.0
    %1542 = vmatprep.subr.mxu0 0.0
    %1543 = vmatpush1.msra.mxu0 0.0
    %1544 = vmatprep.subr.mxu0 0.0
    %1545 = vmatpush1.msra.mxu0 0.0
    %1546 = vmatprep.subr.mxu0 0.0
    %1547 = vmatpush1.msra.mxu0 0.0
    %1548 = vmatprep.subr.mxu0 0.0
    %1549 = vmatpush1.msra.mxu0 0.0
    %1550 = vmatprep.subr.mxu0 0.0
    %1551 = vmatpush1.msra.mxu0 0.0
    %1552 = vmatprep.subr.mxu0 0.0
    %1553 = vmatpush1.msra.mxu0 0.0
    %1554 = vmatprep.subr.mxu0 0.0
    %1555 = vmatpush1.msra.mxu0 0.0
    %1556 = vmatprep.subr.mxu0 0.0
    %1557 = vmatpush1.msra.mxu0 0.0
    %1558 = vmatprep.subr.mxu0 0.0
    %1559 = vmatpush1.msra.mxu0 0.0
    %1560 = vmatprep.subr.mxu0 0.0
    %1561 = vmatpush1.msra.mxu0 0.0
    %1562 = vmatprep.subr.mxu0 0.0
    %1563 = vmatpush1.msra.mxu0 0.0
    %1564 = vmatprep.subr.mxu0 0.0
    %1565 = vmatpush1.msra.mxu0 0.0
    %1566 = vmatprep.subr.mxu0 0.0
    %1567 = vmatpush1.msra.mxu0 0.0
    %1568 = vmatprep.subr.mxu0 0.0
    %1569 = vmatpush1.msra.mxu0 0.0
    %1570 = vmatprep.subr.mxu0 0.0
    %1571 = vmatpush1.msra.mxu0 0.0
    %1572 = vmatprep.subr.mxu0 0.0
    %1573 = vmatpush1.msra.mxu0 0.0
    %1574 = vmatprep.subr.mxu0 0.0
    %1575 = vmatpush1.msra.mxu0 0.0
    %1576 = vmatprep.subr.mxu0 0.0
    %1577 = vmatpush1.msra.mxu0 0.0
    %1578 = vmatprep.subr.mxu0 0.0
    %1579 = vmatpush1.msra.mxu0 0.0
    %1580 = vmatprep.subr.mxu0 0.0
    %1581 = vmatpush1.msra.mxu0 0.0
    %1582 = vmatprep.subr.mxu0 0.0
    %1583 = vmatpush1.msra.mxu0 0.0
    %1584 = vmatprep.subr.mxu0 0.0
    %1585 = vmatpush1.msra.mxu0 0.0
    %1586 = vmatprep.subr.mxu0 0.0
    %1587 = vmatpush1.msra.mxu0 0.0
    %1588 = vmatprep.subr.mxu0 0.0
    %1589 = vmatpush1.msra.mxu0 0.0
    %1590 = vmatprep.mubr.f32.mxu0 0.0
    %1591 = vmatmul.mubr.f32.gmra.mrb[0].mxu0 %v853
    %v1592 = vpop.f32.mrb[0].mxu0
    %v1593 = vadd.f32 %v1524, %v1592
    %v1594 = vpop.f32.mrb[0].mxu0
    %1595 = vmatprep.mubr.f32.mxu0 0.0
    %1596 = vmatmul.mubr.f32.gmra.mrb[0].mxu0 %v856
    %v1597 = vpop.f32.mrb[0].mxu0
    %v1598 = vadd.f32 %v1524, %v1597
    %v1599 = vpop.f32.mrb[0].mxu0
    %1600 = vdwg.mxu0
    %v1601 = vxor.u32 %v1593, 2147483648
    %v1602 = vxor.u32 %v1598, 2147483648
    %v1603 = vmul.f32 %v1601, 1.442695
    %v1604 = vpow.pop %v1603
    %v1605 = vmul.f32 %v1602, 1.442695
    %v1606 = vpow.pop %v1605
    %v1607 = vadd.f32 %v1604, 1.0
    %v1608 = vadd.f32 %v1606, 1.0
    %v1609 = vrcp.pop %v1607
    %v1610 = vmul.f32 1.0, %v1609
    %v1611 = vrcp.pop %v1608
    %v1612 = vmul.f32 1.0, %v1611
    %v1613 = vmul.f32 %v1593, %v1610
    %v1614 = vmul.f32 %v1598, %v1612
    %1615 = vmatprep.subr.mxu0 0.0
    %1616 = vmatpush1.msra.mxu0 %v1613
    %1617 = vmatprep.subr.mxu0 0.0
    %1618 = vmatpush1.msra.mxu0 %v1614
    %1619 = vmatprep.subr.mxu0 0.0
    %1620 = vmatpush1.msra.mxu0 0.0
    %1621 = vmatprep.subr.mxu0 0.0
    %1622 = vmatpush1.msra.mxu0 0.0
    %1623 = vmatprep.subr.mxu0 0.0
    %1624 = vmatpush1.msra.mxu0 0.0
    %1625 = vmatprep.subr.mxu0 0.0
    %1626 = vmatpush1.msra.mxu0 0.0
    %1627 = vmatprep.subr.mxu0 0.0
    %1628 = vmatpush1.msra.mxu0 0.0
    %1629 = vmatprep.subr.mxu0 0.0
    %1630 = vmatpush1.msra.mxu0 0.0
    %1631 = vmatprep.subr.mxu0 0.0
    %1632 = vmatpush1.msra.mxu0 0.0
    %1633 = vmatprep.subr.mxu0 0.0
    %1634 = vmatpush1.msra.mxu0 0.0
    %1635 = vmatprep.subr.mxu0 0.0
    %1636 = vmatpush1.msra.mxu0 0.0
    %1637 = vmatprep.subr.mxu0 0.0
    %1638 = vmatpush1.msra.mxu0 0.0
    %1639 = vmatprep.subr.mxu0 0.0
    %1640 = vmatpush1.msra.mxu0 0.0
    %1641 = vmatprep.subr.mxu0 0.0
    %1642 = vmatpush1.msra.mxu0 0.0
    %1643 = vmatprep.subr.mxu0 0.0
    %1644 = vmatpush1.msra.mxu0 0.0
    %1645 = vmatprep.subr.mxu0 0.0
    %1646 = vmatpush1.msra.mxu0 0.0
    %1647 = vmatprep.subr.mxu0 0.0
    %1648 = vmatpush1.msra.mxu0 0.0
    %1649 = vmatprep.subr.mxu0 0.0
    %1650 = vmatpush1.msra.mxu0 0.0
    %1651 = vmatprep.subr.mxu0 0.0
    %1652 = vmatpush1.msra.mxu0 0.0
    %1653 = vmatprep.subr.mxu0 0.0
    %1654 = vmatpush1.msra.mxu0 0.0
    %1655 = vmatprep.subr.mxu0 0.0
    %1656 = vmatpush1.msra.mxu0 0.0
    %1657 = vmatprep.subr.mxu0 0.0
    %1658 = vmatpush1.msra.mxu0 0.0
    %1659 = vmatprep.subr.mxu0 0.0
    %1660 = vmatpush1.msra.mxu0 0.0
    %1661 = vmatprep.subr.mxu0 0.0
    %1662 = vmatpush1.msra.mxu0 0.0
    %1663 = vmatprep.subr.mxu0 0.0
    %1664 = vmatpush1.msra.mxu0 0.0
    %1665 = vmatprep.subr.mxu0 0.0
    %1666 = vmatpush1.msra.mxu0 0.0
    %1667 = vmatprep.subr.mxu0 0.0
    %1668 = vmatpush1.msra.mxu0 0.0
    %1669 = vmatprep.subr.mxu0 0.0
    %1670 = vmatpush1.msra.mxu0 0.0
    %1671 = vmatprep.subr.mxu0 0.0
    %1672 = vmatpush1.msra.mxu0 0.0
    %1673 = vmatprep.subr.mxu0 0.0
    %1674 = vmatpush1.msra.mxu0 0.0
    %1675 = vmatprep.subr.mxu0 0.0
    %1676 = vmatpush1.msra.mxu0 0.0
    %1677 = vmatprep.subr.mxu0 0.0
    %1678 = vmatpush1.msra.mxu0 0.0
    %1679 = vmatprep.mubr.f32.mxu0 0.0
    %1680 = vmatmul.mubr.f32.gmra.mrb[0].mxu0 %v978
    %v1681 = vpop.f32.mrb[0].mxu0
    %v1682 = vadd.f32 0.0, %v1681
    %v1683 = vpop.f32.mrb[0].mxu0
    %1684 = vmatprep.mubr.f32.mxu0 0.0
    %1685 = vmatmul.mubr.f32.gmra.mrb[0].mxu0 %v981
    %v1686 = vpop.f32.mrb[0].mxu0
    %v1687 = vadd.f32 0.0, %v1686
    %v1688 = vpop.f32.mrb[0].mxu0
    %1689 = vmatprep.mubr.f32.mxu0 0.0
    %1690 = vmatmul.mubr.f32.gmra.mrb[0].mxu0 %v984
    %v1691 = vpop.f32.mrb[0].mxu0
    %v1692 = vadd.f32 0.0, %v1691
    %v1693 = vpop.f32.mrb[0].mxu0
    %1694 = vmatprep.mubr.f32.mxu0 0.0
    %1695 = vmatmul.mubr.f32.gmra.mrb[0].mxu0 %v987
    %v1696 = vpop.f32.mrb[0].mxu0
    %v1697 = vadd.f32 0.0, %v1696
    %v1698 = vpop.f32.mrb[0].mxu0
    %1699 = vdwg.mxu0
    %v1700 = vmul.f32 %v1682, %v1511
    %v1701 = vmul.f32 %v1687, %v1512
    %v1702 = vmul.f32 %v1692, %v1513
    %v1703 = vmul.f32 %v1697, %v1514
    %1704 = vxpose.xlu0.b32.start [1/16] %v176, 128
    %1705 = vxpose.xlu0.b32.cont [2/16] %v177, 128
    %1706 = vxpose.xlu0.b32.cont [3/16] %v178, 128
    %1707 = vxpose.xlu0.b32.cont [4/16] %v179, 128
    %1708 = vxpose.xlu0.b32.cont [5/16] 0.0, 128
    %1709 = vxpose.xlu0.b32.cont [6/16] 0.0, 128
    %1710 = vxpose.xlu0.b32.cont [7/16] 0.0, 128
    %1711 = vxpose.xlu0.b32.cont [8/16] 0.0, 128
    %1712 = vxpose.xlu0.b32.cont [9/16] 0.0, 128
    %1713 = vxpose.xlu0.b32.cont [10/16] 0.0, 128
    %1714 = vxpose.xlu0.b32.cont [11/16] 0.0, 128
    %1715 = vxpose.xlu0.b32.cont [12/16] 0.0, 128
    %1716 = vxpose.xlu0.b32.cont [13/16] 0.0, 128
    %1717 = vxpose.xlu0.b32.cont [14/16] 0.0, 128
    %1718 = vxpose.xlu0.b32.cont [15/16] 0.0, 128
    %1719 = vxpose.xlu0.b32.end [16/16] 0.0, 128
    %v1720 = vpop.trf.xlu0
    %v1721 = vpop.trf.xlu0
    %v1722 = vpop.trf.xlu0
    %v1723 = vpop.trf.xlu0
    %v1724 = vpop.trf.xlu0
    %v1725 = vpop.trf.xlu0
    %v1726 = vpop.trf.xlu0
    %v1727 = vpop.trf.xlu0
    %v1728 = vpop.trf.xlu0
    %v1729 = vpop.trf.xlu0
    %v1730 = vpop.trf.xlu0
    %v1731 = vpop.trf.xlu0
    %v1732 = vpop.trf.xlu0
    %v1733 = vpop.trf.xlu0
    %v1734 = vpop.trf.xlu0
    %v1735 = vpop.trf.xlu0
    %v1737 = vsel %vm198, %v1720, 0
    %v1740 = vsel %vm198, %v1721, 0
    %1742 = vmatprep.subr.mxu0 0.0
    %1743 = vmatpush1.msra.mxu0 %v1700
    %1744 = vmatprep.subr.mxu0 0.0
    %1745 = vmatpush1.msra.mxu0 %v1701
    %1746 = vmatprep.subr.mxu0 0.0
    %1747 = vmatpush1.msra.mxu0 %v1702
    %1748 = vmatprep.subr.mxu0 0.0
    %1749 = vmatpush1.msra.mxu0 %v1703
    %1750 = vmatprep.subr.mxu0 0.0
    %1751 = vmatpush1.msra.mxu0 0.0
    %1752 = vmatprep.subr.mxu0 0.0
    %1753 = vmatpush1.msra.mxu0 0.0
    %1754 = vmatprep.subr.mxu0 0.0
    %1755 = vmatpush1.msra.mxu0 0.0
    %1756 = vmatprep.subr.mxu0 0.0
    %1757 = vmatpush1.msra.mxu0 0.0
    %1758 = vmatprep.subr.mxu0 0.0
    %1759 = vmatpush1.msra.mxu0 0.0
    %1760 = vmatprep.subr.mxu0 0.0
    %1761 = vmatpush1.msra.mxu0 0.0
    %1762 = vmatprep.subr.mxu0 0.0
    %1763 = vmatpush1.msra.mxu0 0.0
    %1764 = vmatprep.subr.mxu0 0.0
    %1765 = vmatpush1.msra.mxu0 0.0
    %1766 = vmatprep.subr.mxu0 0.0
    %1767 = vmatpush1.msra.mxu0 0.0
    %1768 = vmatprep.subr.mxu0 0.0
    %1769 = vmatpush1.msra.mxu0 0.0
    %1770 = vmatprep.subr.mxu0 0.0
    %1771 = vmatpush1.msra.mxu0 0.0
    %1772 = vmatprep.subr.mxu0 0.0
    %1773 = vmatpush1.msra.mxu0 0.0
    %1774 = vmatprep.subr.mxu0 0.0
    %1775 = vmatpush1.msra.mxu0 0.0
    %1776 = vmatprep.subr.mxu0 0.0
    %1777 = vmatpush1.msra.mxu0 0.0
    %1778 = vmatprep.subr.mxu0 0.0
    %1779 = vmatpush1.msra.mxu0 0.0
    %1780 = vmatprep.subr.mxu0 0.0
    %1781 = vmatpush1.msra.mxu0 0.0
    %1782 = vmatprep.subr.mxu0 0.0
    %1783 = vmatpush1.msra.mxu0 0.0
    %1784 = vmatprep.subr.mxu0 0.0
    %1785 = vmatpush1.msra.mxu0 0.0
    %1786 = vmatprep.subr.mxu0 0.0
    %1787 = vmatpush1.msra.mxu0 0.0
    %1788 = vmatprep.subr.mxu0 0.0
    %1789 = vmatpush1.msra.mxu0 0.0
    %1790 = vmatprep.subr.mxu0 0.0
    %1791 = vmatpush1.msra.mxu0 0.0
    %1792 = vmatprep.subr.mxu0 0.0
    %1793 = vmatpush1.msra.mxu0 0.0
    %1794 = vmatprep.subr.mxu0 0.0
    %1795 = vmatpush1.msra.mxu0 0.0
    %1796 = vmatprep.subr.mxu0 0.0
    %1797 = vmatpush1.msra.mxu0 0.0
    %1798 = vmatprep.subr.mxu0 0.0
    %1799 = vmatpush1.msra.mxu0 0.0
    %1800 = vmatprep.subr.mxu0 0.0
    %1801 = vmatpush1.msra.mxu0 0.0
    %1802 = vmatprep.subr.mxu0 0.0
    %1803 = vmatpush1.msra.mxu0 0.0
    %1804 = vmatprep.subr.mxu0 0.0
    %1805 = vmatpush1.msra.mxu0 0.0
    %1806 = vmatprep.mubr.f32.mxu0 0.0
    %1807 = vmatmul.mubr.f32.gmra.mrb[0].mxu0 %v1737
    %v1808 = vpop.f32.mrb[0].mxu0
    %v1809 = vadd.f32 0.0, %v1808
    %v1810 = vpop.f32.mrb[0].mxu0
    %1811 = vmatprep.mubr.f32.mxu0 0.0
    %1812 = vmatmul.mubr.f32.gmra.mrb[0].mxu0 %v1740
    %v1813 = vpop.f32.mrb[0].mxu0
    %v1814 = vadd.f32 0.0, %v1813
    %v1815 = vpop.f32.mrb[0].mxu0
    %1816 = vdwg.mxu0
    %1817 = vxpose.xlu0.b32.start [1/16] %v182, 128
    %1818 = vxpose.xlu0.b32.cont [2/16] %v183, 128
    %1819 = vxpose.xlu0.b32.cont [3/16] 0.0, 128
    %1820 = vxpose.xlu0.b32.cont [4/16] 0.0, 128
    %1821 = vxpose.xlu0.b32.cont [5/16] 0.0, 128
    %1822 = vxpose.xlu0.b32.cont [6/16] 0.0, 128
    %1823 = vxpose.xlu0.b32.cont [7/16] 0.0, 128
    %1824 = vxpose.xlu0.b32.cont [8/16] 0.0, 128
    %1825 = vxpose.xlu0.b32.cont [9/16] 0.0, 128
    %1826 = vxpose.xlu0.b32.cont [10/16] 0.0, 128
    %1827 = vxpose.xlu0.b32.cont [11/16] 0.0, 128
    %1828 = vxpose.xlu0.b32.cont [12/16] 0.0, 128
    %1829 = vxpose.xlu0.b32.cont [13/16] 0.0, 128
    %1830 = vxpose.xlu0.b32.cont [14/16] 0.0, 128
    %1831 = vxpose.xlu0.b32.cont [15/16] 0.0, 128
    %1832 = vxpose.xlu0.b32.end [16/16] 0.0, 128
    %v1833 = vpop.trf.xlu0
    %v1834 = vpop.trf.xlu0
    %v1835 = vpop.trf.xlu0
    %v1836 = vpop.trf.xlu0
    %v1837 = vpop.trf.xlu0
    %v1838 = vpop.trf.xlu0
    %v1839 = vpop.trf.xlu0
    %v1840 = vpop.trf.xlu0
    %v1841 = vpop.trf.xlu0
    %v1842 = vpop.trf.xlu0
    %v1843 = vpop.trf.xlu0
    %v1844 = vpop.trf.xlu0
    %v1845 = vpop.trf.xlu0
    %v1846 = vpop.trf.xlu0
    %v1847 = vpop.trf.xlu0
    %v1848 = vpop.trf.xlu0
    %v1850 = vsel %vm468, %v1833, 0
    %1852 = vmatprep.subr.mxu0 0.0
    %1853 = vmatpush1.msra.mxu0 %v1809
    %1854 = vmatprep.subr.mxu0 0.0
    %1855 = vmatpush1.msra.mxu0 %v1814
    %1856 = vmatprep.subr.mxu0 0.0
    %1857 = vmatpush1.msra.mxu0 0.0
    %1858 = vmatprep.subr.mxu0 0.0
    %1859 = vmatpush1.msra.mxu0 0.0
    %1860 = vmatprep.subr.mxu0 0.0
    %1861 = vmatpush1.msra.mxu0 0.0
    %1862 = vmatprep.subr.mxu0 0.0
    %1863 = vmatpush1.msra.mxu0 0.0
    %1864 = vmatprep.subr.mxu0 0.0
    %1865 = vmatpush1.msra.mxu0 0.0
    %1866 = vmatprep.subr.mxu0 0.0
    %1867 = vmatpush1.msra.mxu0 0.0
    %1868 = vmatprep.subr.mxu0 0.0
    %1869 = vmatpush1.msra.mxu0 0.0
    %1870 = vmatprep.subr.mxu0 0.0
    %1871 = vmatpush1.msra.mxu0 0.0
    %1872 = vmatprep.subr.mxu0 0.0
    %1873 = vmatpush1.msra.mxu0 0.0
    %1874 = vmatprep.subr.mxu0 0.0
    %1875 = vmatpush1.msra.mxu0 0.0
    %1876 = vmatprep.subr.mxu0 0.0
    %1877 = vmatpush1.msra.mxu0 0.0
    %1878 = vmatprep.subr.mxu0 0.0
    %1879 = vmatpush1.msra.mxu0 0.0
    %1880 = vmatprep.subr.mxu0 0.0
    %1881 = vmatpush1.msra.mxu0 0.0
    %1882 = vmatprep.subr.mxu0 0.0
    %1883 = vmatpush1.msra.mxu0 0.0
    %1884 = vmatprep.subr.mxu0 0.0
    %1885 = vmatpush1.msra.mxu0 0.0
    %1886 = vmatprep.subr.mxu0 0.0
    %1887 = vmatpush1.msra.mxu0 0.0
    %1888 = vmatprep.subr.mxu0 0.0
    %1889 = vmatpush1.msra.mxu0 0.0
    %1890 = vmatprep.subr.mxu0 0.0
    %1891 = vmatpush1.msra.mxu0 0.0
    %1892 = vmatprep.subr.mxu0 0.0
    %1893 = vmatpush1.msra.mxu0 0.0
    %1894 = vmatprep.subr.mxu0 0.0
    %1895 = vmatpush1.msra.mxu0 0.0
    %1896 = vmatprep.subr.mxu0 0.0
    %1897 = vmatpush1.msra.mxu0 0.0
    %1898 = vmatprep.subr.mxu0 0.0
    %1899 = vmatpush1.msra.mxu0 0.0
    %1900 = vmatprep.subr.mxu0 0.0
    %1901 = vmatpush1.msra.mxu0 0.0
    %1902 = vmatprep.subr.mxu0 0.0
    %1903 = vmatpush1.msra.mxu0 0.0
    %1904 = vmatprep.subr.mxu0 0.0
    %1905 = vmatpush1.msra.mxu0 0.0
    %1906 = vmatprep.subr.mxu0 0.0
    %1907 = vmatpush1.msra.mxu0 0.0
    %1908 = vmatprep.subr.mxu0 0.0
    %1909 = vmatpush1.msra.mxu0 0.0
    %1910 = vmatprep.subr.mxu0 0.0
    %1911 = vmatpush1.msra.mxu0 0.0
    %1912 = vmatprep.subr.mxu0 0.0
    %1913 = vmatpush1.msra.mxu0 0.0
    %1914 = vmatprep.subr.mxu0 0.0
    %1915 = vmatpush1.msra.mxu0 0.0
    %1916 = vmatprep.mubr.f32.mxu0 0.0
    %1917 = vmatmul.mubr.f32.gmra.mrb[0].mxu0 %v1850
    %v1918 = vpop.f32.mrb[0].mxu0
    %v1919 = vadd.f32 0.0, %v1918
    %v1920 = vpop.f32.mrb[0].mxu0
    %1921 = vdwg.mxu0
    %1923 = vset.pattern.permute.xlu0 0
    %1924 = vperm.xlu0 %1923, %v184
    %v1925 = vpop.permute.xlu0 %1924
    %v1927 = vmul.f32 %v1919, %v1925
    %vm1928 = vcmask 15360
    %v1930 = vsel %vm1928, %v182, 0
    %v1933 = vsel %vm1928, %v183, 0
    %vm1935 = vcmask 1041408
    %v1937 = vsel %vm1935, %v1927, 0
    %1939 = vmatprep.subr.mxu0 0.0
    %1940 = vmatpush1.msra.mxu0 %v1937
    %1941 = vmatprep.subr.mxu0 0.0
    %1942 = vmatpush1.msra.mxu0 0.0
    %1943 = vmatprep.subr.mxu0 0.0
    %1944 = vmatpush1.msra.mxu0 0.0
    %1945 = vmatprep.subr.mxu0 0.0
    %1946 = vmatpush1.msra.mxu0 0.0
    %1947 = vmatprep.subr.mxu0 0.0
    %1948 = vmatpush1.msra.mxu0 0.0
    %1949 = vmatprep.subr.mxu0 0.0
    %1950 = vmatpush1.msra.mxu0 0.0
    %1951 = vmatprep.subr.mxu0 0.0
    %1952 = vmatpush1.msra.mxu0 0.0
    %1953 = vmatprep.subr.mxu0 0.0
    %1954 = vmatpush1.msra.mxu0 0.0
    %1955 = vmatprep.subr.mxu0 0.0
    %1956 = vmatpush1.msra.mxu0 0.0
    %1957 = vmatprep.subr.mxu0 0.0
    %1958 = vmatpush1.msra.mxu0 0.0
    %1959 = vmatprep.subr.mxu0 0.0
    %1960 = vmatpush1.msra.mxu0 0.0
    %1961 = vmatprep.subr.mxu0 0.0
    %1962 = vmatpush1.msra.mxu0 0.0
    %1963 = vmatprep.subr.mxu0 0.0
    %1964 = vmatpush1.msra.mxu0 0.0
    %1965 = vmatprep.subr.mxu0 0.0
    %1966 = vmatpush1.msra.mxu0 0.0
    %1967 = vmatprep.subr.mxu0 0.0
    %1968 = vmatpush1.msra.mxu0 0.0
    %1969 = vmatprep.subr.mxu0 0.0
    %1970 = vmatpush1.msra.mxu0 0.0
    %1971 = vmatprep.subr.mxu0 0.0
    %1972 = vmatpush1.msra.mxu0 0.0
    %1973 = vmatprep.subr.mxu0 0.0
    %1974 = vmatpush1.msra.mxu0 0.0
    %1975 = vmatprep.subr.mxu0 0.0
    %1976 = vmatpush1.msra.mxu0 0.0
    %1977 = vmatprep.subr.mxu0 0.0
    %1978 = vmatpush1.msra.mxu0 0.0
    %1979 = vmatprep.subr.mxu0 0.0
    %1980 = vmatpush1.msra.mxu0 0.0
    %1981 = vmatprep.subr.mxu0 0.0
    %1982 = vmatpush1.msra.mxu0 0.0
    %1983 = vmatprep.subr.mxu0 0.0
    %1984 = vmatpush1.msra.mxu0 0.0
    %1985 = vmatprep.subr.mxu0 0.0
    %1986 = vmatpush1.msra.mxu0 0.0
    %1987 = vmatprep.subr.mxu0 0.0
    %1988 = vmatpush1.msra.mxu0 0.0
    %1989 = vmatprep.subr.mxu0 0.0
    %1990 = vmatpush1.msra.mxu0 0.0
    %1991 = vmatprep.subr.mxu0 0.0
    %1992 = vmatpush1.msra.mxu0 0.0
    %1993 = vmatprep.subr.mxu0 0.0
    %1994 = vmatpush1.msra.mxu0 0.0
    %1995 = vmatprep.subr.mxu0 0.0
    %1996 = vmatpush1.msra.mxu0 0.0
    %1997 = vmatprep.subr.mxu0 0.0
    %1998 = vmatpush1.msra.mxu0 0.0
    %1999 = vmatprep.subr.mxu0 0.0
    %2000 = vmatpush1.msra.mxu0 0.0
    %2001 = vmatprep.subr.mxu0 0.0
    %2002 = vmatpush1.msra.mxu0 0.0
    %2003 = vmatprep.mubr.f32.mxu0 0.0
    %2004 = vmatmul.mubr.f32.gmra.mrb[0].mxu0 %v1930
    %v2005 = vpop.f32.mrb[0].mxu0
    %v2006 = vadd.f32 0.0, %v2005
    %v2007 = vpop.f32.mrb[0].mxu0
    %2008 = vmatprep.mubr.f32.mxu0 0.0
    %2009 = vmatmul.mubr.f32.gmra.mrb[0].mxu0 %v1933
    %v2010 = vpop.f32.mrb[0].mxu0
    %v2011 = vadd.f32 0.0, %v2010
    %v2012 = vpop.f32.mrb[0].mxu0
    %2013 = vdwg.mxu0
    %v2014 = vld [vmem:[%s57] sm:$0x1]
    %v2016 = vlaneseq
    %v2017 = vshrl.u32 %v2016, 7
    %v2018 = vsub.s32 0, %v2017
    %v2019 = vrot.slane %v2014, %v2018
    %v2021 = vmul.f32 %v2006, %v2019
    %v2022 = vmul.f32 %v2011, %v2019
    %v2023 = vsub.f32 %v1809, %v2021
    %v2024 = vsub.f32 %v1814, %v2022
    %v2025 = vmul.f32 %v2023, %v2023
    %v2026 = vmul.f32 %v2024, %v2024
    %2027 = vmatprep.subr.mxu0 0.0
    %2028 = vmatpush1.msra.mxu0 %v2025
    %2029 = vmatprep.subr.mxu0 0.0
    %2030 = vmatpush1.msra.mxu0 %v2026
    %2031 = vmatprep.subr.mxu0 0.0
    %2032 = vmatpush1.msra.mxu0 0.0
    %2033 = vmatprep.subr.mxu0 0.0
    %2034 = vmatpush1.msra.mxu0 0.0
    %2035 = vmatprep.subr.mxu0 0.0
    %2036 = vmatpush1.msra.mxu0 0.0
    %2037 = vmatprep.subr.mxu0 0.0
    %2038 = vmatpush1.msra.mxu0 0.0
    %2039 = vmatprep.subr.mxu0 0.0
    %2040 = vmatpush1.msra.mxu0 0.0
    %2041 = vmatprep.subr.mxu0 0.0
    %2042 = vmatpush1.msra.mxu0 0.0
    %2043 = vmatprep.subr.mxu0 0.0
    %2044 = vmatpush1.msra.mxu0 0.0
    %2045 = vmatprep.subr.mxu0 0.0
    %2046 = vmatpush1.msra.mxu0 0.0
    %2047 = vmatprep.subr.mxu0 0.0
    %2048 = vmatpush1.msra.mxu0 0.0
    %2049 = vmatprep.subr.mxu0 0.0
    %2050 = vmatpush1.msra.mxu0 0.0
    %2051 = vmatprep.subr.mxu0 0.0
    %2052 = vmatpush1.msra.mxu0 0.0
    %2053 = vmatprep.subr.mxu0 0.0
    %2054 = vmatpush1.msra.mxu0 0.0
    %2055 = vmatprep.subr.mxu0 0.0
    %2056 = vmatpush1.msra.mxu0 0.0
    %2057 = vmatprep.subr.mxu0 0.0
    %2058 = vmatpush1.msra.mxu0 0.0
    %2059 = vmatprep.subr.mxu0 0.0
    %2060 = vmatpush1.msra.mxu0 0.0
    %2061 = vmatprep.subr.mxu0 0.0
    %2062 = vmatpush1.msra.mxu0 0.0
    %2063 = vmatprep.subr.mxu0 0.0
    %2064 = vmatpush1.msra.mxu0 0.0
    %2065 = vmatprep.subr.mxu0 0.0
    %2066 = vmatpush1.msra.mxu0 0.0
    %2067 = vmatprep.subr.mxu0 0.0
    %2068 = vmatpush1.msra.mxu0 0.0
    %2069 = vmatprep.subr.mxu0 0.0
    %2070 = vmatpush1.msra.mxu0 0.0
    %2071 = vmatprep.subr.mxu0 0.0
    %2072 = vmatpush1.msra.mxu0 0.0
    %2073 = vmatprep.subr.mxu0 0.0
    %2074 = vmatpush1.msra.mxu0 0.0
    %2075 = vmatprep.subr.mxu0 0.0
    %2076 = vmatpush1.msra.mxu0 0.0
    %2077 = vmatprep.subr.mxu0 0.0
    %2078 = vmatpush1.msra.mxu0 0.0
    %2079 = vmatprep.subr.mxu0 0.0
    %2080 = vmatpush1.msra.mxu0 0.0
    %2081 = vmatprep.subr.mxu0 0.0
    %2082 = vmatpush1.msra.mxu0 0.0
    %2083 = vmatprep.subr.mxu0 0.0
    %2084 = vmatpush1.msra.mxu0 0.0
    %2085 = vmatprep.subr.mxu0 0.0
    %2086 = vmatpush1.msra.mxu0 0.0
    %2087 = vmatprep.subr.mxu0 0.0
    %2088 = vmatpush1.msra.mxu0 0.0
    %2089 = vmatprep.subr.mxu0 0.0
    %2090 = vmatpush1.msra.mxu0 0.0
    %2091 = vmatprep.mubr.f32.mxu0 0.0
    %2092 = vmatmul.mubr.f32.gmra.mrb[0].mxu0 %v1850
    %v2093 = vpop.f32.mrb[0].mxu0
    %v2094 = vadd.f32 0.0, %v2093
    %v2095 = vpop.f32.mrb[0].mxu0
    %2096 = vdwg.mxu0
    %v2097 = vmul.f32 %v2094, %v1925
    %v2098 = vld [vmem:[%s53] sm:$0x1]
    %v2100 = vlaneseq
    %v2101 = vshrl.u32 %v2100, 7
    %v2102 = vsub.s32 0, %v2101
    %v2103 = vrot.slane %v2098, %v2102
    %v2105 = vmul.f32 %v2103, %v2023
    %v2106 = vmul.f32 %v2103, %v2024
    %v2108 = vsel %vm1935, %v2097, 0
    %2110 = vmatprep.subr.mxu0 0.0
    %2111 = vmatpush1.msra.mxu0 %v2108
    %2112 = vmatprep.subr.mxu0 0.0
    %2113 = vmatpush1.msra.mxu0 0.0
    %2114 = vmatprep.subr.mxu0 0.0
    %2115 = vmatpush1.msra.mxu0 0.0
    %2116 = vmatprep.subr.mxu0 0.0
    %2117 = vmatpush1.msra.mxu0 0.0
    %2118 = vmatprep.subr.mxu0 0.0
    %2119 = vmatpush1.msra.mxu0 0.0
    %2120 = vmatprep.subr.mxu0 0.0
    %2121 = vmatpush1.msra.mxu0 0.0
    %2122 = vmatprep.subr.mxu0 0.0
    %2123 = vmatpush1.msra.mxu0 0.0
    %2124 = vmatprep.subr.mxu0 0.0
    %2125 = vmatpush1.msra.mxu0 0.0
    %2126 = vmatprep.subr.mxu0 0.0
    %2127 = vmatpush1.msra.mxu0 0.0
    %2128 = vmatprep.subr.mxu0 0.0
    %2129 = vmatpush1.msra.mxu0 0.0
    %2130 = vmatprep.subr.mxu0 0.0
    %2131 = vmatpush1.msra.mxu0 0.0
    %2132 = vmatprep.subr.mxu0 0.0
    %2133 = vmatpush1.msra.mxu0 0.0
    %2134 = vmatprep.subr.mxu0 0.0
    %2135 = vmatpush1.msra.mxu0 0.0
    %2136 = vmatprep.subr.mxu0 0.0
    %2137 = vmatpush1.msra.mxu0 0.0
    %2138 = vmatprep.subr.mxu0 0.0
    %2139 = vmatpush1.msra.mxu0 0.0
    %2140 = vmatprep.subr.mxu0 0.0
    %2141 = vmatpush1.msra.mxu0 0.0
    %2142 = vmatprep.subr.mxu0 0.0
    %2143 = vmatpush1.msra.mxu0 0.0
    %2144 = vmatprep.subr.mxu0 0.0
    %2145 = vmatpush1.msra.mxu0 0.0
    %2146 = vmatprep.subr.mxu0 0.0
    %2147 = vmatpush1.msra.mxu0 0.0
    %2148 = vmatprep.subr.mxu0 0.0
    %2149 = vmatpush1.msra.mxu0 0.0
    %2150 = vmatprep.subr.mxu0 0.0
    %2151 = vmatpush1.msra.mxu0 0.0
    %2152 = vmatprep.subr.mxu0 0.0
    %2153 = vmatpush1.msra.mxu0 0.0
    %2154 = vmatprep.subr.mxu0 0.0
    %2155 = vmatpush1.msra.mxu0 0.0
    %2156 = vmatprep.subr.mxu0 0.0
    %2157 = vmatpush1.msra.mxu0 0.0
    %2158 = vmatprep.subr.mxu0 0.0
    %2159 = vmatpush1.msra.mxu0 0.0
    %2160 = vmatprep.subr.mxu0 0.0
    %2161 = vmatpush1.msra.mxu0 0.0
    %2162 = vmatprep.subr.mxu0 0.0
    %2163 = vmatpush1.msra.mxu0 0.0
    %2164 = vmatprep.subr.mxu0 0.0
    %2165 = vmatpush1.msra.mxu0 0.0
    %2166 = vmatprep.subr.mxu0 0.0
    %2167 = vmatpush1.msra.mxu0 0.0
    %2168 = vmatprep.subr.mxu0 0.0
    %2169 = vmatpush1.msra.mxu0 0.0
    %2170 = vmatprep.subr.mxu0 0.0
    %2171 = vmatpush1.msra.mxu0 0.0
    %2172 = vmatprep.subr.mxu0 0.0
    %2173 = vmatpush1.msra.mxu0 0.0
    %2174 = vmatprep.mubr.f32.mxu0 0.0
    %2175 = vmatmul.mubr.f32.gmra.mrb[0].mxu0 %v1930
    %v2176 = vpop.f32.mrb[0].mxu0
    %v2177 = vadd.f32 1e-05, %v2176
    %v2178 = vpop.f32.mrb[0].mxu0
    %2179 = vmatprep.mubr.f32.mxu0 0.0
    %2180 = vmatmul.mubr.f32.gmra.mrb[0].mxu0 %v1933
    %v2181 = vpop.f32.mrb[0].mxu0
    %v2182 = vadd.f32 1e-05, %v2181
    %v2183 = vpop.f32.mrb[0].mxu0
    %2184 = vdwg.mxu0
    %v2185 = vrsqrt.pop %v2177
    %v2186 = vrsqrt.pop %v2182
    %v2187 = vmul.f32 %v2105, %v2185
    %v2188 = vmul.f32 %v2106, %v2186
    %v2189 = vld [vmem:[%s55] sm:$0x1]
    %v2191 = vlaneseq
    %v2192 = vshrl.u32 %v2191, 7
    %v2193 = vsub.s32 0, %v2192
    %v2194 = vrot.slane %v2189, %v2193
    %v2196 = vadd.f32 %v2187, %v2194
    %v2197 = vadd.f32 %v2188, %v2194
    %v2198 = vxor.u32 %v2196, 2147483648
    %v2199 = vxor.u32 %v2197, 2147483648
    %v2200 = vmul.f32 %v2198, 1.442695
    %v2201 = vpow.pop %v2200
    %v2202 = vmul.f32 %v2199, 1.442695
    %v2203 = vpow.pop %v2202
    %v2204 = vadd.f32 %v2201, 1.0
    %v2205 = vadd.f32 %v2203, 1.0
    %v2206 = vrcp.pop %v2204
    %v2207 = vmul.f32 1.0, %v2206
    %v2208 = vrcp.pop %v2205
    %v2209 = vmul.f32 1.0, %v2208
    %v2210 = vmul.f32 %v2196, %v2207
    %v2211 = vmul.f32 %v2197, %v2209
    %v2212 = vld [vmem:[%s49] sm:$0xff]
    %v2213 = vld [vmem:[%s49 + $0x8] sm:$0xff]
    %v2214 = vld [vmem:[%s51] sm:$0x1]
    %v2216 = vlaneseq
    %v2217 = vshrl.u32 %v2216, 7
    %v2218 = vsub.s32 0, %v2217
    %v2219 = vrot.slane %v2214, %v2218
    %v2222 = vsel %vm468, %v2210, 0
    %v2225 = vsel %vm468, %v2211, 0
    %2227 = vmatprep.subr.mxu0 0.0
    %2228 = vmatpush1.msra.mxu0 %v2212
    %2229 = vmatprep.subr.mxu0 0.0
    %2230 = vmatpush1.msra.mxu0 %v2213
    %2231 = vmatprep.subr.mxu0 0.0
    %2232 = vmatpush1.msra.mxu0 0.0
    %2233 = vmatprep.subr.mxu0 0.0
    %2234 = vmatpush1.msra.mxu0 0.0
    %2235 = vmatprep.subr.mxu0 0.0
    %2236 = vmatpush1.msra.mxu0 0.0
    %2237 = vmatprep.subr.mxu0 0.0
    %2238 = vmatpush1.msra.mxu0 0.0
    %2239 = vmatprep.subr.mxu0 0.0
    %2240 = vmatpush1.msra.mxu0 0.0
    %2241 = vmatprep.subr.mxu0 0.0
    %2242 = vmatpush1.msra.mxu0 0.0
    %2243 = vmatprep.subr.mxu0 0.0
    %2244 = vmatpush1.msra.mxu0 0.0
    %2245 = vmatprep.subr.mxu0 0.0
    %2246 = vmatpush1.msra.mxu0 0.0
    %2247 = vmatprep.subr.mxu0 0.0
    %2248 = vmatpush1.msra.mxu0 0.0
    %2249 = vmatprep.subr.mxu0 0.0
    %2250 = vmatpush1.msra.mxu0 0.0
    %2251 = vmatprep.subr.mxu0 0.0
    %2252 = vmatpush1.msra.mxu0 0.0
    %2253 = vmatprep.subr.mxu0 0.0
    %2254 = vmatpush1.msra.mxu0 0.0
    %2255 = vmatprep.subr.mxu0 0.0
    %2256 = vmatpush1.msra.mxu0 0.0
    %2257 = vmatprep.subr.mxu0 0.0
    %2258 = vmatpush1.msra.mxu0 0.0
    %2259 = vmatprep.subr.mxu0 0.0
    %2260 = vmatpush1.msra.mxu0 0.0
    %2261 = vmatprep.subr.mxu0 0.0
    %2262 = vmatpush1.msra.mxu0 0.0
    %2263 = vmatprep.subr.mxu0 0.0
    %2264 = vmatpush1.msra.mxu0 0.0
    %2265 = vmatprep.subr.mxu0 0.0
    %2266 = vmatpush1.msra.mxu0 0.0
    %2267 = vmatprep.subr.mxu0 0.0
    %2268 = vmatpush1.msra.mxu0 0.0
    %2269 = vmatprep.subr.mxu0 0.0
    %2270 = vmatpush1.msra.mxu0 0.0
    %2271 = vmatprep.subr.mxu0 0.0
    %2272 = vmatpush1.msra.mxu0 0.0
    %2273 = vmatprep.subr.mxu0 0.0
    %2274 = vmatpush1.msra.mxu0 0.0
    %2275 = vmatprep.subr.mxu0 0.0
    %2276 = vmatpush1.msra.mxu0 0.0
    %2277 = vmatprep.subr.mxu0 0.0
    %2278 = vmatpush1.msra.mxu0 0.0
    %2279 = vmatprep.subr.mxu0 0.0
    %2280 = vmatpush1.msra.mxu0 0.0
    %2281 = vmatprep.subr.mxu0 0.0
    %2282 = vmatpush1.msra.mxu0 0.0
    %2283 = vmatprep.subr.mxu0 0.0
    %2284 = vmatpush1.msra.mxu0 0.0
    %2285 = vmatprep.subr.mxu0 0.0
    %2286 = vmatpush1.msra.mxu0 0.0
    %2287 = vmatprep.subr.mxu0 0.0
    %2288 = vmatpush1.msra.mxu0 0.0
    %2289 = vmatprep.subr.mxu0 0.0
    %2290 = vmatpush1.msra.mxu0 0.0
    %2291 = vmatprep.mubr.f32.mxu0 0.0
    %2292 = vmatmul.mubr.f32.gmra.mrb[0].mxu0 %v2222
    %v2293 = vpop.f32.mrb[0].mxu0
    %v2294 = vadd.f32 %v2219, %v2293
    %v2295 = vpop.f32.mrb[0].mxu0
    %2296 = vmatprep.mubr.f32.mxu0 0.0
    %2297 = vmatmul.mubr.f32.gmra.mrb[0].mxu0 %v2225
    %v2298 = vpop.f32.mrb[0].mxu0
    %v2299 = vadd.f32 %v2219, %v2298
    %v2300 = vpop.f32.mrb[0].mxu0
    %2301 = vdwg.mxu0
    %v2302 = vxor.u32 %v2294, 2147483648
    %v2303 = vxor.u32 %v2299, 2147483648
    %v2304 = vmul.f32 %v2302, 1.442695
    %v2305 = vpow.pop %v2304
    %v2306 = vmul.f32 %v2303, 1.442695
    %v2307 = vpow.pop %v2306
    %v2308 = vadd.f32 %v2305, 1.0
    %v2309 = vadd.f32 %v2307, 1.0
    %v2310 = vrcp.pop %v2308
    %v2311 = vmul.f32 1.0, %v2310
    %v2312 = vrcp.pop %v2309
    %v2313 = vmul.f32 1.0, %v2312
    %v2314 = vmul.f32 %v2294, %v2311
    %v2315 = vmul.f32 %v2299, %v2313
    %v2316 = vadd.f32 %v398, %v2314
    %v2317 = vadd.f32 %v399, %v2315
    %v2319 = vsel %vm198, %v2316, 0
    %v2322 = vsel %vm198, %v2317, 0
    %2324 = vmatprep.subr.mxu0 0.0
    %2325 = vmatpush1.msra.mxu0 %v841
    %2326 = vmatprep.subr.mxu0 0.0
    %2327 = vmatpush1.msra.mxu0 %v842
    %2328 = vmatprep.subr.mxu0 0.0
    %2329 = vmatpush1.msra.mxu0 %v843
    %2330 = vmatprep.subr.mxu0 0.0
    %2331 = vmatpush1.msra.mxu0 %v844
    %2332 = vmatprep.subr.mxu0 0.0
    %2333 = vmatpush1.msra.mxu0 0.0
    %2334 = vmatprep.subr.mxu0 0.0
    %2335 = vmatpush1.msra.mxu0 0.0
    %2336 = vmatprep.subr.mxu0 0.0
    %2337 = vmatpush1.msra.mxu0 0.0
    %2338 = vmatprep.subr.mxu0 0.0
    %2339 = vmatpush1.msra.mxu0 0.0
    %2340 = vmatprep.subr.mxu0 0.0
    %2341 = vmatpush1.msra.mxu0 0.0
    %2342 = vmatprep.subr.mxu0 0.0
    %2343 = vmatpush1.msra.mxu0 0.0
    %2344 = vmatprep.subr.mxu0 0.0
    %2345 = vmatpush1.msra.mxu0 0.0
    %2346 = vmatprep.subr.mxu0 0.0
    %2347 = vmatpush1.msra.mxu0 0.0
    %2348 = vmatprep.subr.mxu0 0.0
    %2349 = vmatpush1.msra.mxu0 0.0
    %2350 = vmatprep.subr.mxu0 0.0
    %2351 = vmatpush1.msra.mxu0 0.0
    %2352 = vmatprep.subr.mxu0 0.0
    %2353 = vmatpush1.msra.mxu0 0.0
    %2354 = vmatprep.subr.mxu0 0.0
    %2355 = vmatpush1.msra.mxu0 0.0
    %2356 = vmatprep.subr.mxu0 0.0
    %2357 = vmatpush1.msra.mxu0 0.0
    %2358 = vmatprep.subr.mxu0 0.0
    %2359 = vmatpush1.msra.mxu0 0.0
    %2360 = vmatprep.subr.mxu0 0.0
    %2361 = vmatpush1.msra.mxu0 0.0
    %2362 = vmatprep.subr.mxu0 0.0
    %2363 = vmatpush1.msra.mxu0 0.0
    %2364 = vmatprep.subr.mxu0 0.0
    %2365 = vmatpush1.msra.mxu0 0.0
    %2366 = vmatprep.subr.mxu0 0.0
    %2367 = vmatpush1.msra.mxu0 0.0
    %2368 = vmatprep.subr.mxu0 0.0
    %2369 = vmatpush1.msra.mxu0 0.0
    %2370 = vmatprep.subr.mxu0 0.0
    %2371 = vmatpush1.msra.mxu0 0.0
    %2372 = vmatprep.subr.mxu0 0.0
    %2373 = vmatpush1.msra.mxu0 0.0
    %2374 = vmatprep.subr.mxu0 0.0
    %2375 = vmatpush1.msra.mxu0 0.0
    %2376 = vmatprep.subr.mxu0 0.0
    %2377 = vmatpush1.msra.mxu0 0.0
    %2378 = vmatprep.subr.mxu0 0.0
    %2379 = vmatpush1.msra.mxu0 0.0
    %2380 = vmatprep.subr.mxu0 0.0
    %2381 = vmatpush1.msra.mxu0 0.0
    %2382 = vmatprep.subr.mxu0 0.0
    %2383 = vmatpush1.msra.mxu0 0.0
    %2384 = vmatprep.subr.mxu0 0.0
    %2385 = vmatpush1.msra.mxu0 0.0
    %2386 = vmatprep.subr.mxu0 0.0
    %2387 = vmatpush1.msra.mxu0 0.0
    %2388 = vmatprep.mubr.f32.mxu0 0.0
    %2389 = vmatmul.mubr.f32.gmra.mrb[0].mxu0 %v2319
    %v2390 = vpop.f32.mrb[0].mxu0
    %v2391 = vadd.f32 %v850, %v2390
    %v2392 = vpop.f32.mrb[0].mxu0
    %2393 = vmatprep.mubr.f32.mxu0 0.0
    %2394 = vmatmul.mubr.f32.gmra.mrb[0].mxu0 %v2322
    %v2395 = vpop.f32.mrb[0].mxu0
    %v2396 = vadd.f32 %v850, %v2395
    %v2397 = vpop.f32.mrb[0].mxu0
    %2398 = vdwg.mxu0
    %v2399 = vxor.u32 %v2391, 2147483648
    %v2400 = vxor.u32 %v2396, 2147483648
    %v2401 = vmul.f32 %v2399, 1.442695
    %v2402 = vpow.pop %v2401
    %v2403 = vmul.f32 %v2400, 1.442695
    %v2404 = vpow.pop %v2403
    %v2405 = vadd.f32 %v2402, 1.0
    %v2406 = vadd.f32 %v2404, 1.0
    %v2407 = vrcp.pop %v2405
    %v2408 = vmul.f32 1.0, %v2407
    %v2409 = vrcp.pop %v2406
    %v2410 = vmul.f32 1.0, %v2409
    %v2411 = vmul.f32 %v2391, %v2408
    %v2412 = vmul.f32 %v2396, %v2410
    %v2413 = vmul.f32 %v2411, %v952
    %v2414 = vmul.f32 %v2412, %v952
    %v2415 = vsel %vm468, %v2413, 0.0
    %2416 = vadd.xlane.f32.xlu0 %v2415
    %v2417 = vpop.xlane.xlu0 %2416
    %v2418 = vsel %vm468, %v2414, 0.0
    %2419 = vadd.xlane.f32.xlu0 %v2418
    %v2420 = vpop.xlane.xlu0 %2419
    %v2421 = vadd.f32 %v2417, %v967
    %v2422 = vadd.f32 %v2420, %v967
    %s2423 = sld [smem:[#allocation5 + $0x1]]
    %v2424 = vstv %s2423
    %v2425 = vmul.f32 %v2421, %v2424
    %v2426 = vmul.f32 %v2422, %v2424
    %v2427 = vadd.f32 %v975, %v2425
    %v2428 = vadd.f32 %v976, %v2426
    %2429 = vmatprep.subr.mxu0 0.0
    %2430 = vmatpush1.msra.mxu0 %v2316
    %2431 = vmatprep.subr.mxu0 0.0
    %2432 = vmatpush1.msra.mxu0 %v2317
    %2433 = vmatprep.subr.mxu0 0.0
    %2434 = vmatpush1.msra.mxu0 0.0
    %2435 = vmatprep.subr.mxu0 0.0
    %2436 = vmatpush1.msra.mxu0 0.0
    %2437 = vmatprep.subr.mxu0 0.0
    %2438 = vmatpush1.msra.mxu0 0.0
    %2439 = vmatprep.subr.mxu0 0.0
    %2440 = vmatpush1.msra.mxu0 0.0
    %2441 = vmatprep.subr.mxu0 0.0
    %2442 = vmatpush1.msra.mxu0 0.0
    %2443 = vmatprep.subr.mxu0 0.0
    %2444 = vmatpush1.msra.mxu0 0.0
    %2445 = vmatprep.subr.mxu0 0.0
    %2446 = vmatpush1.msra.mxu0 0.0
    %2447 = vmatprep.subr.mxu0 0.0
    %2448 = vmatpush1.msra.mxu0 0.0
    %2449 = vmatprep.subr.mxu0 0.0
    %2450 = vmatpush1.msra.mxu0 0.0
    %2451 = vmatprep.subr.mxu0 0.0
    %2452 = vmatpush1.msra.mxu0 0.0
    %2453 = vmatprep.subr.mxu0 0.0
    %2454 = vmatpush1.msra.mxu0 0.0
    %2455 = vmatprep.subr.mxu0 0.0
    %2456 = vmatpush1.msra.mxu0 0.0
    %2457 = vmatprep.subr.mxu0 0.0
    %2458 = vmatpush1.msra.mxu0 0.0
    %2459 = vmatprep.subr.mxu0 0.0
    %2460 = vmatpush1.msra.mxu0 0.0
    %2461 = vmatprep.subr.mxu0 0.0
    %2462 = vmatpush1.msra.mxu0 0.0
    %2463 = vmatprep.subr.mxu0 0.0
    %2464 = vmatpush1.msra.mxu0 0.0
    %2465 = vmatprep.subr.mxu0 0.0
    %2466 = vmatpush1.msra.mxu0 0.0
    %2467 = vmatprep.subr.mxu0 0.0
    %2468 = vmatpush1.msra.mxu0 0.0
    %2469 = vmatprep.subr.mxu0 0.0
    %2470 = vmatpush1.msra.mxu0 0.0
    %2471 = vmatprep.subr.mxu0 0.0
    %2472 = vmatpush1.msra.mxu0 0.0
    %2473 = vmatprep.subr.mxu0 0.0
    %2474 = vmatpush1.msra.mxu0 0.0
    %2475 = vmatprep.subr.mxu0 0.0
    %2476 = vmatpush1.msra.mxu0 0.0
    %2477 = vmatprep.subr.mxu0 0.0
    %2478 = vmatpush1.msra.mxu0 0.0
    %2479 = vmatprep.subr.mxu0 0.0
    %2480 = vmatpush1.msra.mxu0 0.0
    %2481 = vmatprep.subr.mxu0 0.0
    %2482 = vmatpush1.msra.mxu0 0.0
    %2483 = vmatprep.subr.mxu0 0.0
    %2484 = vmatpush1.msra.mxu0 0.0
    %2485 = vmatprep.subr.mxu0 0.0
    %2486 = vmatpush1.msra.mxu0 0.0
    %2487 = vmatprep.subr.mxu0 0.0
    %2488 = vmatpush1.msra.mxu0 0.0
    %2489 = vmatprep.subr.mxu0 0.0
    %2490 = vmatpush1.msra.mxu0 0.0
    %2491 = vmatprep.subr.mxu0 0.0
    %2492 = vmatpush1.msra.mxu0 0.0
    %2493 = vmatprep.mubr.f32.mxu0 0.0
    %2494 = vmatmul.mubr.f32.gmra.mrb[0].mxu0 %v978
    %v2495 = vpop.f32.mrb[0].mxu0
    %v2496 = vadd.f32 0.0, %v2495
    %v2497 = vpop.f32.mrb[0].mxu0
    %2498 = vmatprep.mubr.f32.mxu0 0.0
    %2499 = vmatmul.mubr.f32.gmra.mrb[0].mxu0 %v981
    %v2500 = vpop.f32.mrb[0].mxu0
    %v2501 = vadd.f32 0.0, %v2500
    %v2502 = vpop.f32.mrb[0].mxu0
    %2503 = vmatprep.mubr.f32.mxu0 0.0
    %2504 = vmatmul.mubr.f32.gmra.mrb[0].mxu0 %v984
    %v2505 = vpop.f32.mrb[0].mxu0
    %v2506 = vadd.f32 0.0, %v2505
    %v2507 = vpop.f32.mrb[0].mxu0
    %2508 = vmatprep.mubr.f32.mxu0 0.0
    %2509 = vmatmul.mubr.f32.gmra.mrb[0].mxu0 %v987
    %v2510 = vpop.f32.mrb[0].mxu0
    %v2511 = vadd.f32 0.0, %v2510
    %v2512 = vpop.f32.mrb[0].mxu0
    %2513 = vdwg.mxu0
    %2514 = vmatprep.subr.mxu0 0.0
    %2515 = vmatpush1.msra.mxu0 %v2316
    %2516 = vmatprep.subr.mxu0 0.0
    %2517 = vmatpush1.msra.mxu0 %v2317
    %2518 = vmatprep.subr.mxu0 0.0
    %2519 = vmatpush1.msra.mxu0 0.0
    %2520 = vmatprep.subr.mxu0 0.0
    %2521 = vmatpush1.msra.mxu0 0.0
    %2522 = vmatprep.subr.mxu0 0.0
    %2523 = vmatpush1.msra.mxu0 0.0
    %2524 = vmatprep.subr.mxu0 0.0
    %2525 = vmatpush1.msra.mxu0 0.0
    %2526 = vmatprep.subr.mxu0 0.0
    %2527 = vmatpush1.msra.mxu0 0.0
    %2528 = vmatprep.subr.mxu0 0.0
    %2529 = vmatpush1.msra.mxu0 0.0
    %2530 = vmatprep.subr.mxu0 0.0
    %2531 = vmatpush1.msra.mxu0 0.0
    %2532 = vmatprep.subr.mxu0 0.0
    %2533 = vmatpush1.msra.mxu0 0.0
    %2534 = vmatprep.subr.mxu0 0.0
    %2535 = vmatpush1.msra.mxu0 0.0
    %2536 = vmatprep.subr.mxu0 0.0
    %2537 = vmatpush1.msra.mxu0 0.0
    %2538 = vmatprep.subr.mxu0 0.0
    %2539 = vmatpush1.msra.mxu0 0.0
    %2540 = vmatprep.subr.mxu0 0.0
    %2541 = vmatpush1.msra.mxu0 0.0
    %2542 = vmatprep.subr.mxu0 0.0
    %2543 = vmatpush1.msra.mxu0 0.0
    %2544 = vmatprep.subr.mxu0 0.0
    %2545 = vmatpush1.msra.mxu0 0.0
    %2546 = vmatprep.subr.mxu0 0.0
    %2547 = vmatpush1.msra.mxu0 0.0
    %2548 = vmatprep.subr.mxu0 0.0
    %2549 = vmatpush1.msra.mxu0 0.0
    %2550 = vmatprep.subr.mxu0 0.0
    %2551 = vmatpush1.msra.mxu0 0.0
    %2552 = vmatprep.subr.mxu0 0.0
    %2553 = vmatpush1.msra.mxu0 0.0
    %2554 = vmatprep.subr.mxu0 0.0
    %2555 = vmatpush1.msra.mxu0 0.0
    %2556 = vmatprep.subr.mxu0 0.0
    %2557 = vmatpush1.msra.mxu0 0.0
    %2558 = vmatprep.subr.mxu0 0.0
    %2559 = vmatpush1.msra.mxu0 0.0
    %2560 = vmatprep.subr.mxu0 0.0
    %2561 = vmatpush1.msra.mxu0 0.0
    %2562 = vmatprep.subr.mxu0 0.0
    %2563 = vmatpush1.msra.mxu0 0.0
    %2564 = vmatprep.subr.mxu0 0.0
    %2565 = vmatpush1.msra.mxu0 0.0
    %2566 = vmatprep.subr.mxu0 0.0
    %2567 = vmatpush1.msra.mxu0 0.0
    %2568 = vmatprep.subr.mxu0 0.0
    %2569 = vmatpush1.msra.mxu0 0.0
    %2570 = vmatprep.subr.mxu0 0.0
    %2571 = vmatpush1.msra.mxu0 0.0
    %2572 = vmatprep.subr.mxu0 0.0
    %2573 = vmatpush1.msra.mxu0 0.0
    %2574 = vmatprep.subr.mxu0 0.0
    %2575 = vmatpush1.msra.mxu0 0.0
    %2576 = vmatprep.subr.mxu0 0.0
    %2577 = vmatpush1.msra.mxu0 0.0
    %2578 = vmatprep.mubr.f32.mxu0 0.0
    %2579 = vmatmul.mubr.f32.gmra.mrb[0].mxu0 %v1075
    %v2580 = vpop.f32.mrb[0].mxu0
    %v2581 = vadd.f32 0.0, %v2580
    %v2582 = vpop.f32.mrb[0].mxu0
    %2583 = vmatprep.mubr.f32.mxu0 0.0
    %2584 = vmatmul.mubr.f32.gmra.mrb[0].mxu0 %v1078
    %v2585 = vpop.f32.mrb[0].mxu0
    %v2586 = vadd.f32 0.0, %v2585
    %v2587 = vpop.f32.mrb[0].mxu0
    %2588 = vmatprep.mubr.f32.mxu0 0.0
    %2589 = vmatmul.mubr.f32.gmra.mrb[0].mxu0 %v1081
    %v2590 = vpop.f32.mrb[0].mxu0
    %v2591 = vadd.f32 0.0, %v2590
    %v2592 = vpop.f32.mrb[0].mxu0
    %2593 = vmatprep.mubr.f32.mxu0 0.0
    %2594 = vmatmul.mubr.f32.gmra.mrb[0].mxu0 %v1084
    %v2595 = vpop.f32.mrb[0].mxu0
    %v2596 = vadd.f32 0.0, %v2595
    %v2597 = vpop.f32.mrb[0].mxu0
    %2598 = vdwg.mxu0
    %s2599 = scalar_lea.vmem %s37, 16
    %v2600 = vld [vmem:[%s2599] sm:$0xff]
    %v2601 = vld [vmem:[%s2599 + $0x8] sm:$0xff]
    %s2602 = scalar_lea.vmem %s39, 32
    %v2603 = vld [vmem:[%s2602] sm:$0xff]
    %v2604 = vld [vmem:[%s2602 + $0x8] sm:$0xff]
    %v2605 = vld [vmem:[%s2602 + $0x10] sm:$0xff]
    %v2606 = vld [vmem:[%s2602 + $0x18] sm:$0xff]
    %v2608 = vsel %vm198, %v2496, 0
    %v2611 = vsel %vm198, %v2501, 0
    %v2614 = vsel %vm198, %v2506, 0
    %v2617 = vsel %vm198, %v2511, 0
    %2619 = vmatprep.subr.mxu0 0.0
    %2620 = vmatpush1.msra.mxu0 %v2603
    %2621 = vmatprep.subr.mxu0 0.0
    %2622 = vmatpush1.msra.mxu0 %v2604
    %2623 = vmatprep.subr.mxu0 0.0
    %2624 = vmatpush1.msra.mxu0 %v2605
    %2625 = vmatprep.subr.mxu0 0.0
    %2626 = vmatpush1.msra.mxu0 %v2606
    %2627 = vmatprep.subr.mxu0 0.0
    %2628 = vmatpush1.msra.mxu0 0.0
    %2629 = vmatprep.subr.mxu0 0.0
    %2630 = vmatpush1.msra.mxu0 0.0
    %2631 = vmatprep.subr.mxu0 0.0
    %2632 = vmatpush1.msra.mxu0 0.0
    %2633 = vmatprep.subr.mxu0 0.0
    %2634 = vmatpush1.msra.mxu0 0.0
    %2635 = vmatprep.subr.mxu0 0.0
    %2636 = vmatpush1.msra.mxu0 0.0
    %2637 = vmatprep.subr.mxu0 0.0
    %2638 = vmatpush1.msra.mxu0 0.0
    %2639 = vmatprep.subr.mxu0 0.0
    %2640 = vmatpush1.msra.mxu0 0.0
    %2641 = vmatprep.subr.mxu0 0.0
    %2642 = vmatpush1.msra.mxu0 0.0
    %2643 = vmatprep.subr.mxu0 0.0
    %2644 = vmatpush1.msra.mxu0 0.0
    %2645 = vmatprep.subr.mxu0 0.0
    %2646 = vmatpush1.msra.mxu0 0.0
    %2647 = vmatprep.subr.mxu0 0.0
    %2648 = vmatpush1.msra.mxu0 0.0
    %2649 = vmatprep.subr.mxu0 0.0
    %2650 = vmatpush1.msra.mxu0 0.0
    %2651 = vmatprep.subr.mxu0 0.0
    %2652 = vmatpush1.msra.mxu0 0.0
    %2653 = vmatprep.subr.mxu0 0.0
    %2654 = vmatpush1.msra.mxu0 0.0
    %2655 = vmatprep.subr.mxu0 0.0
    %2656 = vmatpush1.msra.mxu0 0.0
    %2657 = vmatprep.subr.mxu0 0.0
    %2658 = vmatpush1.msra.mxu0 0.0
    %2659 = vmatprep.subr.mxu0 0.0
    %2660 = vmatpush1.msra.mxu0 0.0
    %2661 = vmatprep.subr.mxu0 0.0
    %2662 = vmatpush1.msra.mxu0 0.0
    %2663 = vmatprep.subr.mxu0 0.0
    %2664 = vmatpush1.msra.mxu0 0.0
    %2665 = vmatprep.subr.mxu0 0.0
    %2666 = vmatpush1.msra.mxu0 0.0
    %2667 = vmatprep.subr.mxu0 0.0
    %2668 = vmatpush1.msra.mxu0 0.0
    %2669 = vmatprep.subr.mxu0 0.0
    %2670 = vmatpush1.msra.mxu0 0.0
    %2671 = vmatprep.subr.mxu0 0.0
    %2672 = vmatpush1.msra.mxu0 0.0
    %2673 = vmatprep.subr.mxu0 0.0
    %2674 = vmatpush1.msra.mxu0 0.0
    %2675 = vmatprep.subr.mxu0 0.0
    %2676 = vmatpush1.msra.mxu0 0.0
    %2677 = vmatprep.subr.mxu0 0.0
    %2678 = vmatpush1.msra.mxu0 0.0
    %2679 = vmatprep.subr.mxu0 0.0
    %2680 = vmatpush1.msra.mxu0 0.0
    %2681 = vmatprep.subr.mxu0 0.0
    %2682 = vmatpush1.msra.mxu0 0.0
    %2683 = vmatprep.mubr.f32.mxu0 0.0
    %2684 = vmatmul.mubr.f32.gmra.mrb[0].mxu0 %v2608
    %v2685 = vpop.f32.mrb[0].mxu0
    %v2686 = vadd.f32 0.0, %v2685
    %v2687 = vpop.f32.mrb[0].mxu0
    %2688 = vmatprep.mubr.f32.mxu0 0.0
    %2689 = vmatmul.mubr.f32.gmra.mrb[0].mxu0 %v2611
    %v2690 = vpop.f32.mrb[0].mxu0
    %v2691 = vadd.f32 0.0, %v2690
    %v2692 = vpop.f32.mrb[0].mxu0
    %2693 = vmatprep.mubr.f32.mxu0 0.0
    %2694 = vmatmul.mubr.f32.gmra.mrb[0].mxu0 %v2614
    %v2695 = vpop.f32.mrb[0].mxu0
    %v2696 = vadd.f32 0.0, %v2695
    %v2697 = vpop.f32.mrb[0].mxu0
    %2698 = vmatprep.mubr.f32.mxu0 0.0
    %2699 = vmatmul.mubr.f32.gmra.mrb[0].mxu0 %v2617
    %v2700 = vpop.f32.mrb[0].mxu0
    %v2701 = vadd.f32 0.0, %v2700
    %v2702 = vpop.f32.mrb[0].mxu0
    %2703 = vdwg.mxu0
    %2704 = vmatprep.subr.mxu0 0.0
    %2705 = vmatpush1.msra.mxu0 %v2600
    %2706 = vmatprep.subr.mxu0 0.0
    %2707 = vmatpush1.msra.mxu0 %v2601
    %2708 = vmatprep.subr.mxu0 0.0
    %2709 = vmatpush1.msra.mxu0 0.0
    %2710 = vmatprep.subr.mxu0 0.0
    %2711 = vmatpush1.msra.mxu0 0.0
    %2712 = vmatprep.subr.mxu0 0.0
    %2713 = vmatpush1.msra.mxu0 0.0
    %2714 = vmatprep.subr.mxu0 0.0
    %2715 = vmatpush1.msra.mxu0 0.0
    %2716 = vmatprep.subr.mxu0 0.0
    %2717 = vmatpush1.msra.mxu0 0.0
    %2718 = vmatprep.subr.mxu0 0.0
    %2719 = vmatpush1.msra.mxu0 0.0
    %2720 = vmatprep.subr.mxu0 0.0
    %2721 = vmatpush1.msra.mxu0 0.0
    %2722 = vmatprep.subr.mxu0 0.0
    %2723 = vmatpush1.msra.mxu0 0.0
    %2724 = vmatprep.subr.mxu0 0.0
    %2725 = vmatpush1.msra.mxu0 0.0
    %2726 = vmatprep.subr.mxu0 0.0
    %2727 = vmatpush1.msra.mxu0 0.0
    %2728 = vmatprep.subr.mxu0 0.0
    %2729 = vmatpush1.msra.mxu0 0.0
    %2730 = vmatprep.subr.mxu0 0.0
    %2731 = vmatpush1.msra.mxu0 0.0
    %2732 = vmatprep.subr.mxu0 0.0
    %2733 = vmatpush1.msra.mxu0 0.0
    %2734 = vmatprep.subr.mxu0 0.0
    %2735 = vmatpush1.msra.mxu0 0.0
    %2736 = vmatprep.subr.mxu0 0.0
    %2737 = vmatpush1.msra.mxu0 0.0
    %2738 = vmatprep.subr.mxu0 0.0
    %2739 = vmatpush1.msra.mxu0 0.0
    %2740 = vmatprep.subr.mxu0 0.0
    %2741 = vmatpush1.msra.mxu0 0.0
    %2742 = vmatprep.subr.mxu0 0.0
    %2743 = vmatpush1.msra.mxu0 0.0
    %2744 = vmatprep.subr.mxu0 0.0
    %2745 = vmatpush1.msra.mxu0 0.0
    %2746 = vmatprep.subr.mxu0 0.0
    %2747 = vmatpush1.msra.mxu0 0.0
    %2748 = vmatprep.subr.mxu0 0.0
    %2749 = vmatpush1.msra.mxu0 0.0
    %2750 = vmatprep.subr.mxu0 0.0
    %2751 = vmatpush1.msra.mxu0 0.0
    %2752 = vmatprep.subr.mxu0 0.0
    %2753 = vmatpush1.msra.mxu0 0.0
    %2754 = vmatprep.subr.mxu0 0.0
    %2755 = vmatpush1.msra.mxu0 0.0
    %2756 = vmatprep.subr.mxu0 0.0
    %2757 = vmatpush1.msra.mxu0 0.0
    %2758 = vmatprep.subr.mxu0 0.0
    %2759 = vmatpush1.msra.mxu0 0.0
    %2760 = vmatprep.subr.mxu0 0.0
    %2761 = vmatpush1.msra.mxu0 0.0
    %2762 = vmatprep.subr.mxu0 0.0
    %2763 = vmatpush1.msra.mxu0 0.0
    %2764 = vmatprep.subr.mxu0 0.0
    %2765 = vmatpush1.msra.mxu0 0.0
    %2766 = vmatprep.subr.mxu0 0.0
    %2767 = vmatpush1.msra.mxu0 0.0
    %2768 = vmatprep.mubr.f32.mxu0 0.0
    %2769 = vmatmul.mubr.f32.gmra.mrb[0].mxu0 %v1275
    %v2770 = vpop.f32.mrb[0].mxu0
    %v2771 = vadd.f32 %v2686, %v2770
    %v2772 = vpop.f32.mrb[0].mxu0
    %2773 = vmatprep.mubr.f32.mxu0 0.0
    %2774 = vmatmul.mubr.f32.gmra.mrb[0].mxu0 %v1278
    %v2775 = vpop.f32.mrb[0].mxu0
    %v2776 = vadd.f32 %v2691, %v2775
    %v2777 = vpop.f32.mrb[0].mxu0
    %2778 = vmatprep.mubr.f32.mxu0 0.0
    %2779 = vmatmul.mubr.f32.gmra.mrb[0].mxu0 %v1281
    %v2780 = vpop.f32.mrb[0].mxu0
    %v2781 = vadd.f32 %v2696, %v2780
    %v2782 = vpop.f32.mrb[0].mxu0
    %2783 = vmatprep.mubr.f32.mxu0 0.0
    %2784 = vmatmul.mubr.f32.gmra.mrb[0].mxu0 %v1284
    %v2785 = vpop.f32.mrb[0].mxu0
    %v2786 = vadd.f32 %v2701, %v2785
    %v2787 = vpop.f32.mrb[0].mxu0
    %2788 = vdwg.mxu0
    %s2789 = scalar_lea.vmem %s41, 32
    %v2790 = vld [vmem:[%s2789] sm:$0xff]
    %v2791 = vld [vmem:[%s2789 + $0x8] sm:$0xff]
    %v2792 = vld [vmem:[%s2789 + $0x10] sm:$0xff]
    %v2793 = vld [vmem:[%s2789 + $0x18] sm:$0xff]
    %v2795 = vsel %vm198, %v2581, 0
    %v2798 = vsel %vm198, %v2586, 0
    %v2801 = vsel %vm198, %v2591, 0
    %v2804 = vsel %vm198, %v2596, 0
    %2806 = vmatprep.subr.mxu0 0.0
    %2807 = vmatpush1.msra.mxu0 %v2790
    %2808 = vmatprep.subr.mxu0 0.0
    %2809 = vmatpush1.msra.mxu0 %v2791
    %2810 = vmatprep.subr.mxu0 0.0
    %2811 = vmatpush1.msra.mxu0 %v2792
    %2812 = vmatprep.subr.mxu0 0.0
    %2813 = vmatpush1.msra.mxu0 %v2793
    %2814 = vmatprep.subr.mxu0 0.0
    %2815 = vmatpush1.msra.mxu0 0.0
    %2816 = vmatprep.subr.mxu0 0.0
    %2817 = vmatpush1.msra.mxu0 0.0
    %2818 = vmatprep.subr.mxu0 0.0
    %2819 = vmatpush1.msra.mxu0 0.0
    %2820 = vmatprep.subr.mxu0 0.0
    %2821 = vmatpush1.msra.mxu0 0.0
    %2822 = vmatprep.subr.mxu0 0.0
    %2823 = vmatpush1.msra.mxu0 0.0
    %2824 = vmatprep.subr.mxu0 0.0
    %2825 = vmatpush1.msra.mxu0 0.0
    %2826 = vmatprep.subr.mxu0 0.0
    %2827 = vmatpush1.msra.mxu0 0.0
    %2828 = vmatprep.subr.mxu0 0.0
    %2829 = vmatpush1.msra.mxu0 0.0
    %2830 = vmatprep.subr.mxu0 0.0
    %2831 = vmatpush1.msra.mxu0 0.0
    %2832 = vmatprep.subr.mxu0 0.0
    %2833 = vmatpush1.msra.mxu0 0.0
    %2834 = vmatprep.subr.mxu0 0.0
    %2835 = vmatpush1.msra.mxu0 0.0
    %2836 = vmatprep.subr.mxu0 0.0
    %2837 = vmatpush1.msra.mxu0 0.0
    %2838 = vmatprep.subr.mxu0 0.0
    %2839 = vmatpush1.msra.mxu0 0.0
    %2840 = vmatprep.subr.mxu0 0.0
    %2841 = vmatpush1.msra.mxu0 0.0
    %2842 = vmatprep.subr.mxu0 0.0
    %2843 = vmatpush1.msra.mxu0 0.0
    %2844 = vmatprep.subr.mxu0 0.0
    %2845 = vmatpush1.msra.mxu0 0.0
    %2846 = vmatprep.subr.mxu0 0.0
    %2847 = vmatpush1.msra.mxu0 0.0
    %2848 = vmatprep.subr.mxu0 0.0
    %2849 = vmatpush1.msra.mxu0 0.0
    %2850 = vmatprep.subr.mxu0 0.0
    %2851 = vmatpush1.msra.mxu0 0.0
    %2852 = vmatprep.subr.mxu0 0.0
    %2853 = vmatpush1.msra.mxu0 0.0
    %2854 = vmatprep.subr.mxu0 0.0
    %2855 = vmatpush1.msra.mxu0 0.0
    %2856 = vmatprep.subr.mxu0 0.0
    %2857 = vmatpush1.msra.mxu0 0.0
    %2858 = vmatprep.subr.mxu0 0.0
    %2859 = vmatpush1.msra.mxu0 0.0
    %2860 = vmatprep.subr.mxu0 0.0
    %2861 = vmatpush1.msra.mxu0 0.0
    %2862 = vmatprep.subr.mxu0 0.0
    %2863 = vmatpush1.msra.mxu0 0.0
    %2864 = vmatprep.subr.mxu0 0.0
    %2865 = vmatpush1.msra.mxu0 0.0
    %2866 = vmatprep.subr.mxu0 0.0
    %2867 = vmatpush1.msra.mxu0 0.0
    %2868 = vmatprep.subr.mxu0 0.0
    %2869 = vmatpush1.msra.mxu0 0.0
    %2870 = vmatprep.mubr.f32.mxu0 0.0
    %2871 = vmatmul.mubr.f32.gmra.mrb[0].mxu0 %v2795
    %v2872 = vpop.f32.mrb[0].mxu0
    %v2873 = vadd.f32 0.0, %v2872
    %v2874 = vpop.f32.mrb[0].mxu0
    %2875 = vmatprep.mubr.f32.mxu0 0.0
    %2876 = vmatmul.mubr.f32.gmra.mrb[0].mxu0 %v2798
    %v2877 = vpop.f32.mrb[0].mxu0
    %v2878 = vadd.f32 0.0, %v2877
    %v2879 = vpop.f32.mrb[0].mxu0
    %2880 = vmatprep.mubr.f32.mxu0 0.0
    %2881 = vmatmul.mubr.f32.gmra.mrb[0].mxu0 %v2801
    %v2882 = vpop.f32.mrb[0].mxu0
    %v2883 = vadd.f32 0.0, %v2882
    %v2884 = vpop.f32.mrb[0].mxu0
    %2885 = vmatprep.mubr.f32.mxu0 0.0
    %2886 = vmatmul.mubr.f32.gmra.mrb[0].mxu0 %v2804
    %v2887 = vpop.f32.mrb[0].mxu0
    %v2888 = vadd.f32 0.0, %v2887
    %v2889 = vpop.f32.mrb[0].mxu0
    %2890 = vdwg.mxu0
    %v2891 = vadd.f32 %v2771, %v2873
    %v2892 = vadd.f32 %v2776, %v2878
    %v2893 = vadd.f32 %v2781, %v2883
    %v2894 = vadd.f32 %v2786, %v2888
    %s2895 = scalar_lea.vmem %s43, 1
    %v2896 = vld [vmem:[%s2895] sm:$0x1]
    %v2898 = vlaneseq
    %v2899 = vshrl.u32 %v2898, 7
    %v2900 = vsub.s32 0, %v2899
    %v2901 = vrot.slane %v2896, %v2900
    %v2903 = vadd.f32 %v2891, %v2901
    %v2904 = vadd.f32 %v2892, %v2901
    %v2905 = vadd.f32 %v2893, %v2901
    %v2906 = vadd.f32 %v2894, %v2901
    %v2907 = vxor.u32 %v2903, 2147483648
    %v2908 = vxor.u32 %v2904, 2147483648
    %v2909 = vxor.u32 %v2905, 2147483648
    %v2910 = vxor.u32 %v2906, 2147483648
    %v2911 = vmul.f32 %v2907, 1.442695
    %v2912 = vpow.pop %v2911
    %v2913 = vmul.f32 %v2908, 1.442695
    %v2914 = vpow.pop %v2913
    %v2915 = vmul.f32 %v2909, 1.442695
    %v2916 = vpow.pop %v2915
    %v2917 = vmul.f32 %v2910, 1.442695
    %v2918 = vpow.pop %v2917
    %v2919 = vadd.f32 %v2912, 1.0
    %v2920 = vadd.f32 %v2914, 1.0
    %v2921 = vadd.f32 %v2916, 1.0
    %v2922 = vadd.f32 %v2918, 1.0
    %v2923 = vrcp.pop %v2919
    %v2924 = vmul.f32 1.0, %v2923
    %v2925 = vrcp.pop %v2920
    %v2926 = vmul.f32 1.0, %v2925
    %v2927 = vrcp.pop %v2921
    %v2928 = vmul.f32 1.0, %v2927
    %v2929 = vrcp.pop %v2922
    %v2930 = vmul.f32 1.0, %v2929
    %v2931 = vmul.f32 %v2903, %v2924
    %v2932 = vmul.f32 %v2904, %v2926
    %v2933 = vmul.f32 %v2905, %v2928
    %v2934 = vmul.f32 %v2906, %v2930
    %s2935 = scalar_lea.vmem %s45, 32
    %v2936 = vld [vmem:[%s2935] sm:$0xff]
    %v2937 = vld [vmem:[%s2935 + $0x8] sm:$0xff]
    %v2938 = vld [vmem:[%s2935 + $0x10] sm:$0xff]
    %v2939 = vld [vmem:[%s2935 + $0x18] sm:$0xff]
    %s2940 = scalar_lea.vmem %s47, 1
    %v2941 = vld [vmem:[%s2940] sm:$0x1]
    %v2943 = vlaneseq
    %v2944 = vshrl.u32 %v2943, 7
    %v2945 = vsub.s32 0, %v2944
    %v2946 = vrot.slane %v2941, %v2945
    %2948 = vmatprep.subr.mxu0 0.0
    %2949 = vmatpush1.msra.mxu0 %v2936
    %2950 = vmatprep.subr.mxu0 0.0
    %2951 = vmatpush1.msra.mxu0 %v2937
    %2952 = vmatprep.subr.mxu0 0.0
    %2953 = vmatpush1.msra.mxu0 %v2938
    %2954 = vmatprep.subr.mxu0 0.0
    %2955 = vmatpush1.msra.mxu0 %v2939
    %2956 = vmatprep.subr.mxu0 0.0
    %2957 = vmatpush1.msra.mxu0 0.0
    %2958 = vmatprep.subr.mxu0 0.0
    %2959 = vmatpush1.msra.mxu0 0.0
    %2960 = vmatprep.subr.mxu0 0.0
    %2961 = vmatpush1.msra.mxu0 0.0
    %2962 = vmatprep.subr.mxu0 0.0
    %2963 = vmatpush1.msra.mxu0 0.0
    %2964 = vmatprep.subr.mxu0 0.0
    %2965 = vmatpush1.msra.mxu0 0.0
    %2966 = vmatprep.subr.mxu0 0.0
    %2967 = vmatpush1.msra.mxu0 0.0
    %2968 = vmatprep.subr.mxu0 0.0
    %2969 = vmatpush1.msra.mxu0 0.0
    %2970 = vmatprep.subr.mxu0 0.0
    %2971 = vmatpush1.msra.mxu0 0.0
    %2972 = vmatprep.subr.mxu0 0.0
    %2973 = vmatpush1.msra.mxu0 0.0
    %2974 = vmatprep.subr.mxu0 0.0
    %2975 = vmatpush1.msra.mxu0 0.0
    %2976 = vmatprep.subr.mxu0 0.0
    %2977 = vmatpush1.msra.mxu0 0.0
    %2978 = vmatprep.subr.mxu0 0.0
    %2979 = vmatpush1.msra.mxu0 0.0
    %2980 = vmatprep.subr.mxu0 0.0
    %2981 = vmatpush1.msra.mxu0 0.0
    %2982 = vmatprep.subr.mxu0 0.0
    %2983 = vmatpush1.msra.mxu0 0.0
    %2984 = vmatprep.subr.mxu0 0.0
    %2985 = vmatpush1.msra.mxu0 0.0
    %2986 = vmatprep.subr.mxu0 0.0
    %2987 = vmatpush1.msra.mxu0 0.0
    %2988 = vmatprep.subr.mxu0 0.0
    %2989 = vmatpush1.msra.mxu0 0.0
    %2990 = vmatprep.subr.mxu0 0.0
    %2991 = vmatpush1.msra.mxu0 0.0
    %2992 = vmatprep.subr.mxu0 0.0
    %2993 = vmatpush1.msra.mxu0 0.0
    %2994 = vmatprep.subr.mxu0 0.0
    %2995 = vmatpush1.msra.mxu0 0.0
    %2996 = vmatprep.subr.mxu0 0.0
    %2997 = vmatpush1.msra.mxu0 0.0
    %2998 = vmatprep.subr.mxu0 0.0
    %2999 = vmatpush1.msra.mxu0 0.0
    %3000 = vmatprep.subr.mxu0 0.0
    %3001 = vmatpush1.msra.mxu0 0.0
    %3002 = vmatprep.subr.mxu0 0.0
    %3003 = vmatpush1.msra.mxu0 0.0
    %3004 = vmatprep.subr.mxu0 0.0
    %3005 = vmatpush1.msra.mxu0 0.0
    %3006 = vmatprep.subr.mxu0 0.0
    %3007 = vmatpush1.msra.mxu0 0.0
    %3008 = vmatprep.subr.mxu0 0.0
    %3009 = vmatpush1.msra.mxu0 0.0
    %3010 = vmatprep.subr.mxu0 0.0
    %3011 = vmatpush1.msra.mxu0 0.0
    %3012 = vmatprep.mubr.f32.mxu0 0.0
    %3013 = vmatmul.mubr.f32.gmra.mrb[0].mxu0 %v2319
    %v3014 = vpop.f32.mrb[0].mxu0
    %v3015 = vadd.f32 %v2946, %v3014
    %v3016 = vpop.f32.mrb[0].mxu0
    %3017 = vmatprep.mubr.f32.mxu0 0.0
    %3018 = vmatmul.mubr.f32.gmra.mrb[0].mxu0 %v2322
    %v3019 = vpop.f32.mrb[0].mxu0
    %v3020 = vadd.f32 %v2946, %v3019
    %v3021 = vpop.f32.mrb[0].mxu0
    %3022 = vdwg.mxu0
    %v3023 = vxor.u32 %v3015, 2147483648
    %v3024 = vxor.u32 %v3020, 2147483648
    %v3025 = vmul.f32 %v3023, 1.442695
    %v3026 = vpow.pop %v3025
    %v3027 = vmul.f32 %v3024, 1.442695
    %v3028 = vpow.pop %v3027
    %v3029 = vadd.f32 %v3026, 1.0
    %v3030 = vadd.f32 %v3028, 1.0
    %v3031 = vrcp.pop %v3029
    %v3032 = vmul.f32 1.0, %v3031
    %v3033 = vrcp.pop %v3030
    %v3034 = vmul.f32 1.0, %v3033
    %v3035 = vmul.f32 %v3015, %v3032
    %v3036 = vmul.f32 %v3020, %v3034
    %3037 = vmatprep.subr.mxu0 0.0
    %3038 = vmatpush1.msra.mxu0 %v3035
    %3039 = vmatprep.subr.mxu0 0.0
    %3040 = vmatpush1.msra.mxu0 %v3036
    %3041 = vmatprep.subr.mxu0 0.0
    %3042 = vmatpush1.msra.mxu0 0.0
    %3043 = vmatprep.subr.mxu0 0.0
    %3044 = vmatpush1.msra.mxu0 0.0
    %3045 = vmatprep.subr.mxu0 0.0
    %3046 = vmatpush1.msra.mxu0 0.0
    %3047 = vmatprep.subr.mxu0 0.0
    %3048 = vmatpush1.msra.mxu0 0.0
    %3049 = vmatprep.subr.mxu0 0.0
    %3050 = vmatpush1.msra.mxu0 0.0
    %3051 = vmatprep.subr.mxu0 0.0
    %3052 = vmatpush1.msra.mxu0 0.0
    %3053 = vmatprep.subr.mxu0 0.0
    %3054 = vmatpush1.msra.mxu0 0.0
    %3055 = vmatprep.subr.mxu0 0.0
    %3056 = vmatpush1.msra.mxu0 0.0
    %3057 = vmatprep.subr.mxu0 0.0
    %3058 = vmatpush1.msra.mxu0 0.0
    %3059 = vmatprep.subr.mxu0 0.0
    %3060 = vmatpush1.msra.mxu0 0.0
    %3061 = vmatprep.subr.mxu0 0.0
    %3062 = vmatpush1.msra.mxu0 0.0
    %3063 = vmatprep.subr.mxu0 0.0
    %3064 = vmatpush1.msra.mxu0 0.0
    %3065 = vmatprep.subr.mxu0 0.0
    %3066 = vmatpush1.msra.mxu0 0.0
    %3067 = vmatprep.subr.mxu0 0.0
    %3068 = vmatpush1.msra.mxu0 0.0
    %3069 = vmatprep.subr.mxu0 0.0
    %3070 = vmatpush1.msra.mxu0 0.0
    %3071 = vmatprep.subr.mxu0 0.0
    %3072 = vmatpush1.msra.mxu0 0.0
    %3073 = vmatprep.subr.mxu0 0.0
    %3074 = vmatpush1.msra.mxu0 0.0
    %3075 = vmatprep.subr.mxu0 0.0
    %3076 = vmatpush1.msra.mxu0 0.0
    %3077 = vmatprep.subr.mxu0 0.0
    %3078 = vmatpush1.msra.mxu0 0.0
    %3079 = vmatprep.subr.mxu0 0.0
    %3080 = vmatpush1.msra.mxu0 0.0
    %3081 = vmatprep.subr.mxu0 0.0
    %3082 = vmatpush1.msra.mxu0 0.0
    %3083 = vmatprep.subr.mxu0 0.0
    %3084 = vmatpush1.msra.mxu0 0.0
    %3085 = vmatprep.subr.mxu0 0.0
    %3086 = vmatpush1.msra.mxu0 0.0
    %3087 = vmatprep.subr.mxu0 0.0
    %3088 = vmatpush1.msra.mxu0 0.0
    %3089 = vmatprep.subr.mxu0 0.0
    %3090 = vmatpush1.msra.mxu0 0.0
    %3091 = vmatprep.subr.mxu0 0.0
    %3092 = vmatpush1.msra.mxu0 0.0
    %3093 = vmatprep.subr.mxu0 0.0
    %3094 = vmatpush1.msra.mxu0 0.0
    %3095 = vmatprep.subr.mxu0 0.0
    %3096 = vmatpush1.msra.mxu0 0.0
    %3097 = vmatprep.subr.mxu0 0.0
    %3098 = vmatpush1.msra.mxu0 0.0
    %3099 = vmatprep.subr.mxu0 0.0
    %3100 = vmatpush1.msra.mxu0 0.0
    %3101 = vmatprep.mubr.f32.mxu0 0.0
    %3102 = vmatmul.mubr.f32.gmra.mrb[0].mxu0 %v978
    %v3103 = vpop.f32.mrb[0].mxu0
    %v3104 = vadd.f32 0.0, %v3103
    %v3105 = vpop.f32.mrb[0].mxu0
    %3106 = vmatprep.mubr.f32.mxu0 0.0
    %3107 = vmatmul.mubr.f32.gmra.mrb[0].mxu0 %v981
    %v3108 = vpop.f32.mrb[0].mxu0
    %v3109 = vadd.f32 0.0, %v3108
    %v3110 = vpop.f32.mrb[0].mxu0
    %3111 = vmatprep.mubr.f32.mxu0 0.0
    %3112 = vmatmul.mubr.f32.gmra.mrb[0].mxu0 %v984
    %v3113 = vpop.f32.mrb[0].mxu0
    %v3114 = vadd.f32 0.0, %v3113
    %v3115 = vpop.f32.mrb[0].mxu0
    %3116 = vmatprep.mubr.f32.mxu0 0.0
    %3117 = vmatmul.mubr.f32.gmra.mrb[0].mxu0 %v987
    %v3118 = vpop.f32.mrb[0].mxu0
    %v3119 = vadd.f32 0.0, %v3118
    %v3120 = vpop.f32.mrb[0].mxu0
    %3121 = vdwg.mxu0
    %v3122 = vmul.f32 %v3104, %v2931
    %v3123 = vmul.f32 %v3109, %v2932
    %v3124 = vmul.f32 %v3114, %v2933
    %v3125 = vmul.f32 %v3119, %v2934
    %3126 = vmatprep.subr.mxu0 0.0
    %3127 = vmatpush1.msra.mxu0 %v3122
    %3128 = vmatprep.subr.mxu0 0.0
    %3129 = vmatpush1.msra.mxu0 %v3123
    %3130 = vmatprep.subr.mxu0 0.0
    %3131 = vmatpush1.msra.mxu0 %v3124
    %3132 = vmatprep.subr.mxu0 0.0
    %3133 = vmatpush1.msra.mxu0 %v3125
    %3134 = vmatprep.subr.mxu0 0.0
    %3135 = vmatpush1.msra.mxu0 0.0
    %3136 = vmatprep.subr.mxu0 0.0
    %3137 = vmatpush1.msra.mxu0 0.0
    %3138 = vmatprep.subr.mxu0 0.0
    %3139 = vmatpush1.msra.mxu0 0.0
    %3140 = vmatprep.subr.mxu0 0.0
    %3141 = vmatpush1.msra.mxu0 0.0
    %3142 = vmatprep.subr.mxu0 0.0
    %3143 = vmatpush1.msra.mxu0 0.0
    %3144 = vmatprep.subr.mxu0 0.0
    %3145 = vmatpush1.msra.mxu0 0.0
    %3146 = vmatprep.subr.mxu0 0.0
    %3147 = vmatpush1.msra.mxu0 0.0
    %3148 = vmatprep.subr.mxu0 0.0
    %3149 = vmatpush1.msra.mxu0 0.0
    %3150 = vmatprep.subr.mxu0 0.0
    %3151 = vmatpush1.msra.mxu0 0.0
    %3152 = vmatprep.subr.mxu0 0.0
    %3153 = vmatpush1.msra.mxu0 0.0
    %3154 = vmatprep.subr.mxu0 0.0
    %3155 = vmatpush1.msra.mxu0 0.0
    %3156 = vmatprep.subr.mxu0 0.0
    %3157 = vmatpush1.msra.mxu0 0.0
    %3158 = vmatprep.subr.mxu0 0.0
    %3159 = vmatpush1.msra.mxu0 0.0
    %3160 = vmatprep.subr.mxu0 0.0
    %3161 = vmatpush1.msra.mxu0 0.0
    %3162 = vmatprep.subr.mxu0 0.0
    %3163 = vmatpush1.msra.mxu0 0.0
    %3164 = vmatprep.subr.mxu0 0.0
    %3165 = vmatpush1.msra.mxu0 0.0
    %3166 = vmatprep.subr.mxu0 0.0
    %3167 = vmatpush1.msra.mxu0 0.0
    %3168 = vmatprep.subr.mxu0 0.0
    %3169 = vmatpush1.msra.mxu0 0.0
    %3170 = vmatprep.subr.mxu0 0.0
    %3171 = vmatpush1.msra.mxu0 0.0
    %3172 = vmatprep.subr.mxu0 0.0
    %3173 = vmatpush1.msra.mxu0 0.0
    %3174 = vmatprep.subr.mxu0 0.0
    %3175 = vmatpush1.msra.mxu0 0.0
    %3176 = vmatprep.subr.mxu0 0.0
    %3177 = vmatpush1.msra.mxu0 0.0
    %3178 = vmatprep.subr.mxu0 0.0
    %3179 = vmatpush1.msra.mxu0 0.0
    %3180 = vmatprep.subr.mxu0 0.0
    %3181 = vmatpush1.msra.mxu0 0.0
    %3182 = vmatprep.subr.mxu0 0.0
    %3183 = vmatpush1.msra.mxu0 0.0
    %3184 = vmatprep.subr.mxu0 0.0
    %3185 = vmatpush1.msra.mxu0 0.0
    %3186 = vmatprep.subr.mxu0 0.0
    %3187 = vmatpush1.msra.mxu0 0.0
    %3188 = vmatprep.subr.mxu0 0.0
    %3189 = vmatpush1.msra.mxu0 0.0
    %3190 = vmatprep.mubr.f32.mxu0 0.0
    %3191 = vmatmul.mubr.f32.gmra.mrb[0].mxu0 %v1737
    %v3192 = vpop.f32.mrb[0].mxu0
    %v3193 = vadd.f32 0.0, %v3192
    %v3194 = vpop.f32.mrb[0].mxu0
    %3195 = vmatprep.mubr.f32.mxu0 0.0
    %3196 = vmatmul.mubr.f32.gmra.mrb[0].mxu0 %v1740
    %v3197 = vpop.f32.mrb[0].mxu0
    %v3198 = vadd.f32 0.0, %v3197
    %v3199 = vpop.f32.mrb[0].mxu0
    %3200 = vdwg.mxu0
    %3201 = vmatprep.subr.mxu0 0.0
    %3202 = vmatpush1.msra.mxu0 %v3193
    %3203 = vmatprep.subr.mxu0 0.0
    %3204 = vmatpush1.msra.mxu0 %v3198
    %3205 = vmatprep.subr.mxu0 0.0
    %3206 = vmatpush1.msra.mxu0 0.0
    %3207 = vmatprep.subr.mxu0 0.0
    %3208 = vmatpush1.msra.mxu0 0.0
    %3209 = vmatprep.subr.mxu0 0.0
    %3210 = vmatpush1.msra.mxu0 0.0
    %3211 = vmatprep.subr.mxu0 0.0
    %3212 = vmatpush1.msra.mxu0 0.0
    %3213 = vmatprep.subr.mxu0 0.0
    %3214 = vmatpush1.msra.mxu0 0.0
    %3215 = vmatprep.subr.mxu0 0.0
    %3216 = vmatpush1.msra.mxu0 0.0
    %3217 = vmatprep.subr.mxu0 0.0
    %3218 = vmatpush1.msra.mxu0 0.0
    %3219 = vmatprep.subr.mxu0 0.0
    %3220 = vmatpush1.msra.mxu0 0.0
    %3221 = vmatprep.subr.mxu0 0.0
    %3222 = vmatpush1.msra.mxu0 0.0
    %3223 = vmatprep.subr.mxu0 0.0
    %3224 = vmatpush1.msra.mxu0 0.0
    %3225 = vmatprep.subr.mxu0 0.0
    %3226 = vmatpush1.msra.mxu0 0.0
    %3227 = vmatprep.subr.mxu0 0.0
    %3228 = vmatpush1.msra.mxu0 0.0
    %3229 = vmatprep.subr.mxu0 0.0
    %3230 = vmatpush1.msra.mxu0 0.0
    %3231 = vmatprep.subr.mxu0 0.0
    %3232 = vmatpush1.msra.mxu0 0.0
    %3233 = vmatprep.subr.mxu0 0.0
    %3234 = vmatpush1.msra.mxu0 0.0
    %3235 = vmatprep.subr.mxu0 0.0
    %3236 = vmatpush1.msra.mxu0 0.0
    %3237 = vmatprep.subr.mxu0 0.0
    %3238 = vmatpush1.msra.mxu0 0.0
    %3239 = vmatprep.subr.mxu0 0.0
    %3240 = vmatpush1.msra.mxu0 0.0
    %3241 = vmatprep.subr.mxu0 0.0
    %3242 = vmatpush1.msra.mxu0 0.0
    %3243 = vmatprep.subr.mxu0 0.0
    %3244 = vmatpush1.msra.mxu0 0.0
    %3245 = vmatprep.subr.mxu0 0.0
    %3246 = vmatpush1.msra.mxu0 0.0
    %3247 = vmatprep.subr.mxu0 0.0
    %3248 = vmatpush1.msra.mxu0 0.0
    %3249 = vmatprep.subr.mxu0 0.0
    %3250 = vmatpush1.msra.mxu0 0.0
    %3251 = vmatprep.subr.mxu0 0.0
    %3252 = vmatpush1.msra.mxu0 0.0
    %3253 = vmatprep.subr.mxu0 0.0
    %3254 = vmatpush1.msra.mxu0 0.0
    %3255 = vmatprep.subr.mxu0 0.0
    %3256 = vmatpush1.msra.mxu0 0.0
    %3257 = vmatprep.subr.mxu0 0.0
    %3258 = vmatpush1.msra.mxu0 0.0
    %3259 = vmatprep.subr.mxu0 0.0
    %3260 = vmatpush1.msra.mxu0 0.0
    %3261 = vmatprep.subr.mxu0 0.0
    %3262 = vmatpush1.msra.mxu0 0.0
    %3263 = vmatprep.subr.mxu0 0.0
    %3264 = vmatpush1.msra.mxu0 0.0
    %3265 = vmatprep.mubr.f32.mxu0 0.0
    %3266 = vmatmul.mubr.f32.gmra.mrb[0].mxu0 %v1850
    %v3267 = vpop.f32.mrb[0].mxu0
    %v3268 = vadd.f32 0.0, %v3267
    %v3269 = vpop.f32.mrb[0].mxu0
    %3270 = vdwg.mxu0
    %v3271 = vmul.f32 %v3268, %v1925
    %v3273 = vsel %vm1935, %v3271, 0
    %3275 = vmatprep.subr.mxu0 0.0
    %3276 = vmatpush1.msra.mxu0 %v3273
    %3277 = vmatprep.subr.mxu0 0.0
    %3278 = vmatpush1.msra.mxu0 0.0
    %3279 = vmatprep.subr.mxu0 0.0
    %3280 = vmatpush1.msra.mxu0 0.0
    %3281 = vmatprep.subr.mxu0 0.0
    %3282 = vmatpush1.msra.mxu0 0.0
    %3283 = vmatprep.subr.mxu0 0.0
    %3284 = vmatpush1.msra.mxu0 0.0
    %3285 = vmatprep.subr.mxu0 0.0
    %3286 = vmatpush1.msra.mxu0 0.0
    %3287 = vmatprep.subr.mxu0 0.0
    %3288 = vmatpush1.msra.mxu0 0.0
    %3289 = vmatprep.subr.mxu0 0.0
    %3290 = vmatpush1.msra.mxu0 0.0
    %3291 = vmatprep.subr.mxu0 0.0
    %3292 = vmatpush1.msra.mxu0 0.0
    %3293 = vmatprep.subr.mxu0 0.0
    %3294 = vmatpush1.msra.mxu0 0.0
    %3295 = vmatprep.subr.mxu0 0.0
    %3296 = vmatpush1.msra.mxu0 0.0
    %3297 = vmatprep.subr.mxu0 0.0
    %3298 = vmatpush1.msra.mxu0 0.0
    %3299 = vmatprep.subr.mxu0 0.0
    %3300 = vmatpush1.msra.mxu0 0.0
    %3301 = vmatprep.subr.mxu0 0.0
    %3302 = vmatpush1.msra.mxu0 0.0
    %3303 = vmatprep.subr.mxu0 0.0
    %3304 = vmatpush1.msra.mxu0 0.0
    %3305 = vmatprep.subr.mxu0 0.0
    %3306 = vmatpush1.msra.mxu0 0.0
    %3307 = vmatprep.subr.mxu0 0.0
    %3308 = vmatpush1.msra.mxu0 0.0
    %3309 = vmatprep.subr.mxu0 0.0
    %3310 = vmatpush1.msra.mxu0 0.0
    %3311 = vmatprep.subr.mxu0 0.0
    %3312 = vmatpush1.msra.mxu0 0.0
    %3313 = vmatprep.subr.mxu0 0.0
    %3314 = vmatpush1.msra.mxu0 0.0
    %3315 = vmatprep.subr.mxu0 0.0
    %3316 = vmatpush1.msra.mxu0 0.0
    %3317 = vmatprep.subr.mxu0 0.0
    %3318 = vmatpush1.msra.mxu0 0.0
    %3319 = vmatprep.subr.mxu0 0.0
    %3320 = vmatpush1.msra.mxu0 0.0
    %3321 = vmatprep.subr.mxu0 0.0
    %3322 = vmatpush1.msra.mxu0 0.0
    %3323 = vmatprep.subr.mxu0 0.0
    %3324 = vmatpush1.msra.mxu0 0.0
    %3325 = vmatprep.subr.mxu0 0.0
    %3326 = vmatpush1.msra.mxu0 0.0
    %3327 = vmatprep.subr.mxu0 0.0
    %3328 = vmatpush1.msra.mxu0 0.0
    %3329 = vmatprep.subr.mxu0 0.0
    %3330 = vmatpush1.msra.mxu0 0.0
    %3331 = vmatprep.subr.mxu0 0.0
    %3332 = vmatpush1.msra.mxu0 0.0
    %3333 = vmatprep.subr.mxu0 0.0
    %3334 = vmatpush1.msra.mxu0 0.0
    %3335 = vmatprep.subr.mxu0 0.0
    %3336 = vmatpush1.msra.mxu0 0.0
    %3337 = vmatprep.subr.mxu0 0.0
    %3338 = vmatpush1.msra.mxu0 0.0
    %3339 = vmatprep.mubr.f32.mxu0 0.0
    %3340 = vmatmul.mubr.f32.gmra.mrb[0].mxu0 %v1930
    %v3341 = vpop.f32.mrb[0].mxu0
    %v3342 = vadd.f32 0.0, %v3341
    %v3343 = vpop.f32.mrb[0].mxu0
    %3344 = vmatprep.mubr.f32.mxu0 0.0
    %3345 = vmatmul.mubr.f32.gmra.mrb[0].mxu0 %v1933
    %v3346 = vpop.f32.mrb[0].mxu0
    %v3347 = vadd.f32 0.0, %v3346
    %v3348 = vpop.f32.mrb[0].mxu0
    %3349 = vdwg.mxu0
    %s3350 = scalar_lea.vmem %s57, 1
    %v3351 = vld [vmem:[%s3350] sm:$0x1]
    %v3353 = vlaneseq
    %v3354 = vshrl.u32 %v3353, 7
    %v3355 = vsub.s32 0, %v3354
    %v3356 = vrot.slane %v3351, %v3355
    %v3358 = vmul.f32 %v3342, %v3356
    %v3359 = vmul.f32 %v3347, %v3356
    %v3360 = vsub.f32 %v3193, %v3358
    %v3361 = vsub.f32 %v3198, %v3359
    %v3362 = vmul.f32 %v3360, %v3360
    %v3363 = vmul.f32 %v3361, %v3361
    %3364 = vmatprep.subr.mxu0 0.0
    %3365 = vmatpush1.msra.mxu0 %v3362
    %3366 = vmatprep.subr.mxu0 0.0
    %3367 = vmatpush1.msra.mxu0 %v3363
    %3368 = vmatprep.subr.mxu0 0.0
    %3369 = vmatpush1.msra.mxu0 0.0
    %3370 = vmatprep.subr.mxu0 0.0
    %3371 = vmatpush1.msra.mxu0 0.0
    %3372 = vmatprep.subr.mxu0 0.0
    %3373 = vmatpush1.msra.mxu0 0.0
    %3374 = vmatprep.subr.mxu0 0.0
    %3375 = vmatpush1.msra.mxu0 0.0
    %3376 = vmatprep.subr.mxu0 0.0
    %3377 = vmatpush1.msra.mxu0 0.0
    %3378 = vmatprep.subr.mxu0 0.0
    %3379 = vmatpush1.msra.mxu0 0.0
    %3380 = vmatprep.subr.mxu0 0.0
    %3381 = vmatpush1.msra.mxu0 0.0
    %3382 = vmatprep.subr.mxu0 0.0
    %3383 = vmatpush1.msra.mxu0 0.0
    %3384 = vmatprep.subr.mxu0 0.0
    %3385 = vmatpush1.msra.mxu0 0.0
    %3386 = vmatprep.subr.mxu0 0.0
    %3387 = vmatpush1.msra.mxu0 0.0
    %3388 = vmatprep.subr.mxu0 0.0
    %3389 = vmatpush1.msra.mxu0 0.0
    %3390 = vmatprep.subr.mxu0 0.0
    %3391 = vmatpush1.msra.mxu0 0.0
    %3392 = vmatprep.subr.mxu0 0.0
    %3393 = vmatpush1.msra.mxu0 0.0
    %3394 = vmatprep.subr.mxu0 0.0
    %3395 = vmatpush1.msra.mxu0 0.0
    %3396 = vmatprep.subr.mxu0 0.0
    %3397 = vmatpush1.msra.mxu0 0.0
    %3398 = vmatprep.subr.mxu0 0.0
    %3399 = vmatpush1.msra.mxu0 0.0
    %3400 = vmatprep.subr.mxu0 0.0
    %3401 = vmatpush1.msra.mxu0 0.0
    %3402 = vmatprep.subr.mxu0 0.0
    %3403 = vmatpush1.msra.mxu0 0.0
    %3404 = vmatprep.subr.mxu0 0.0
    %3405 = vmatpush1.msra.mxu0 0.0
    %3406 = vmatprep.subr.mxu0 0.0
    %3407 = vmatpush1.msra.mxu0 0.0
    %3408 = vmatprep.subr.mxu0 0.0
    %3409 = vmatpush1.msra.mxu0 0.0
    %3410 = vmatprep.subr.mxu0 0.0
    %3411 = vmatpush1.msra.mxu0 0.0
    %3412 = vmatprep.subr.mxu0 0.0
    %3413 = vmatpush1.msra.mxu0 0.0
    %3414 = vmatprep.subr.mxu0 0.0
    %3415 = vmatpush1.msra.mxu0 0.0
    %3416 = vmatprep.subr.mxu0 0.0
    %3417 = vmatpush1.msra.mxu0 0.0
    %3418 = vmatprep.subr.mxu0 0.0
    %3419 = vmatpush1.msra.mxu0 0.0
    %3420 = vmatprep.subr.mxu0 0.0
    %3421 = vmatpush1.msra.mxu0 0.0
    %3422 = vmatprep.subr.mxu0 0.0
    %3423 = vmatpush1.msra.mxu0 0.0
    %3424 = vmatprep.subr.mxu0 0.0
    %3425 = vmatpush1.msra.mxu0 0.0
    %3426 = vmatprep.subr.mxu0 0.0
    %3427 = vmatpush1.msra.mxu0 0.0
    %3428 = vmatprep.mubr.f32.mxu0 0.0
    %3429 = vmatmul.mubr.f32.gmra.mrb[0].mxu0 %v1850
    %v3430 = vpop.f32.mrb[0].mxu0
    %v3431 = vadd.f32 0.0, %v3430
    %v3432 = vpop.f32.mrb[0].mxu0
    %3433 = vdwg.mxu0
    %v3434 = vmul.f32 %v3431, %v1925
    %s3435 = scalar_lea.vmem %s53, 1
    %v3436 = vld [vmem:[%s3435] sm:$0x1]
    %v3438 = vlaneseq
    %v3439 = vshrl.u32 %v3438, 7
    %v3440 = vsub.s32 0, %v3439
    %v3441 = vrot.slane %v3436, %v3440
    %v3443 = vmul.f32 %v3441, %v3360
    %v3444 = vmul.f32 %v3441, %v3361
    %v3446 = vsel %vm1935, %v3434, 0
    %3448 = vmatprep.subr.mxu0 0.0
    %3449 = vmatpush1.msra.mxu0 %v3446
    %3450 = vmatprep.subr.mxu0 0.0
    %3451 = vmatpush1.msra.mxu0 0.0
    %3452 = vmatprep.subr.mxu0 0.0
    %3453 = vmatpush1.msra.mxu0 0.0
    %3454 = vmatprep.subr.mxu0 0.0
    %3455 = vmatpush1.msra.mxu0 0.0
    %3456 = vmatprep.subr.mxu0 0.0
    %3457 = vmatpush1.msra.mxu0 0.0
    %3458 = vmatprep.subr.mxu0 0.0
    %3459 = vmatpush1.msra.mxu0 0.0
    %3460 = vmatprep.subr.mxu0 0.0
    %3461 = vmatpush1.msra.mxu0 0.0
    %3462 = vmatprep.subr.mxu0 0.0
    %3463 = vmatpush1.msra.mxu0 0.0
    %3464 = vmatprep.subr.mxu0 0.0
    %3465 = vmatpush1.msra.mxu0 0.0
    %3466 = vmatprep.subr.mxu0 0.0
    %3467 = vmatpush1.msra.mxu0 0.0
    %3468 = vmatprep.subr.mxu0 0.0
    %3469 = vmatpush1.msra.mxu0 0.0
    %3470 = vmatprep.subr.mxu0 0.0
    %3471 = vmatpush1.msra.mxu0 0.0
    %3472 = vmatprep.subr.mxu0 0.0
    %3473 = vmatpush1.msra.mxu0 0.0
    %3474 = vmatprep.subr.mxu0 0.0
    %3475 = vmatpush1.msra.mxu0 0.0
    %3476 = vmatprep.subr.mxu0 0.0
    %3477 = vmatpush1.msra.mxu0 0.0
    %3478 = vmatprep.subr.mxu0 0.0
    %3479 = vmatpush1.msra.mxu0 0.0
    %3480 = vmatprep.subr.mxu0 0.0
    %3481 = vmatpush1.msra.mxu0 0.0
    %3482 = vmatprep.subr.mxu0 0.0
    %3483 = vmatpush1.msra.mxu0 0.0
    %3484 = vmatprep.subr.mxu0 0.0
    %3485 = vmatpush1.msra.mxu0 0.0
    %3486 = vmatprep.subr.mxu0 0.0
    %3487 = vmatpush1.msra.mxu0 0.0
    %3488 = vmatprep.subr.mxu0 0.0
    %3489 = vmatpush1.msra.mxu0 0.0
    %3490 = vmatprep.subr.mxu0 0.0
    %3491 = vmatpush1.msra.mxu0 0.0
    %3492 = vmatprep.subr.mxu0 0.0
    %3493 = vmatpush1.msra.mxu0 0.0
    %3494 = vmatprep.subr.mxu0 0.0
    %3495 = vmatpush1.msra.mxu0 0.0
    %3496 = vmatprep.subr.mxu0 0.0
    %3497 = vmatpush1.msra.mxu0 0.0
    %3498 = vmatprep.subr.mxu0 0.0
    %3499 = vmatpush1.msra.mxu0 0.0
    %3500 = vmatprep.subr.mxu0 0.0
    %3501 = vmatpush1.msra.mxu0 0.0
    %3502 = vmatprep.subr.mxu0 0.0
    %3503 = vmatpush1.msra.mxu0 0.0
    %3504 = vmatprep.subr.mxu0 0.0
    %3505 = vmatpush1.msra.mxu0 0.0
    %3506 = vmatprep.subr.mxu0 0.0
    %3507 = vmatpush1.msra.mxu0 0.0
    %3508 = vmatprep.subr.mxu0 0.0
    %3509 = vmatpush1.msra.mxu0 0.0
    %3510 = vmatprep.subr.mxu0 0.0
    %3511 = vmatpush1.msra.mxu0 0.0
    %3512 = vmatprep.mubr.f32.mxu0 0.0
    %3513 = vmatmul.mubr.f32.gmra.mrb[0].mxu0 %v1930
    %v3514 = vpop.f32.mrb[0].mxu0
    %v3515 = vadd.f32 1e-05, %v3514
    %v3516 = vpop.f32.mrb[0].mxu0
    %3517 = vmatprep.mubr.f32.mxu0 0.0
    %3518 = vmatmul.mubr.f32.gmra.mrb[0].mxu0 %v1933
    %v3519 = vpop.f32.mrb[0].mxu0
    %v3520 = vadd.f32 1e-05, %v3519
    %v3521 = vpop.f32.mrb[0].mxu0
    %3522 = vdwg.mxu0
    %v3523 = vrsqrt.pop %v3515
    %v3524 = vrsqrt.pop %v3520
    %v3525 = vmul.f32 %v3443, %v3523
    %v3526 = vmul.f32 %v3444, %v3524
    %s3527 = scalar_lea.vmem %s55, 1
    %v3528 = vld [vmem:[%s3527] sm:$0x1]
    %v3530 = vlaneseq
    %v3531 = vshrl.u32 %v3530, 7
    %v3532 = vsub.s32 0, %v3531
    %v3533 = vrot.slane %v3528, %v3532
    %v3535 = vadd.f32 %v3525, %v3533
    %v3536 = vadd.f32 %v3526, %v3533
    %v3537 = vxor.u32 %v3535, 2147483648
    %v3538 = vxor.u32 %v3536, 2147483648
    %v3539 = vmul.f32 %v3537, 1.442695
    %v3540 = vpow.pop %v3539
    %v3541 = vmul.f32 %v3538, 1.442695
    %v3542 = vpow.pop %v3541
    %v3543 = vadd.f32 %v3540, 1.0
    %v3544 = vadd.f32 %v3542, 1.0
    %v3545 = vrcp.pop %v3543
    %v3546 = vmul.f32 1.0, %v3545
    %v3547 = vrcp.pop %v3544
    %v3548 = vmul.f32 1.0, %v3547
    %v3549 = vmul.f32 %v3535, %v3546
    %v3550 = vmul.f32 %v3536, %v3548
    %s3551 = scalar_lea.vmem %s49, 16
    %v3552 = vld [vmem:[%s3551] sm:$0xff]
    %v3553 = vld [vmem:[%s3551 + $0x8] sm:$0xff]
    %s3554 = scalar_lea.vmem %s51, 1
    %v3555 = vld [vmem:[%s3554] sm:$0x1]
    %v3557 = vlaneseq
    %v3558 = vshrl.u32 %v3557, 7
    %v3559 = vsub.s32 0, %v3558
    %v3560 = vrot.slane %v3555, %v3559
    %v3563 = vsel %vm468, %v3549, 0
    %v3566 = vsel %vm468, %v3550, 0
    %3568 = vmatprep.subr.mxu0 0.0
    %3569 = vmatpush1.msra.mxu0 %v3552
    %3570 = vmatprep.subr.mxu0 0.0
    %3571 = vmatpush1.msra.mxu0 %v3553
    %3572 = vmatprep.subr.mxu0 0.0
    %3573 = vmatpush1.msra.mxu0 0.0
    %3574 = vmatprep.subr.mxu0 0.0
    %3575 = vmatpush1.msra.mxu0 0.0
    %3576 = vmatprep.subr.mxu0 0.0
    %3577 = vmatpush1.msra.mxu0 0.0
    %3578 = vmatprep.subr.mxu0 0.0
    %3579 = vmatpush1.msra.mxu0 0.0
    %3580 = vmatprep.subr.mxu0 0.0
    %3581 = vmatpush1.msra.mxu0 0.0
    %3582 = vmatprep.subr.mxu0 0.0
    %3583 = vmatpush1.msra.mxu0 0.0
    %3584 = vmatprep.subr.mxu0 0.0
    %3585 = vmatpush1.msra.mxu0 0.0
    %3586 = vmatprep.subr.mxu0 0.0
    %3587 = vmatpush1.msra.mxu0 0.0
    %3588 = vmatprep.subr.mxu0 0.0
    %3589 = vmatpush1.msra.mxu0 0.0
    %3590 = vmatprep.subr.mxu0 0.0
    %3591 = vmatpush1.msra.mxu0 0.0
    %3592 = vmatprep.subr.mxu0 0.0
    %3593 = vmatpush1.msra.mxu0 0.0
    %3594 = vmatprep.subr.mxu0 0.0
    %3595 = vmatpush1.msra.mxu0 0.0
    %3596 = vmatprep.subr.mxu0 0.0
    %3597 = vmatpush1.msra.mxu0 0.0
    %3598 = vmatprep.subr.mxu0 0.0
    %3599 = vmatpush1.msra.mxu0 0.0
    %3600 = vmatprep.subr.mxu0 0.0
    %3601 = vmatpush1.msra.mxu0 0.0
    %3602 = vmatprep.subr.mxu0 0.0
    %3603 = vmatpush1.msra.mxu0 0.0
    %3604 = vmatprep.subr.mxu0 0.0
    %3605 = vmatpush1.msra.mxu0 0.0
    %3606 = vmatprep.subr.mxu0 0.0
    %3607 = vmatpush1.msra.mxu0 0.0
    %3608 = vmatprep.subr.mxu0 0.0
    %3609 = vmatpush1.msra.mxu0 0.0
    %3610 = vmatprep.subr.mxu0 0.0
    %3611 = vmatpush1.msra.mxu0 0.0
    %3612 = vmatprep.subr.mxu0 0.0
    %3613 = vmatpush1.msra.mxu0 0.0
    %3614 = vmatprep.subr.mxu0 0.0
    %3615 = vmatpush1.msra.mxu0 0.0
    %3616 = vmatprep.subr.mxu0 0.0
    %3617 = vmatpush1.msra.mxu0 0.0
    %3618 = vmatprep.subr.mxu0 0.0
    %3619 = vmatpush1.msra.mxu0 0.0
    %3620 = vmatprep.subr.mxu0 0.0
    %3621 = vmatpush1.msra.mxu0 0.0
    %3622 = vmatprep.subr.mxu0 0.0
    %3623 = vmatpush1.msra.mxu0 0.0
    %3624 = vmatprep.subr.mxu0 0.0
    %3625 = vmatpush1.msra.mxu0 0.0
    %3626 = vmatprep.subr.mxu0 0.0
    %3627 = vmatpush1.msra.mxu0 0.0
    %3628 = vmatprep.subr.mxu0 0.0
    %3629 = vmatpush1.msra.mxu0 0.0
    %3630 = vmatprep.subr.mxu0 0.0
    %3631 = vmatpush1.msra.mxu0 0.0
    %3632 = vmatprep.mubr.f32.mxu0 0.0
    %3633 = vmatmul.mubr.f32.gmra.mrb[0].mxu0 %v3563
    %v3634 = vpop.f32.mrb[0].mxu0
    %v3635 = vadd.f32 %v3560, %v3634
    %v3636 = vpop.f32.mrb[0].mxu0
    %3637 = vmatprep.mubr.f32.mxu0 0.0
    %3638 = vmatmul.mubr.f32.gmra.mrb[0].mxu0 %v3566
    %v3639 = vpop.f32.mrb[0].mxu0
    %v3640 = vadd.f32 %v3560, %v3639
    %v3641 = vpop.f32.mrb[0].mxu0
    %3642 = vdwg.mxu0
    %v3643 = vxor.u32 %v3635, 2147483648
    %v3644 = vxor.u32 %v3640, 2147483648
    %v3645 = vmul.f32 %v3643, 1.442695
    %v3646 = vpow.pop %v3645
    %v3647 = vmul.f32 %v3644, 1.442695
    %v3648 = vpow.pop %v3647
    %v3649 = vadd.f32 %v3646, 1.0
    %v3650 = vadd.f32 %v3648, 1.0
    %v3651 = vrcp.pop %v3649
    %v3652 = vmul.f32 1.0, %v3651
    %v3653 = vrcp.pop %v3650
    %v3654 = vmul.f32 1.0, %v3653
    %v3655 = vmul.f32 %v3635, %v3652
    %v3656 = vmul.f32 %v3640, %v3654
    %v3657 = vadd.f32 %v2316, %v3655
    %v3658 = vadd.f32 %v2317, %v3656
    %v3660 = vsel %vm198, %v3657, 0
    %v3663 = vsel %vm198, %v3658, 0
    %3665 = vmatprep.subr.mxu0 0.0
    %3666 = vmatpush1.msra.mxu0 %v841
    %3667 = vmatprep.subr.mxu0 0.0
    %3668 = vmatpush1.msra.mxu0 %v842
    %3669 = vmatprep.subr.mxu0 0.0
    %3670 = vmatpush1.msra.mxu0 %v843
    %3671 = vmatprep.subr.mxu0 0.0
    %3672 = vmatpush1.msra.mxu0 %v844
    %3673 = vmatprep.subr.mxu0 0.0
    %3674 = vmatpush1.msra.mxu0 0.0
    %3675 = vmatprep.subr.mxu0 0.0
    %3676 = vmatpush1.msra.mxu0 0.0
    %3677 = vmatprep.subr.mxu0 0.0
    %3678 = vmatpush1.msra.mxu0 0.0
    %3679 = vmatprep.subr.mxu0 0.0
    %3680 = vmatpush1.msra.mxu0 0.0
    %3681 = vmatprep.subr.mxu0 0.0
    %3682 = vmatpush1.msra.mxu0 0.0
    %3683 = vmatprep.subr.mxu0 0.0
    %3684 = vmatpush1.msra.mxu0 0.0
    %3685 = vmatprep.subr.mxu0 0.0
    %3686 = vmatpush1.msra.mxu0 0.0
    %3687 = vmatprep.subr.mxu0 0.0
    %3688 = vmatpush1.msra.mxu0 0.0
    %3689 = vmatprep.subr.mxu0 0.0
    %3690 = vmatpush1.msra.mxu0 0.0
    %3691 = vmatprep.subr.mxu0 0.0
    %3692 = vmatpush1.msra.mxu0 0.0
    %3693 = vmatprep.subr.mxu0 0.0
    %3694 = vmatpush1.msra.mxu0 0.0
    %3695 = vmatprep.subr.mxu0 0.0
    %3696 = vmatpush1.msra.mxu0 0.0
    %3697 = vmatprep.subr.mxu0 0.0
    %3698 = vmatpush1.msra.mxu0 0.0
    %3699 = vmatprep.subr.mxu0 0.0
    %3700 = vmatpush1.msra.mxu0 0.0
    %3701 = vmatprep.subr.mxu0 0.0
    %3702 = vmatpush1.msra.mxu0 0.0
    %3703 = vmatprep.subr.mxu0 0.0
    %3704 = vmatpush1.msra.mxu0 0.0
    %3705 = vmatprep.subr.mxu0 0.0
    %3706 = vmatpush1.msra.mxu0 0.0
    %3707 = vmatprep.subr.mxu0 0.0
    %3708 = vmatpush1.msra.mxu0 0.0
    %3709 = vmatprep.subr.mxu0 0.0
    %3710 = vmatpush1.msra.mxu0 0.0
    %3711 = vmatprep.subr.mxu0 0.0
    %3712 = vmatpush1.msra.mxu0 0.0
    %3713 = vmatprep.subr.mxu0 0.0
    %3714 = vmatpush1.msra.mxu0 0.0
    %3715 = vmatprep.subr.mxu0 0.0
    %3716 = vmatpush1.msra.mxu0 0.0
    %3717 = vmatprep.subr.mxu0 0.0
    %3718 = vmatpush1.msra.mxu0 0.0
    %3719 = vmatprep.subr.mxu0 0.0
    %3720 = vmatpush1.msra.mxu0 0.0
    %3721 = vmatprep.subr.mxu0 0.0
    %3722 = vmatpush1.msra.mxu0 0.0
    %3723 = vmatprep.subr.mxu0 0.0
    %3724 = vmatpush1.msra.mxu0 0.0
    %3725 = vmatprep.subr.mxu0 0.0
    %3726 = vmatpush1.msra.mxu0 0.0
    %3727 = vmatprep.subr.mxu0 0.0
    %3728 = vmatpush1.msra.mxu0 0.0
    %3729 = vmatprep.mubr.f32.mxu0 0.0
    %3730 = vmatmul.mubr.f32.gmra.mrb[0].mxu0 %v3660
    %v3731 = vpop.f32.mrb[0].mxu0
    %v3732 = vadd.f32 %v850, %v3731
    %v3733 = vpop.f32.mrb[0].mxu0
    %3734 = vmatprep.mubr.f32.mxu0 0.0
    %3735 = vmatmul.mubr.f32.gmra.mrb[0].mxu0 %v3663
    %v3736 = vpop.f32.mrb[0].mxu0
    %v3737 = vadd.f32 %v850, %v3736
    %v3738 = vpop.f32.mrb[0].mxu0
    %3739 = vdwg.mxu0
    %v3740 = vxor.u32 %v3732, 2147483648
    %v3741 = vxor.u32 %v3737, 2147483648
    %v3742 = vmul.f32 %v3740, 1.442695
    %v3743 = vpow.pop %v3742
    %v3744 = vmul.f32 %v3741, 1.442695
    %v3745 = vpow.pop %v3744
    %v3746 = vadd.f32 %v3743, 1.0
    %v3747 = vadd.f32 %v3745, 1.0
    %v3748 = vrcp.pop %v3746
    %v3749 = vmul.f32 1.0, %v3748
    %v3750 = vrcp.pop %v3747
    %v3751 = vmul.f32 1.0, %v3750
    %v3752 = vmul.f32 %v3732, %v3749
    %v3753 = vmul.f32 %v3737, %v3751
    %v3754 = vmul.f32 %v3752, %v952
    %v3755 = vmul.f32 %v3753, %v952
    %v3756 = vsel %vm468, %v3754, 0.0
    %3757 = vadd.xlane.f32.xlu0 %v3756
    %v3758 = vpop.xlane.xlu0 %3757
    %v3759 = vsel %vm468, %v3755, 0.0
    %3760 = vadd.xlane.f32.xlu0 %v3759
    %v3761 = vpop.xlane.xlu0 %3760
    %v3762 = vadd.f32 %v3758, %v967
    %v3763 = vadd.f32 %v3761, %v967
    %s3764 = sld [smem:[#allocation5 + $0x2]]
    %v3765 = vstv %s3764
    %v3766 = vmul.f32 %v3762, %v3765
    %v3767 = vmul.f32 %v3763, %v3765
    %v3768 = vadd.f32 %v2427, %v3766
    %v3769 = vadd.f32 %v2428, %v3767
    %s3770 = sld [smem:[#allocation4]]
    %v3771 = vstv %s3770
    %v3772 = vadd.f32 %v3768, %v3771
    %v3773 = vadd.f32 %v3769, %v3771
    %3774 = vmatprep.subr.mxu0 0.0
    %3775 = vmatpush1.msra.mxu0 %v3772
    %3776 = vmatprep.subr.mxu0 0.0
    %3777 = vmatpush1.msra.mxu0 %v3773
    %3778 = vmatprep.subr.mxu0 0.0
    %3779 = vmatpush1.msra.mxu0 0.0
    %3780 = vmatprep.subr.mxu0 0.0
    %3781 = vmatpush1.msra.mxu0 0.0
    %3782 = vmatprep.subr.mxu0 0.0
    %3783 = vmatpush1.msra.mxu0 0.0
    %3784 = vmatprep.subr.mxu0 0.0
    %3785 = vmatpush1.msra.mxu0 0.0
    %3786 = vmatprep.subr.mxu0 0.0
    %3787 = vmatpush1.msra.mxu0 0.0
    %3788 = vmatprep.subr.mxu0 0.0
    %3789 = vmatpush1.msra.mxu0 0.0
    %3790 = vmatprep.subr.mxu0 0.0
    %3791 = vmatpush1.msra.mxu0 0.0
    %3792 = vmatprep.subr.mxu0 0.0
    %3793 = vmatpush1.msra.mxu0 0.0
    %3794 = vmatprep.subr.mxu0 0.0
    %3795 = vmatpush1.msra.mxu0 0.0
    %3796 = vmatprep.subr.mxu0 0.0
    %3797 = vmatpush1.msra.mxu0 0.0
    %3798 = vmatprep.subr.mxu0 0.0
    %3799 = vmatpush1.msra.mxu0 0.0
    %3800 = vmatprep.subr.mxu0 0.0
    %3801 = vmatpush1.msra.mxu0 0.0
    %3802 = vmatprep.subr.mxu0 0.0
    %3803 = vmatpush1.msra.mxu0 0.0
    %3804 = vmatprep.subr.mxu0 0.0
    %3805 = vmatpush1.msra.mxu0 0.0
    %3806 = vmatprep.subr.mxu0 0.0
    %3807 = vmatpush1.msra.mxu0 0.0
    %3808 = vmatprep.subr.mxu0 0.0
    %3809 = vmatpush1.msra.mxu0 0.0
    %3810 = vmatprep.subr.mxu0 0.0
    %3811 = vmatpush1.msra.mxu0 0.0
    %3812 = vmatprep.subr.mxu0 0.0
    %3813 = vmatpush1.msra.mxu0 0.0
    %3814 = vmatprep.subr.mxu0 0.0
    %3815 = vmatpush1.msra.mxu0 0.0
    %3816 = vmatprep.subr.mxu0 0.0
    %3817 = vmatpush1.msra.mxu0 0.0
    %3818 = vmatprep.subr.mxu0 0.0
    %3819 = vmatpush1.msra.mxu0 0.0
    %3820 = vmatprep.subr.mxu0 0.0
    %3821 = vmatpush1.msra.mxu0 0.0
    %3822 = vmatprep.subr.mxu0 0.0
    %3823 = vmatpush1.msra.mxu0 0.0
    %3824 = vmatprep.subr.mxu0 0.0
    %3825 = vmatpush1.msra.mxu0 0.0
    %3826 = vmatprep.subr.mxu0 0.0
    %3827 = vmatpush1.msra.mxu0 0.0
    %3828 = vmatprep.subr.mxu0 0.0
    %3829 = vmatpush1.msra.mxu0 0.0
    %3830 = vmatprep.subr.mxu0 0.0
    %3831 = vmatpush1.msra.mxu0 0.0
    %3832 = vmatprep.subr.mxu0 0.0
    %3833 = vmatpush1.msra.mxu0 0.0
    %3834 = vmatprep.subr.mxu0 0.0
    %3835 = vmatpush1.msra.mxu0 0.0
    %3836 = vmatprep.subr.mxu0 0.0
    %3837 = vmatpush1.msra.mxu0 0.0
    %3838 = vmatprep.mubr.f32.mxu0 0.0
    %3839 = vmatmul.mubr.f32.gmra.mrb[0].mxu0 %v1850
    %v3840 = vpop.f32.mrb[0].mxu0
    %v3841 = vadd.f32 0.0, %v3840
    %v3842 = vpop.f32.mrb[0].mxu0
    %3843 = vdwg.mxu0
    %v3844 = vmul.f32 %v3841, %v184
    %vm3845 = vcmask 1024
    %3846 = vst.msk [vmem:[%s71] sm:$0x3] %vm3845, %v3844
    // Predicated region
    $region146: #{arch_fae_forward.1} parent=1 // pred_check
      _
    $region147: #{arch_fae_forward.1} parent=1 // pred_check_branch
      %3848 = sbr.rel (0) target = $region149
    $region148: #{arch_fae_forward.1} parent=1 // pred_region
      _
    $region149: #{arch_fae_forward.1} parent=1 // pred_fallthru
      _
    // Predicated region
    $region150: #{arch_fae_forward.1} parent=1 // pred_check
      _
    $region151: #{arch_fae_forward.1} parent=1 // pred_check_branch
      %3850 = sbr.rel (0) target = $region153
    $region152: #{arch_fae_forward.1} parent=1 // pred_region
      _
    $region153: #{arch_fae_forward.1} parent=1 // pred_fallthru
      _
    %3851 = vsyncpa [#allocation6], 1

</llo_original>
